<compile_context>
chip_gen: v6e
topology: v6e:2x2x1
jax: 0.10.0
libtpu: 0.0.40
codegen_flags: <defaults>
</compile_context>

<pallas_src>
import math
import functools

import jax
import jax.numpy as jnp
import numpy as np
from jax.experimental import pallas as pl
from jax.experimental.pallas import tpu as pltpu  # noqa: F401

# ----- model hyper-parameters (small, consistent with the tutorial module) ---
D_MODEL = 32
N_HEADS = 4
D_K = 8
D_V = 8
D_FF = 64
LN_EPS = 1e-5

HK = N_HEADS * D_K          # 32
HV = N_HEADS * D_V          # 32

# ----- packed-parameter slab layout (static row offsets, 128 lanes wide) -----
P_LANES = 128
R_SA_WQKV = 0                       # (D_MODEL, 3*HK)  fused Wq|Wk|Wv (self)
R_SA_WO   = R_SA_WQKV + D_MODEL     # (HV, D_MODEL)
R_EA_WQ   = R_SA_WO + HV            # (D_MODEL, HK)
R_EA_WKV  = R_EA_WQ + D_MODEL       # (D_MODEL, HK+HV) fused Wk|Wv (cross)
R_EA_WO   = R_EA_WKV + D_MODEL      # (HV, D_MODEL)
R_FF_W1   = R_EA_WO + HV            # (D_MODEL, D_FF)
R_FF_W2   = R_FF_W1 + D_MODEL       # (D_FF, D_MODEL)
R_VEC     = R_FF_W2 + D_FF          # start of 1-row vectors (bias/gamma/beta)
(V_SA_BQKV, V_SA_BO, V_SA_G, V_SA_B,
 V_EA_BQ, V_EA_BKV, V_EA_BO, V_EA_G, V_EA_B,
 V_FF_B1, V_FF_B2, V_FF_G, V_FF_B) = range(13)
N_VEC = 13
N_VEC_PAD = ((N_VEC + 7) // 8) * 8
P_ROWS = R_VEC + N_VEC_PAD          # 272


# =============================== kernel helpers ==============================
def _layer_norm(y, gamma, beta):
    mean = jnp.mean(y, axis=-1, keepdims=True)
    var = jnp.mean(y * y, axis=-1, keepdims=True) - mean * mean  # single pass
    return (y - mean) * jax.lax.rsqrt(var + LN_EPS) * gamma + beta


def _attention_core(q, k, v, bias, wo, bo, gamma, beta, residual, B, Sq, Sk):
    """q: (B*Sq, HK) with 1/sqrt(dk) folded in, k: (B*Sk, HK), v: (B*Sk, HV),
    bias: (B, Sq, Sk) additive (-1e9 on masked positions), wo: (HV, D_MODEL).
    Returns (LayerNorm(residual + attn_out @ Wo + bo), attn_flat=(B*Sq,H*Sk))."""
    q3 = q.reshape(B, Sq, HK)
    k3 = k.reshape(B, Sk, HK)

    acc = residual + bo                               # (B*Sq, D_MODEL)
    attn_parts = []
    for h in range(N_HEADS):                          # static unroll over heads
        qh = q3[:, :, h * D_K:(h + 1) * D_K]          # (B, Sq, dk)
        kh = k3[:, :, h * D_K:(h + 1) * D_K]          # (B, Sk, dk)

        s = jnp.einsum("bqd,bkd->bqk", qh, kh,
                       preferred_element_type=jnp.float32) + bias
        m = jnp.max(s, axis=-1, keepdims=True)
        e = jnp.exp(s - m)
        a = e * pl.reciprocal(jnp.sum(e, axis=-1, keepdims=True), approx=True)
        attn_parts.append(a.reshape(B * Sq, Sk))

        # (a_h @ v_h) @ Wo_h  ==  a_h @ (v_h @ Wo_h): lane-dense MXU outputs,
        # no ctx concat, no separate Wo matmul.
        vwo = jnp.dot(v[:, h * D_V:(h + 1) * D_V],
                      wo[h * D_V:(h + 1) * D_V, :],
                      preferred_element_type=jnp.float32)        # (B*Sk, D)
        acc = acc + jnp.einsum("bqk,bkd->bqd", a,
                               vwo.reshape(B, Sk, D_MODEL),
                               preferred_element_type=jnp.float32
                               ).reshape(B * Sq, D_MODEL)

    attn_flat = jnp.concatenate(attn_parts, axis=-1)             # (B*Sq, H*Sk)
    return _layer_norm(acc, gamma, beta), attn_flat


# =============================== fused kernel ================================
def decoder_layer_kernel(x_ref, bias_ref, p_ref, out_ref, *, B, Sd, Se):
    n_dec = B * Sd
    n_enc = B * Se

    x_dec = x_ref[0:n_dec, :]                         # (B*Sd, D)
    x_enc = x_ref[n_dec:n_dec + n_enc, :]             # (B*Se, D)

    sbias = bias_ref[:, 0:Sd].reshape(B, Sd, Sd)      # additive self-attn bias
    ebias = bias_ref[:, Sd:Sd + Se].reshape(B, Sd, Se)

    # --------- unpack the single parameter slab (static slices) --------------
    sa_wqkv = p_ref[R_SA_WQKV:R_SA_WQKV + D_MODEL, 0:3 * HK]
    sa_wo   = p_ref[R_SA_WO:R_SA_WO + HV, 0:D_MODEL]
    ea_wq   = p_ref[R_EA_WQ:R_EA_WQ + D_MODEL, 0:HK]
    ea_wkv  = p_ref[R_EA_WKV:R_EA_WKV + D_MODEL, 0:HK + HV]
    ea_wo   = p_ref[R_EA_WO:R_EA_WO + HV, 0:D_MODEL]
    ff_w1   = p_ref[R_FF_W1:R_FF_W1 + D_MODEL, 0:D_FF]
    ff_w2   = p_ref[R_FF_W2:R_FF_W2 + D_FF, 0:D_MODEL]

    vecs = p_ref[R_VEC:R_VEC + N_VEC_PAD, :]          # one aligned block load

    def vec(i, w):
        return vecs[i:i + 1, 0:w]

    sa_bqkv = vec(V_SA_BQKV, 3 * HK)
    sa_bo, sa_g, sa_b = (vec(V_SA_BO, D_MODEL), vec(V_SA_G, D_MODEL),
                         vec(V_SA_B, D_MODEL))
    ea_bq = vec(V_EA_BQ, HK)
    ea_bkv = vec(V_EA_BKV, HK + HV)
    ea_bo, ea_g, ea_b = (vec(V_EA_BO, D_MODEL), vec(V_EA_G, D_MODEL),
                         vec(V_EA_B, D_MODEL))
    ff_b1 = vec(V_FF_B1, D_FF)
    ff_b2, ff_g, ff_b = (vec(V_FF_B2, D_MODEL), vec(V_FF_G, D_MODEL),
                         vec(V_FF_B, D_MODEL))

    # ------------------ masked self attention (fused QKV projection) ---------
    qkv = jnp.dot(x_dec, sa_wqkv, preferred_element_type=jnp.float32) + sa_bqkv
    out1, attn1 = _attention_core(
        qkv[:, 0:HK], qkv[:, HK:2 * HK], qkv[:, 2 * HK:3 * HK],
        sbias, sa_wo, sa_bo, sa_g, sa_b, x_dec, B, Sd, Sd)

    # ------------------ encoder-decoder cross attention (fused KV) -----------
    q2 = jnp.dot(out1, ea_wq, preferred_element_type=jnp.float32) + ea_bq
    kv2 = jnp.dot(x_enc, ea_wkv, preferred_element_type=jnp.float32) + ea_bkv
    out2, attn2 = _attention_core(
        q2, kv2[:, 0:HK], kv2[:, HK:HK + HV],
        ebias, ea_wo, ea_bo, ea_g, ea_b, out1, B, Sd, Se)

    # ------------------ position-wise FFN ------------------------------------
    h = jnp.dot(out2, ff_w1, preferred_element_type=jnp.float32) + ff_b1
    h = jnp.maximum(h, 0.0)
    y = jnp.dot(h, ff_w2, preferred_element_type=jnp.float32) + ff_b2 + out2
    dec_out = _layer_norm(y, ff_g, ff_b)

    # ------------------ single lane-dense packed store -----------------------
    out_w = D_MODEL + N_HEADS * Sd + N_HEADS * Se
    pad = out_ref.shape[1] - out_w
    parts = [dec_out, attn1, attn2]
    if pad > 0:
        parts.append(jnp.zeros((n_dec, pad), jnp.float32))
    out_ref[...] = jnp.concatenate(parts, axis=-1)


# =============================== wrapper =====================================
def _pack_params(params):
    """Pack every weight / bias / gamma / beta into one (P_ROWS, 128) slab."""
    scale = 1.0 / math.sqrt(D_K)
    sa, ea, ff = params["self_attn"], params["enc_attn"], params["ffn"]

    sa_wqkv = jnp.concatenate([sa["wq"] * scale, sa["wk"], sa["wv"]], axis=1)
    sa_bqkv = jnp.concatenate([sa["bq"] * scale, sa["bk"], sa["bv"]], axis=1)
    ea_wkv = jnp.concatenate([ea["wk"], ea["wv"]], axis=1)
    ea_bkv = jnp.concatenate([ea["bk"], ea["bv"]], axis=1)

    slab = jnp.zeros((P_ROWS, P_LANES), jnp.float32)

    def put_mat(s, row, m):
        r, c = m.shape
        return s.at[row:row + r, 0:c].set(m.astype(jnp.float32))

    def put_vec(s, idx, v):
        v = v.reshape(1, -1).astype(jnp.float32)
        return s.at[R_VEC + idx:R_VEC + idx + 1, 0:v.shape[1]].set(v)

    slab = put_mat(slab, R_SA_WQKV, sa_wqkv)
    slab = put_mat(slab, R_SA_WO, sa["wo"])
    slab = put_mat(slab, R_EA_WQ, ea["wq"] * scale)
    slab = put_mat(slab, R_EA_WKV, ea_wkv)
    slab = put_mat(slab, R_EA_WO, ea["wo"])
    slab = put_mat(slab, R_FF_W1, ff["w1"])
    slab = put_mat(slab, R_FF_W2, ff["w2"])
    slab = put_vec(slab, V_SA_BQKV, sa_bqkv)
    slab = put_vec(slab, V_SA_BO, sa["bo"])
    slab = put_vec(slab, V_SA_G, sa["gamma"])
    slab = put_vec(slab, V_SA_B, sa["beta"])
    slab = put_vec(slab, V_EA_BQ, ea["bq"] * scale)
    slab = put_vec(slab, V_EA_BKV, ea_bkv)
    slab = put_vec(slab, V_EA_BO, ea["bo"])
    slab = put_vec(slab, V_EA_G, ea["gamma"])
    slab = put_vec(slab, V_EA_B, ea["beta"])
    slab = put_vec(slab, V_FF_B1, ff["b1"])
    slab = put_vec(slab, V_FF_B2, ff["b2"])
    slab = put_vec(slab, V_FF_G, ff["gamma"])
    slab = put_vec(slab, V_FF_B, ff["beta"])
    return slab


def decoder_layer(dec_inputs, enc_outputs, dec_self_attn_mask, dec_enc_attn_mask,
                  params):
    B, Sd, D = dec_inputs.shape
    Se = enc_outputs.shape[1]
    assert D == D_MODEL

    p_slab = _pack_params(params)

    # Activations row-stacked into one slab (batch folded into sublanes).
    x_slab = jnp.concatenate(
        [dec_inputs.reshape(B * Sd, D).astype(jnp.float32),
         enc_outputs.reshape(B * Se, D).astype(jnp.float32)], axis=0)

    # Both masks as one pre-flattened additive-bias slab (1.0 == masked -> -1e9).
    neg = jnp.float32(-1e9)
    bias_slab = jnp.concatenate(
        [dec_self_attn_mask.astype(jnp.float32).reshape(B * Sd, Sd) * neg,
         dec_enc_attn_mask.astype(jnp.float32).reshape(B * Sd, Se) * neg],
        axis=-1)

    out_w = D_MODEL + N_HEADS * Sd + N_HEADS * Se
    out_pad = ((out_w + 127) // 128) * 128          # lane-dense output slab

    kernel = functools.partial(decoder_layer_kernel, B=B, Sd=Sd, Se=Se)
    out_slab = pl.pallas_call(
        kernel,
        out_shape=jax.ShapeDtypeStruct((B * Sd, out_pad), jnp.float32),
    )(x_slab, bias_slab, p_slab)

    dec_out = out_slab[:, 0:D_MODEL].reshape(B, Sd, D_MODEL)
    o1 = D_MODEL
    o2 = o1 + N_HEADS * Sd
    # attn_flat[b*Sq + i, h*Sk + j] == attn[b, h, i, j]
    dec_self_attn = out_slab[:, o1:o2].reshape(B, Sd, N_HEADS, Sd
                                               ).transpose(0, 2, 1, 3)
    dec_enc_attn = out_slab[:, o2:o2 + N_HEADS * Se].reshape(B, Sd, N_HEADS, Se
                                                             ).transpose(0, 2, 1, 3)
    return dec_out, dec_self_attn, dec_enc_attn


# ======================= deterministic parameter init ========================
def init_mha_params(key):
    ks = jax.random.split(key, 4)
    s = 0.1
    return {
        "wq": s * jax.random.normal(ks[0], (D_MODEL, N_HEADS * D_K), jnp.float32),
        "bq": jnp.zeros((1, N_HEADS * D_K), jnp.float32),
        "wk": s * jax.random.normal(ks[1], (D_MODEL, N_HEADS * D_K), jnp.float32),
        "bk": jnp.zeros((1, N_HEADS * D_K), jnp.float32),
        "wv": s * jax.random.normal(ks[2], (D_MODEL, N_HEADS * D_V), jnp.float32),
        "bv": jnp.zeros((1, N_HEADS * D_V), jnp.float32),
        "wo": s * jax.random.normal(ks[3], (N_HEADS * D_V, D_MODEL), jnp.float32),
        "bo": jnp.zeros((1, D_MODEL), jnp.float32),
        "gamma": jnp.ones((1, D_MODEL), jnp.float32),
        "beta": jnp.zeros((1, D_MODEL), jnp.float32),
    }


def init_ffn_params(key):
    ks = jax.random.split(key, 2)
    s = 0.1
    return {
        "w1": s * jax.random.normal(ks[0], (D_MODEL, D_FF), jnp.float32),
        "b1": jnp.zeros((1, D_FF), jnp.float32),
        "w2": s * jax.random.normal(ks[1], (D_FF, D_MODEL), jnp.float32),
        "b2": jnp.zeros((1, D_MODEL), jnp.float32),
        "gamma": jnp.ones((1, D_MODEL), jnp.float32),
        "beta": jnp.zeros((1, D_MODEL), jnp.float32),
    }


# ========================= pure-JAX reference (check) ========================
def ref_mha(q_in, kv_in, mask, p):
    B, Sq, D = q_in.shape
    Sk = kv_in.shape[1]
    q = (q_in @ p["wq"] + p["bq"]).reshape(B, Sq, N_HEADS, D_K).transpose(0, 2, 1, 3)
    k = (kv_in @ p["wk"] + p["bk"]).reshape(B, Sk, N_HEADS, D_K).transpose(0, 2, 1, 3)
    v = (kv_in @ p["wv"] + p["bv"]).reshape(B, Sk, N_HEADS, D_V).transpose(0, 2, 1, 3)
    scores = jnp.einsum("bhqd,bhkd->bhqk", q, k) / math.sqrt(D_K)
    scores = jnp.where(mask[:, None] > 0.0, -1e9, scores)
    attn = jax.nn.softmax(scores, axis=-1)
    ctx = jnp.einsum("bhqk,bhkd->bhqd", attn, v).transpose(0, 2, 1, 3)
    ctx = ctx.reshape(B, Sq, N_HEADS * D_V)
    y = ctx @ p["wo"] + p["bo"] + q_in
    mean = jnp.mean(y, -1, keepdims=True)
    var = jnp.mean((y - mean) ** 2, -1, keepdims=True)
    return ((y - mean) / jnp.sqrt(var + LN_EPS)) * p["gamma"] + p["beta"], attn


def ref_ffn(x, p):
    h = jnp.maximum(x @ p["w1"] + p["b1"], 0.0)
    y = h @ p["w2"] + p["b2"] + x
    mean = jnp.mean(y, -1, keepdims=True)
    var = jnp.mean((y - mean) ** 2, -1, keepdims=True)
    return ((y - mean) / jnp.sqrt(var + LN_EPS)) * p["gamma"] + p["beta"]


def ref_decoder_layer(dec_in, enc_out, m_self, m_enc, params):
    o, a1 = ref_mha(dec_in, dec_in, m_self, params["self_attn"])
    o, a2 = ref_mha(o, enc_out, m_enc, params["enc_attn"])
    return ref_ffn(o, params["ffn"]), a1, a2


# =================================== main ====================================
if __name__ == "__main__":
    B, S_DEC, S_ENC = 2, 8, 8
    key = jax.random.PRNGKey(0)
    k_dec, k_enc, k_p1, k_p2, k_p3 = jax.random.split(key, 5)

    dec_inputs = jax.random.normal(k_dec, (B, S_DEC, D_MODEL), jnp.float32)
    enc_outputs = jax.random.normal(k_enc, (B, S_ENC, D_MODEL), jnp.float32)

    # self-attention mask: causal (mask subsequent positions); enc mask: none.
    causal = jnp.triu(jnp.ones((S_DEC, S_DEC), jnp.float32), k=1)
    dec_self_attn_mask = jnp.broadcast_to(causal, (B, S_DEC, S_DEC))
    dec_enc_attn_mask = jnp.zeros((B, S_DEC, S_ENC), jnp.float32)

    params = {
        "self_attn": init_mha_params(k_p1),
        "enc_attn": init_mha_params(k_p2),
        "ffn": init_ffn_params(k_p3),
    }

    run = jax.jit(functools.partial(decoder_layer, params=params))
    dec_out, self_attn, enc_attn = run(dec_inputs, enc_outputs,
                                       dec_self_attn_mask, dec_enc_attn_mask)
    jax.block_until_ready((dec_out, self_attn, enc_attn))

    ref_out, ref_self, ref_enc = ref_decoder_layer(
        dec_inputs, enc_outputs, dec_self_attn_mask, dec_enc_attn_mask, params)

    np.testing.assert_allclose(np.asarray(dec_out), np.asarray(ref_out),
                               rtol=2e-3, atol=2e-3)
    np.testing.assert_allclose(np.asarray(self_attn), np.asarray(ref_self),
                               rtol=2e-3, atol=2e-3)
    np.testing.assert_allclose(np.asarray(enc_attn), np.asarray(ref_enc),
                               rtol=2e-3, atol=2e-3)

    print("KERNEL_OK")
</pallas_src>

<mosaic_0001>
module attributes {stable_mosaic.version = 11 : i64} {
  func.func @decoder_layer_kernel(%arg0: memref<32x32xf32, #tpu.memory_space<vmem>>, %arg1: memref<16x16xf32, #tpu.memory_space<vmem>>, %arg2: memref<272x128xf32, #tpu.memory_space<vmem>>, %arg3: memref<16x128xf32, #tpu.memory_space<vmem>>) attributes {dimension_semantics = [], scalar_prefetch = 0 : i64, scratch_operands = 0 : i64, tpu.core_type = #tpu.core_type<tc>} {
    %c0 = arith.constant 0 : index
    %c0_0 = arith.constant 0 : index
    %0 = vector.load %arg0[%c0, %c0_0] : memref<32x32xf32, #tpu.memory_space<vmem>>, vector<16x32xf32>
    %c16 = arith.constant 16 : index
    %c0_1 = arith.constant 0 : index
    %1 = vector.load %arg0[%c16, %c0_1] : memref<32x32xf32, #tpu.memory_space<vmem>>, vector<16x32xf32>
    %c0_2 = arith.constant 0 : index
    %c0_3 = arith.constant 0 : index
    %2 = vector.load %arg1[%c0_2, %c0_3] : memref<16x16xf32, #tpu.memory_space<vmem>>, vector<16x8xf32>
    %3 = vector.shape_cast %2 : vector<16x8xf32> to vector<2x8x8xf32>
    %c0_4 = arith.constant 0 : index
    %c8 = arith.constant 8 : index
    %4 = vector.load %arg1[%c0_4, %c8] : memref<16x16xf32, #tpu.memory_space<vmem>>, vector<16x8xf32>
    %5 = vector.shape_cast %4 : vector<16x8xf32> to vector<2x8x8xf32>
    %c0_5 = arith.constant 0 : index
    %c0_6 = arith.constant 0 : index
    %6 = vector.load %arg2[%c0_5, %c0_6] : memref<272x128xf32, #tpu.memory_space<vmem>>, vector<32x96xf32>
    %c32 = arith.constant 32 : index
    %c0_7 = arith.constant 0 : index
    %7 = vector.load %arg2[%c32, %c0_7] : memref<272x128xf32, #tpu.memory_space<vmem>>, vector<32x32xf32>
    %c64 = arith.constant 64 : index
    %c0_8 = arith.constant 0 : index
    %8 = vector.load %arg2[%c64, %c0_8] : memref<272x128xf32, #tpu.memory_space<vmem>>, vector<32x32xf32>
    %c96 = arith.constant 96 : index
    %c0_9 = arith.constant 0 : index
    %9 = vector.load %arg2[%c96, %c0_9] : memref<272x128xf32, #tpu.memory_space<vmem>>, vector<32x64xf32>
    %c128 = arith.constant 128 : index
    %c0_10 = arith.constant 0 : index
    %10 = vector.load %arg2[%c128, %c0_10] : memref<272x128xf32, #tpu.memory_space<vmem>>, vector<32x32xf32>
    %c160 = arith.constant 160 : index
    %c0_11 = arith.constant 0 : index
    %11 = vector.load %arg2[%c160, %c0_11] : memref<272x128xf32, #tpu.memory_space<vmem>>, vector<32x64xf32>
    %c192 = arith.constant 192 : index
    %c0_12 = arith.constant 0 : index
    %12 = vector.load %arg2[%c192, %c0_12] : memref<272x128xf32, #tpu.memory_space<vmem>>, vector<64x32xf32>
    %c256 = arith.constant 256 : index
    %c0_13 = arith.constant 0 : index
    %13 = vector.load %arg2[%c256, %c0_13] : memref<272x128xf32, #tpu.memory_space<vmem>>, vector<16x128xf32>
    %14 = vector.extract_strided_slice %13 {offsets = [0, 0], sizes = [1, 96], strides = [1, 1]} : vector<16x128xf32> to vector<1x96xf32>
    %15 = vector.extract_strided_slice %13 {offsets = [1, 0], sizes = [1, 32], strides = [1, 1]} : vector<16x128xf32> to vector<1x32xf32>
    %16 = vector.extract_strided_slice %13 {offsets = [2, 0], sizes = [1, 32], strides = [1, 1]} : vector<16x128xf32> to vector<1x32xf32>
    %17 = vector.extract_strided_slice %13 {offsets = [3, 0], sizes = [1, 32], strides = [1, 1]} : vector<16x128xf32> to vector<1x32xf32>
    %18 = vector.extract_strided_slice %13 {offsets = [4, 0], sizes = [1, 32], strides = [1, 1]} : vector<16x128xf32> to vector<1x32xf32>
    %19 = vector.extract_strided_slice %13 {offsets = [5, 0], sizes = [1, 64], strides = [1, 1]} : vector<16x128xf32> to vector<1x64xf32>
    %20 = vector.extract_strided_slice %13 {offsets = [6, 0], sizes = [1, 32], strides = [1, 1]} : vector<16x128xf32> to vector<1x32xf32>
    %21 = vector.extract_strided_slice %13 {offsets = [7, 0], sizes = [1, 32], strides = [1, 1]} : vector<16x128xf32> to vector<1x32xf32>
    %22 = vector.extract_strided_slice %13 {offsets = [8, 0], sizes = [1, 32], strides = [1, 1]} : vector<16x128xf32> to vector<1x32xf32>
    %23 = vector.extract_strided_slice %13 {offsets = [9, 0], sizes = [1, 64], strides = [1, 1]} : vector<16x128xf32> to vector<1x64xf32>
    %24 = vector.extract_strided_slice %13 {offsets = [10, 0], sizes = [1, 32], strides = [1, 1]} : vector<16x128xf32> to vector<1x32xf32>
    %25 = vector.extract_strided_slice %13 {offsets = [11, 0], sizes = [1, 32], strides = [1, 1]} : vector<16x128xf32> to vector<1x32xf32>
    %26 = vector.extract_strided_slice %13 {offsets = [12, 0], sizes = [1, 32], strides = [1, 1]} : vector<16x128xf32> to vector<1x32xf32>
    %cst = arith.constant dense<0.000000e+00> : vector<16x96xf32>
    %27 = tpu.matmul %0, %6, %cst {dimension_numbers = #tpu.dot_dimension_numbers<[1], [0], [0], [1], [0, 0, 1, 1], [], []>} : vector<16x32xf32>, vector<32x96xf32>, vector<16x96xf32> -> vector<16x96xf32>
    %28 = vector.broadcast %14 : vector<1x96xf32> to vector<16x96xf32>
    %29 = arith.addf %27, %28 : vector<16x96xf32>
    %30 = vector.extract_strided_slice %29 {offsets = [0, 0], sizes = [16, 32], strides = [1, 1]} : vector<16x96xf32> to vector<16x32xf32>
    %31 = vector.extract_strided_slice %29 {offsets = [0, 32], sizes = [16, 32], strides = [1, 1]} : vector<16x96xf32> to vector<16x32xf32>
    %32 = vector.extract_strided_slice %29 {offsets = [0, 64], sizes = [16, 32], strides = [1, 1]} : vector<16x96xf32> to vector<16x32xf32>
    %33 = vector.shape_cast %30 : vector<16x32xf32> to vector<2x8x32xf32>
    %34 = vector.shape_cast %31 : vector<16x32xf32> to vector<2x8x32xf32>
    %35 = vector.broadcast %15 : vector<1x32xf32> to vector<16x32xf32>
    %36 = arith.addf %0, %35 : vector<16x32xf32>
    %37 = vector.extract_strided_slice %33 {offsets = [0, 0, 0], sizes = [2, 8, 8], strides = [1, 1, 1]} : vector<2x8x32xf32> to vector<2x8x8xf32>
    %38 = vector.extract_strided_slice %34 {offsets = [0, 0, 0], sizes = [2, 8, 8], strides = [1, 1, 1]} : vector<2x8x32xf32> to vector<2x8x8xf32>
    "tpu.trace_start"() <{level = 10 : i32, message = "bqd,bkd->bqk"}> : () -> ()
    %cst_14 = arith.constant dense<0.000000e+00> : vector<2x8x8xf32>
    %39 = tpu.matmul %37, %38, %cst_14 {dimension_numbers = #tpu.dot_dimension_numbers<[2], [2], [1], [1], [0, 0, 0, 1, 1, 1], [0], [0]>} : vector<2x8x8xf32>, vector<2x8x8xf32>, vector<2x8x8xf32> -> vector<2x8x8xf32>
    "tpu.trace_stop"() : () -> ()
    %40 = arith.addf %39, %3 : vector<2x8x8xf32>
    %cst_15 = arith.constant dense<0xFF800000> : vector<2x8xf32>
    %41 = vector.multi_reduction <maximumf>, %40, %cst_15 [2] : vector<2x8x8xf32> to vector<2x8xf32>
    %42 = vector.shape_cast %41 : vector<2x8xf32> to vector<2x8x1xf32>
    %43 = vector.broadcast %42 : vector<2x8x1xf32> to vector<2x8x8xf32>
    %44 = arith.subf %40, %43 : vector<2x8x8xf32>
    %45 = math.exp %44 : vector<2x8x8xf32>
    %cst_16 = arith.constant dense<0.000000e+00> : vector<2x8xf32>
    %46 = vector.multi_reduction <add>, %45, %cst_16 [2] : vector<2x8x8xf32> to vector<2x8xf32>
    %47 = vector.shape_cast %46 : vector<2x8xf32> to vector<2x8x1xf32>
    %48 = tpu.reciprocal %47 {approx = true} : vector<2x8x1xf32> -> vector<2x8x1xf32>
    %49 = vector.broadcast %48 : vector<2x8x1xf32> to vector<2x8x8xf32>
    %50 = arith.mulf %45, %49 : vector<2x8x8xf32>
    %51 = vector.shape_cast %50 : vector<2x8x8xf32> to vector<16x8xf32>
    %52 = vector.extract_strided_slice %32 {offsets = [0, 0], sizes = [16, 8], strides = [1, 1]} : vector<16x32xf32> to vector<16x8xf32>
    %53 = vector.extract_strided_slice %7 {offsets = [0, 0], sizes = [8, 32], strides = [1, 1]} : vector<32x32xf32> to vector<8x32xf32>
    %cst_17 = arith.constant dense<0.000000e+00> : vector<16x32xf32>
    %54 = tpu.matmul %52, %53, %cst_17 {dimension_numbers = #tpu.dot_dimension_numbers<[1], [0], [0], [1], [0, 0, 1, 1], [], []>} : vector<16x8xf32>, vector<8x32xf32>, vector<16x32xf32> -> vector<16x32xf32>
    %55 = vector.shape_cast %54 : vector<16x32xf32> to vector<2x8x32xf32>
    "tpu.trace_start"() <{level = 10 : i32, message = "bqk,bkd->bqd"}> : () -> ()
    %cst_18 = arith.constant dense<0.000000e+00> : vector<2x8x32xf32>
    %56 = tpu.matmul %50, %55, %cst_18 {dimension_numbers = #tpu.dot_dimension_numbers<[2], [1], [1], [2], [0, 0, 0, 1, 1, 2], [0], [0]>} : vector<2x8x8xf32>, vector<2x8x32xf32>, vector<2x8x32xf32> -> vector<2x8x32xf32>
    "tpu.trace_stop"() : () -> ()
    %57 = vector.shape_cast %56 : vector<2x8x32xf32> to vector<16x32xf32>
    %58 = arith.addf %36, %57 : vector<16x32xf32>
    %59 = vector.extract_strided_slice %33 {offsets = [0, 0, 8], sizes = [2, 8, 8], strides = [1, 1, 1]} : vector<2x8x32xf32> to vector<2x8x8xf32>
    %60 = vector.extract_strided_slice %34 {offsets = [0, 0, 8], sizes = [2, 8, 8], strides = [1, 1, 1]} : vector<2x8x32xf32> to vector<2x8x8xf32>
    "tpu.trace_start"() <{level = 10 : i32, message = "bqd,bkd->bqk"}> : () -> ()
    %cst_19 = arith.constant dense<0.000000e+00> : vector<2x8x8xf32>
    %61 = tpu.matmul %59, %60, %cst_19 {dimension_numbers = #tpu.dot_dimension_numbers<[2], [2], [1], [1], [0, 0, 0, 1, 1, 1], [0], [0]>} : vector<2x8x8xf32>, vector<2x8x8xf32>, vector<2x8x8xf32> -> vector<2x8x8xf32>
    "tpu.trace_stop"() : () -> ()
    %62 = arith.addf %61, %3 : vector<2x8x8xf32>
    %cst_20 = arith.constant dense<0xFF800000> : vector<2x8xf32>
    %63 = vector.multi_reduction <maximumf>, %62, %cst_20 [2] : vector<2x8x8xf32> to vector<2x8xf32>
    %64 = vector.shape_cast %63 : vector<2x8xf32> to vector<2x8x1xf32>
    %65 = vector.broadcast %64 : vector<2x8x1xf32> to vector<2x8x8xf32>
    %66 = arith.subf %62, %65 : vector<2x8x8xf32>
    %67 = math.exp %66 : vector<2x8x8xf32>
    %cst_21 = arith.constant dense<0.000000e+00> : vector<2x8xf32>
    %68 = vector.multi_reduction <add>, %67, %cst_21 [2] : vector<2x8x8xf32> to vector<2x8xf32>
    %69 = vector.shape_cast %68 : vector<2x8xf32> to vector<2x8x1xf32>
    %70 = tpu.reciprocal %69 {approx = true} : vector<2x8x1xf32> -> vector<2x8x1xf32>
    %71 = vector.broadcast %70 : vector<2x8x1xf32> to vector<2x8x8xf32>
    %72 = arith.mulf %67, %71 : vector<2x8x8xf32>
    %73 = vector.shape_cast %72 : vector<2x8x8xf32> to vector<16x8xf32>
    %74 = vector.extract_strided_slice %32 {offsets = [0, 8], sizes = [16, 8], strides = [1, 1]} : vector<16x32xf32> to vector<16x8xf32>
    %75 = vector.extract_strided_slice %7 {offsets = [8, 0], sizes = [8, 32], strides = [1, 1]} : vector<32x32xf32> to vector<8x32xf32>
    %cst_22 = arith.constant dense<0.000000e+00> : vector<16x32xf32>
    %76 = tpu.matmul %74, %75, %cst_22 {dimension_numbers = #tpu.dot_dimension_numbers<[1], [0], [0], [1], [0, 0, 1, 1], [], []>} : vector<16x8xf32>, vector<8x32xf32>, vector<16x32xf32> -> vector<16x32xf32>
    %77 = vector.shape_cast %76 : vector<16x32xf32> to vector<2x8x32xf32>
    "tpu.trace_start"() <{level = 10 : i32, message = "bqk,bkd->bqd"}> : () -> ()
    %cst_23 = arith.constant dense<0.000000e+00> : vector<2x8x32xf32>
    %78 = tpu.matmul %72, %77, %cst_23 {dimension_numbers = #tpu.dot_dimension_numbers<[2], [1], [1], [2], [0, 0, 0, 1, 1, 2], [0], [0]>} : vector<2x8x8xf32>, vector<2x8x32xf32>, vector<2x8x32xf32> -> vector<2x8x32xf32>
    "tpu.trace_stop"() : () -> ()
    %79 = vector.shape_cast %78 : vector<2x8x32xf32> to vector<16x32xf32>
    %80 = arith.addf %58, %79 : vector<16x32xf32>
    %81 = vector.extract_strided_slice %33 {offsets = [0, 0, 16], sizes = [2, 8, 8], strides = [1, 1, 1]} : vector<2x8x32xf32> to vector<2x8x8xf32>
    %82 = vector.extract_strided_slice %34 {offsets = [0, 0, 16], sizes = [2, 8, 8], strides = [1, 1, 1]} : vector<2x8x32xf32> to vector<2x8x8xf32>
    "tpu.trace_start"() <{level = 10 : i32, message = "bqd,bkd->bqk"}> : () -> ()
    %cst_24 = arith.constant dense<0.000000e+00> : vector<2x8x8xf32>
    %83 = tpu.matmul %81, %82, %cst_24 {dimension_numbers = #tpu.dot_dimension_numbers<[2], [2], [1], [1], [0, 0, 0, 1, 1, 1], [0], [0]>} : vector<2x8x8xf32>, vector<2x8x8xf32>, vector<2x8x8xf32> -> vector<2x8x8xf32>
    "tpu.trace_stop"() : () -> ()
    %84 = arith.addf %83, %3 : vector<2x8x8xf32>
    %cst_25 = arith.constant dense<0xFF800000> : vector<2x8xf32>
    %85 = vector.multi_reduction <maximumf>, %84, %cst_25 [2] : vector<2x8x8xf32> to vector<2x8xf32>
    %86 = vector.shape_cast %85 : vector<2x8xf32> to vector<2x8x1xf32>
    %87 = vector.broadcast %86 : vector<2x8x1xf32> to vector<2x8x8xf32>
    %88 = arith.subf %84, %87 : vector<2x8x8xf32>
    %89 = math.exp %88 : vector<2x8x8xf32>
    %cst_26 = arith.constant dense<0.000000e+00> : vector<2x8xf32>
    %90 = vector.multi_reduction <add>, %89, %cst_26 [2] : vector<2x8x8xf32> to vector<2x8xf32>
    %91 = vector.shape_cast %90 : vector<2x8xf32> to vector<2x8x1xf32>
    %92 = tpu.reciprocal %91 {approx = true} : vector<2x8x1xf32> -> vector<2x8x1xf32>
    %93 = vector.broadcast %92 : vector<2x8x1xf32> to vector<2x8x8xf32>
    %94 = arith.mulf %89, %93 : vector<2x8x8xf32>
    %95 = vector.shape_cast %94 : vector<2x8x8xf32> to vector<16x8xf32>
    %96 = vector.extract_strided_slice %32 {offsets = [0, 16], sizes = [16, 8], strides = [1, 1]} : vector<16x32xf32> to vector<16x8xf32>
    %97 = vector.extract_strided_slice %7 {offsets = [16, 0], sizes = [8, 32], strides = [1, 1]} : vector<32x32xf32> to vector<8x32xf32>
    %cst_27 = arith.constant dense<0.000000e+00> : vector<16x32xf32>
    %98 = tpu.matmul %96, %97, %cst_27 {dimension_numbers = #tpu.dot_dimension_numbers<[1], [0], [0], [1], [0, 0, 1, 1], [], []>} : vector<16x8xf32>, vector<8x32xf32>, vector<16x32xf32> -> vector<16x32xf32>
    %99 = vector.shape_cast %98 : vector<16x32xf32> to vector<2x8x32xf32>
    "tpu.trace_start"() <{level = 10 : i32, message = "bqk,bkd->bqd"}> : () -> ()
    %cst_28 = arith.constant dense<0.000000e+00> : vector<2x8x32xf32>
    %100 = tpu.matmul %94, %99, %cst_28 {dimension_numbers = #tpu.dot_dimension_numbers<[2], [1], [1], [2], [0, 0, 0, 1, 1, 2], [0], [0]>} : vector<2x8x8xf32>, vector<2x8x32xf32>, vector<2x8x32xf32> -> vector<2x8x32xf32>
    "tpu.trace_stop"() : () -> ()
    %101 = vector.shape_cast %100 : vector<2x8x32xf32> to vector<16x32xf32>
    %102 = arith.addf %80, %101 : vector<16x32xf32>
    %103 = vector.extract_strided_slice %33 {offsets = [0, 0, 24], sizes = [2, 8, 8], strides = [1, 1, 1]} : vector<2x8x32xf32> to vector<2x8x8xf32>
    %104 = vector.extract_strided_slice %34 {offsets = [0, 0, 24], sizes = [2, 8, 8], strides = [1, 1, 1]} : vector<2x8x32xf32> to vector<2x8x8xf32>
    "tpu.trace_start"() <{level = 10 : i32, message = "bqd,bkd->bqk"}> : () -> ()
    %cst_29 = arith.constant dense<0.000000e+00> : vector<2x8x8xf32>
    %105 = tpu.matmul %103, %104, %cst_29 {dimension_numbers = #tpu.dot_dimension_numbers<[2], [2], [1], [1], [0, 0, 0, 1, 1, 1], [0], [0]>} : vector<2x8x8xf32>, vector<2x8x8xf32>, vector<2x8x8xf32> -> vector<2x8x8xf32>
    "tpu.trace_stop"() : () -> ()
    %106 = arith.addf %105, %3 : vector<2x8x8xf32>
    %cst_30 = arith.constant dense<0xFF800000> : vector<2x8xf32>
    %107 = vector.multi_reduction <maximumf>, %106, %cst_30 [2] : vector<2x8x8xf32> to vector<2x8xf32>
    %108 = vector.shape_cast %107 : vector<2x8xf32> to vector<2x8x1xf32>
    %109 = vector.broadcast %108 : vector<2x8x1xf32> to vector<2x8x8xf32>
    %110 = arith.subf %106, %109 : vector<2x8x8xf32>
    %111 = math.exp %110 : vector<2x8x8xf32>
    %cst_31 = arith.constant dense<0.000000e+00> : vector<2x8xf32>
    %112 = vector.multi_reduction <add>, %111, %cst_31 [2] : vector<2x8x8xf32> to vector<2x8xf32>
    %113 = vector.shape_cast %112 : vector<2x8xf32> to vector<2x8x1xf32>
    %114 = tpu.reciprocal %113 {approx = true} : vector<2x8x1xf32> -> vector<2x8x1xf32>
    %115 = vector.broadcast %114 : vector<2x8x1xf32> to vector<2x8x8xf32>
    %116 = arith.mulf %111, %115 : vector<2x8x8xf32>
    %117 = vector.shape_cast %116 : vector<2x8x8xf32> to vector<16x8xf32>
    %118 = vector.extract_strided_slice %32 {offsets = [0, 24], sizes = [16, 8], strides = [1, 1]} : vector<16x32xf32> to vector<16x8xf32>
    %119 = vector.extract_strided_slice %7 {offsets = [24, 0], sizes = [8, 32], strides = [1, 1]} : vector<32x32xf32> to vector<8x32xf32>
    %cst_32 = arith.constant dense<0.000000e+00> : vector<16x32xf32>
    %120 = tpu.matmul %118, %119, %cst_32 {dimension_numbers = #tpu.dot_dimension_numbers<[1], [0], [0], [1], [0, 0, 1, 1], [], []>} : vector<16x8xf32>, vector<8x32xf32>, vector<16x32xf32> -> vector<16x32xf32>
    %121 = vector.shape_cast %120 : vector<16x32xf32> to vector<2x8x32xf32>
    "tpu.trace_start"() <{level = 10 : i32, message = "bqk,bkd->bqd"}> : () -> ()
    %cst_33 = arith.constant dense<0.000000e+00> : vector<2x8x32xf32>
    %122 = tpu.matmul %116, %121, %cst_33 {dimension_numbers = #tpu.dot_dimension_numbers<[2], [1], [1], [2], [0, 0, 0, 1, 1, 2], [0], [0]>} : vector<2x8x8xf32>, vector<2x8x32xf32>, vector<2x8x32xf32> -> vector<2x8x32xf32>
    "tpu.trace_stop"() : () -> ()
    %123 = vector.shape_cast %122 : vector<2x8x32xf32> to vector<16x32xf32>
    %124 = arith.addf %102, %123 : vector<16x32xf32>
    %125 = tpu.concatenate %51, %73, %95, %117 in 1 : vector<16x8xf32>, vector<16x8xf32>, vector<16x8xf32>, vector<16x8xf32> -> vector<16x32xf32>
    %cst_34 = arith.constant dense<0.000000e+00> : vector<16xf32>
    %126 = vector.multi_reduction <add>, %124, %cst_34 [1] : vector<16x32xf32> to vector<16xf32>
    %127 = vector.shape_cast %126 : vector<16xf32> to vector<16x1xf32>
    %cst_35 = arith.constant 3.200000e+01 : f32
    %128 = vector.broadcast %cst_35 : f32 to vector<16x1xf32>
    %129 = arith.divf %127, %128 : vector<16x1xf32>
    %130 = arith.mulf %124, %124 : vector<16x32xf32>
    %cst_36 = arith.constant dense<0.000000e+00> : vector<16xf32>
    %131 = vector.multi_reduction <add>, %130, %cst_36 [1] : vector<16x32xf32> to vector<16xf32>
    %132 = vector.shape_cast %131 : vector<16xf32> to vector<16x1xf32>
    %cst_37 = arith.constant 3.200000e+01 : f32
    %133 = vector.broadcast %cst_37 : f32 to vector<16x1xf32>
    %134 = arith.divf %132, %133 : vector<16x1xf32>
    %135 = arith.mulf %129, %129 : vector<16x1xf32>
    %136 = arith.subf %134, %135 : vector<16x1xf32>
    %137 = vector.broadcast %129 : vector<16x1xf32> to vector<16x32xf32>
    %138 = arith.subf %124, %137 : vector<16x32xf32>
    %cst_38 = arith.constant 9.99999974E-6 : f32
    %139 = vector.broadcast %cst_38 : f32 to vector<16x1xf32>
    %140 = arith.addf %136, %139 : vector<16x1xf32>
    %141 = math.rsqrt %140 : vector<16x1xf32>
    %142 = vector.broadcast %141 : vector<16x1xf32> to vector<16x32xf32>
    %143 = arith.mulf %138, %142 : vector<16x32xf32>
    %144 = vector.broadcast %16 : vector<1x32xf32> to vector<16x32xf32>
    %145 = arith.mulf %143, %144 : vector<16x32xf32>
    %146 = vector.broadcast %17 : vector<1x32xf32> to vector<16x32xf32>
    %147 = arith.addf %145, %146 : vector<16x32xf32>
    %cst_39 = arith.constant dense<0.000000e+00> : vector<16x32xf32>
    %148 = tpu.matmul %147, %8, %cst_39 {dimension_numbers = #tpu.dot_dimension_numbers<[1], [0], [0], [1], [0, 0, 1, 1], [], []>} : vector<16x32xf32>, vector<32x32xf32>, vector<16x32xf32> -> vector<16x32xf32>
    %149 = vector.broadcast %18 : vector<1x32xf32> to vector<16x32xf32>
    %150 = arith.addf %148, %149 : vector<16x32xf32>
    %cst_40 = arith.constant dense<0.000000e+00> : vector<16x64xf32>
    %151 = tpu.matmul %1, %9, %cst_40 {dimension_numbers = #tpu.dot_dimension_numbers<[1], [0], [0], [1], [0, 0, 1, 1], [], []>} : vector<16x32xf32>, vector<32x64xf32>, vector<16x64xf32> -> vector<16x64xf32>
    %152 = vector.broadcast %19 : vector<1x64xf32> to vector<16x64xf32>
    %153 = arith.addf %151, %152 : vector<16x64xf32>
    %154 = vector.extract_strided_slice %153 {offsets = [0, 0], sizes = [16, 32], strides = [1, 1]} : vector<16x64xf32> to vector<16x32xf32>
    %155 = vector.extract_strided_slice %153 {offsets = [0, 32], sizes = [16, 32], strides = [1, 1]} : vector<16x64xf32> to vector<16x32xf32>
    %156 = vector.shape_cast %150 : vector<16x32xf32> to vector<2x8x32xf32>
    %157 = vector.shape_cast %154 : vector<16x32xf32> to vector<2x8x32xf32>
    %158 = vector.broadcast %20 : vector<1x32xf32> to vector<16x32xf32>
    %159 = arith.addf %147, %158 : vector<16x32xf32>
    %160 = vector.extract_strided_slice %156 {offsets = [0, 0, 0], sizes = [2, 8, 8], strides = [1, 1, 1]} : vector<2x8x32xf32> to vector<2x8x8xf32>
    %161 = vector.extract_strided_slice %157 {offsets = [0, 0, 0], sizes = [2, 8, 8], strides = [1, 1, 1]} : vector<2x8x32xf32> to vector<2x8x8xf32>
    "tpu.trace_start"() <{level = 10 : i32, message = "bqd,bkd->bqk"}> : () -> ()
    %cst_41 = arith.constant dense<0.000000e+00> : vector<2x8x8xf32>
    %162 = tpu.matmul %160, %161, %cst_41 {dimension_numbers = #tpu.dot_dimension_numbers<[2], [2], [1], [1], [0, 0, 0, 1, 1, 1], [0], [0]>} : vector<2x8x8xf32>, vector<2x8x8xf32>, vector<2x8x8xf32> -> vector<2x8x8xf32>
    "tpu.trace_stop"() : () -> ()
    %163 = arith.addf %162, %5 : vector<2x8x8xf32>
    %cst_42 = arith.constant dense<0xFF800000> : vector<2x8xf32>
    %164 = vector.multi_reduction <maximumf>, %163, %cst_42 [2] : vector<2x8x8xf32> to vector<2x8xf32>
    %165 = vector.shape_cast %164 : vector<2x8xf32> to vector<2x8x1xf32>
    %166 = vector.broadcast %165 : vector<2x8x1xf32> to vector<2x8x8xf32>
    %167 = arith.subf %163, %166 : vector<2x8x8xf32>
    %168 = math.exp %167 : vector<2x8x8xf32>
    %cst_43 = arith.constant dense<0.000000e+00> : vector<2x8xf32>
    %169 = vector.multi_reduction <add>, %168, %cst_43 [2] : vector<2x8x8xf32> to vector<2x8xf32>
    %170 = vector.shape_cast %169 : vector<2x8xf32> to vector<2x8x1xf32>
    %171 = tpu.reciprocal %170 {approx = true} : vector<2x8x1xf32> -> vector<2x8x1xf32>
    %172 = vector.broadcast %171 : vector<2x8x1xf32> to vector<2x8x8xf32>
    %173 = arith.mulf %168, %172 : vector<2x8x8xf32>
    %174 = vector.shape_cast %173 : vector<2x8x8xf32> to vector<16x8xf32>
    %175 = vector.extract_strided_slice %155 {offsets = [0, 0], sizes = [16, 8], strides = [1, 1]} : vector<16x32xf32> to vector<16x8xf32>
    %176 = vector.extract_strided_slice %10 {offsets = [0, 0], sizes = [8, 32], strides = [1, 1]} : vector<32x32xf32> to vector<8x32xf32>
    %cst_44 = arith.constant dense<0.000000e+00> : vector<16x32xf32>
    %177 = tpu.matmul %175, %176, %cst_44 {dimension_numbers = #tpu.dot_dimension_numbers<[1], [0], [0], [1], [0, 0, 1, 1], [], []>} : vector<16x8xf32>, vector<8x32xf32>, vector<16x32xf32> -> vector<16x32xf32>
    %178 = vector.shape_cast %177 : vector<16x32xf32> to vector<2x8x32xf32>
    "tpu.trace_start"() <{level = 10 : i32, message = "bqk,bkd->bqd"}> : () -> ()
    %cst_45 = arith.constant dense<0.000000e+00> : vector<2x8x32xf32>
    %179 = tpu.matmul %173, %178, %cst_45 {dimension_numbers = #tpu.dot_dimension_numbers<[2], [1], [1], [2], [0, 0, 0, 1, 1, 2], [0], [0]>} : vector<2x8x8xf32>, vector<2x8x32xf32>, vector<2x8x32xf32> -> vector<2x8x32xf32>
    "tpu.trace_stop"() : () -> ()
    %180 = vector.shape_cast %179 : vector<2x8x32xf32> to vector<16x32xf32>
    %181 = arith.addf %159, %180 : vector<16x32xf32>
    %182 = vector.extract_strided_slice %156 {offsets = [0, 0, 8], sizes = [2, 8, 8], strides = [1, 1, 1]} : vector<2x8x32xf32> to vector<2x8x8xf32>
    %183 = vector.extract_strided_slice %157 {offsets = [0, 0, 8], sizes = [2, 8, 8], strides = [1, 1, 1]} : vector<2x8x32xf32> to vector<2x8x8xf32>
    "tpu.trace_start"() <{level = 10 : i32, message = "bqd,bkd->bqk"}> : () -> ()
    %cst_46 = arith.constant dense<0.000000e+00> : vector<2x8x8xf32>
    %184 = tpu.matmul %182, %183, %cst_46 {dimension_numbers = #tpu.dot_dimension_numbers<[2], [2], [1], [1], [0, 0, 0, 1, 1, 1], [0], [0]>} : vector<2x8x8xf32>, vector<2x8x8xf32>, vector<2x8x8xf32> -> vector<2x8x8xf32>
    "tpu.trace_stop"() : () -> ()
    %185 = arith.addf %184, %5 : vector<2x8x8xf32>
    %cst_47 = arith.constant dense<0xFF800000> : vector<2x8xf32>
    %186 = vector.multi_reduction <maximumf>, %185, %cst_47 [2] : vector<2x8x8xf32> to vector<2x8xf32>
    %187 = vector.shape_cast %186 : vector<2x8xf32> to vector<2x8x1xf32>
    %188 = vector.broadcast %187 : vector<2x8x1xf32> to vector<2x8x8xf32>
    %189 = arith.subf %185, %188 : vector<2x8x8xf32>
    %190 = math.exp %189 : vector<2x8x8xf32>
    %cst_48 = arith.constant dense<0.000000e+00> : vector<2x8xf32>
    %191 = vector.multi_reduction <add>, %190, %cst_48 [2] : vector<2x8x8xf32> to vector<2x8xf32>
    %192 = vector.shape_cast %191 : vector<2x8xf32> to vector<2x8x1xf32>
    %193 = tpu.reciprocal %192 {approx = true} : vector<2x8x1xf32> -> vector<2x8x1xf32>
    %194 = vector.broadcast %193 : vector<2x8x1xf32> to vector<2x8x8xf32>
    %195 = arith.mulf %190, %194 : vector<2x8x8xf32>
    %196 = vector.shape_cast %195 : vector<2x8x8xf32> to vector<16x8xf32>
    %197 = vector.extract_strided_slice %155 {offsets = [0, 8], sizes = [16, 8], strides = [1, 1]} : vector<16x32xf32> to vector<16x8xf32>
    %198 = vector.extract_strided_slice %10 {offsets = [8, 0], sizes = [8, 32], strides = [1, 1]} : vector<32x32xf32> to vector<8x32xf32>
    %cst_49 = arith.constant dense<0.000000e+00> : vector<16x32xf32>
    %199 = tpu.matmul %197, %198, %cst_49 {dimension_numbers = #tpu.dot_dimension_numbers<[1], [0], [0], [1], [0, 0, 1, 1], [], []>} : vector<16x8xf32>, vector<8x32xf32>, vector<16x32xf32> -> vector<16x32xf32>
    %200 = vector.shape_cast %199 : vector<16x32xf32> to vector<2x8x32xf32>
    "tpu.trace_start"() <{level = 10 : i32, message = "bqk,bkd->bqd"}> : () -> ()
    %cst_50 = arith.constant dense<0.000000e+00> : vector<2x8x32xf32>
    %201 = tpu.matmul %195, %200, %cst_50 {dimension_numbers = #tpu.dot_dimension_numbers<[2], [1], [1], [2], [0, 0, 0, 1, 1, 2], [0], [0]>} : vector<2x8x8xf32>, vector<2x8x32xf32>, vector<2x8x32xf32> -> vector<2x8x32xf32>
    "tpu.trace_stop"() : () -> ()
    %202 = vector.shape_cast %201 : vector<2x8x32xf32> to vector<16x32xf32>
    %203 = arith.addf %181, %202 : vector<16x32xf32>
    %204 = vector.extract_strided_slice %156 {offsets = [0, 0, 16], sizes = [2, 8, 8], strides = [1, 1, 1]} : vector<2x8x32xf32> to vector<2x8x8xf32>
    %205 = vector.extract_strided_slice %157 {offsets = [0, 0, 16], sizes = [2, 8, 8], strides = [1, 1, 1]} : vector<2x8x32xf32> to vector<2x8x8xf32>
    "tpu.trace_start"() <{level = 10 : i32, message = "bqd,bkd->bqk"}> : () -> ()
    %cst_51 = arith.constant dense<0.000000e+00> : vector<2x8x8xf32>
    %206 = tpu.matmul %204, %205, %cst_51 {dimension_numbers = #tpu.dot_dimension_numbers<[2], [2], [1], [1], [0, 0, 0, 1, 1, 1], [0], [0]>} : vector<2x8x8xf32>, vector<2x8x8xf32>, vector<2x8x8xf32> -> vector<2x8x8xf32>
    "tpu.trace_stop"() : () -> ()
    %207 = arith.addf %206, %5 : vector<2x8x8xf32>
    %cst_52 = arith.constant dense<0xFF800000> : vector<2x8xf32>
    %208 = vector.multi_reduction <maximumf>, %207, %cst_52 [2] : vector<2x8x8xf32> to vector<2x8xf32>
    %209 = vector.shape_cast %208 : vector<2x8xf32> to vector<2x8x1xf32>
    %210 = vector.broadcast %209 : vector<2x8x1xf32> to vector<2x8x8xf32>
    %211 = arith.subf %207, %210 : vector<2x8x8xf32>
    %212 = math.exp %211 : vector<2x8x8xf32>
    %cst_53 = arith.constant dense<0.000000e+00> : vector<2x8xf32>
    %213 = vector.multi_reduction <add>, %212, %cst_53 [2] : vector<2x8x8xf32> to vector<2x8xf32>
    %214 = vector.shape_cast %213 : vector<2x8xf32> to vector<2x8x1xf32>
    %215 = tpu.reciprocal %214 {approx = true} : vector<2x8x1xf32> -> vector<2x8x1xf32>
    %216 = vector.broadcast %215 : vector<2x8x1xf32> to vector<2x8x8xf32>
    %217 = arith.mulf %212, %216 : vector<2x8x8xf32>
    %218 = vector.shape_cast %217 : vector<2x8x8xf32> to vector<16x8xf32>
    %219 = vector.extract_strided_slice %155 {offsets = [0, 16], sizes = [16, 8], strides = [1, 1]} : vector<16x32xf32> to vector<16x8xf32>
    %220 = vector.extract_strided_slice %10 {offsets = [16, 0], sizes = [8, 32], strides = [1, 1]} : vector<32x32xf32> to vector<8x32xf32>
    %cst_54 = arith.constant dense<0.000000e+00> : vector<16x32xf32>
    %221 = tpu.matmul %219, %220, %cst_54 {dimension_numbers = #tpu.dot_dimension_numbers<[1], [0], [0], [1], [0, 0, 1, 1], [], []>} : vector<16x8xf32>, vector<8x32xf32>, vector<16x32xf32> -> vector<16x32xf32>
    %222 = vector.shape_cast %221 : vector<16x32xf32> to vector<2x8x32xf32>
    "tpu.trace_start"() <{level = 10 : i32, message = "bqk,bkd->bqd"}> : () -> ()
    %cst_55 = arith.constant dense<0.000000e+00> : vector<2x8x32xf32>
    %223 = tpu.matmul %217, %222, %cst_55 {dimension_numbers = #tpu.dot_dimension_numbers<[2], [1], [1], [2], [0, 0, 0, 1, 1, 2], [0], [0]>} : vector<2x8x8xf32>, vector<2x8x32xf32>, vector<2x8x32xf32> -> vector<2x8x32xf32>
    "tpu.trace_stop"() : () -> ()
    %224 = vector.shape_cast %223 : vector<2x8x32xf32> to vector<16x32xf32>
    %225 = arith.addf %203, %224 : vector<16x32xf32>
    %226 = vector.extract_strided_slice %156 {offsets = [0, 0, 24], sizes = [2, 8, 8], strides = [1, 1, 1]} : vector<2x8x32xf32> to vector<2x8x8xf32>
    %227 = vector.extract_strided_slice %157 {offsets = [0, 0, 24], sizes = [2, 8, 8], strides = [1, 1, 1]} : vector<2x8x32xf32> to vector<2x8x8xf32>
    "tpu.trace_start"() <{level = 10 : i32, message = "bqd,bkd->bqk"}> : () -> ()
    %cst_56 = arith.constant dense<0.000000e+00> : vector<2x8x8xf32>
    %228 = tpu.matmul %226, %227, %cst_56 {dimension_numbers = #tpu.dot_dimension_numbers<[2], [2], [1], [1], [0, 0, 0, 1, 1, 1], [0], [0]>} : vector<2x8x8xf32>, vector<2x8x8xf32>, vector<2x8x8xf32> -> vector<2x8x8xf32>
    "tpu.trace_stop"() : () -> ()
    %229 = arith.addf %228, %5 : vector<2x8x8xf32>
    %cst_57 = arith.constant dense<0xFF800000> : vector<2x8xf32>
    %230 = vector.multi_reduction <maximumf>, %229, %cst_57 [2] : vector<2x8x8xf32> to vector<2x8xf32>
    %231 = vector.shape_cast %230 : vector<2x8xf32> to vector<2x8x1xf32>
    %232 = vector.broadcast %231 : vector<2x8x1xf32> to vector<2x8x8xf32>
    %233 = arith.subf %229, %232 : vector<2x8x8xf32>
    %234 = math.exp %233 : vector<2x8x8xf32>
    %cst_58 = arith.constant dense<0.000000e+00> : vector<2x8xf32>
    %235 = vector.multi_reduction <add>, %234, %cst_58 [2] : vector<2x8x8xf32> to vector<2x8xf32>
    %236 = vector.shape_cast %235 : vector<2x8xf32> to vector<2x8x1xf32>
    %237 = tpu.reciprocal %236 {approx = true} : vector<2x8x1xf32> -> vector<2x8x1xf32>
    %238 = vector.broadcast %237 : vector<2x8x1xf32> to vector<2x8x8xf32>
    %239 = arith.mulf %234, %238 : vector<2x8x8xf32>
    %240 = vector.shape_cast %239 : vector<2x8x8xf32> to vector<16x8xf32>
    %241 = vector.extract_strided_slice %155 {offsets = [0, 24], sizes = [16, 8], strides = [1, 1]} : vector<16x32xf32> to vector<16x8xf32>
    %242 = vector.extract_strided_slice %10 {offsets = [24, 0], sizes = [8, 32], strides = [1, 1]} : vector<32x32xf32> to vector<8x32xf32>
    %cst_59 = arith.constant dense<0.000000e+00> : vector<16x32xf32>
    %243 = tpu.matmul %241, %242, %cst_59 {dimension_numbers = #tpu.dot_dimension_numbers<[1], [0], [0], [1], [0, 0, 1, 1], [], []>} : vector<16x8xf32>, vector<8x32xf32>, vector<16x32xf32> -> vector<16x32xf32>
    %244 = vector.shape_cast %243 : vector<16x32xf32> to vector<2x8x32xf32>
    "tpu.trace_start"() <{level = 10 : i32, message = "bqk,bkd->bqd"}> : () -> ()
    %cst_60 = arith.constant dense<0.000000e+00> : vector<2x8x32xf32>
    %245 = tpu.matmul %239, %244, %cst_60 {dimension_numbers = #tpu.dot_dimension_numbers<[2], [1], [1], [2], [0, 0, 0, 1, 1, 2], [0], [0]>} : vector<2x8x8xf32>, vector<2x8x32xf32>, vector<2x8x32xf32> -> vector<2x8x32xf32>
    "tpu.trace_stop"() : () -> ()
    %246 = vector.shape_cast %245 : vector<2x8x32xf32> to vector<16x32xf32>
    %247 = arith.addf %225, %246 : vector<16x32xf32>
    %248 = tpu.concatenate %174, %196, %218, %240 in 1 : vector<16x8xf32>, vector<16x8xf32>, vector<16x8xf32>, vector<16x8xf32> -> vector<16x32xf32>
    %cst_61 = arith.constant dense<0.000000e+00> : vector<16xf32>
    %249 = vector.multi_reduction <add>, %247, %cst_61 [1] : vector<16x32xf32> to vector<16xf32>
    %250 = vector.shape_cast %249 : vector<16xf32> to vector<16x1xf32>
    %cst_62 = arith.constant 3.200000e+01 : f32
    %251 = vector.broadcast %cst_62 : f32 to vector<16x1xf32>
    %252 = arith.divf %250, %251 : vector<16x1xf32>
    %253 = arith.mulf %247, %247 : vector<16x32xf32>
    %cst_63 = arith.constant dense<0.000000e+00> : vector<16xf32>
    %254 = vector.multi_reduction <add>, %253, %cst_63 [1] : vector<16x32xf32> to vector<16xf32>
    %255 = vector.shape_cast %254 : vector<16xf32> to vector<16x1xf32>
    %cst_64 = arith.constant 3.200000e+01 : f32
    %256 = vector.broadcast %cst_64 : f32 to vector<16x1xf32>
    %257 = arith.divf %255, %256 : vector<16x1xf32>
    %258 = arith.mulf %252, %252 : vector<16x1xf32>
    %259 = arith.subf %257, %258 : vector<16x1xf32>
    %260 = vector.broadcast %252 : vector<16x1xf32> to vector<16x32xf32>
    %261 = arith.subf %247, %260 : vector<16x32xf32>
    %cst_65 = arith.constant 9.99999974E-6 : f32
    %262 = vector.broadcast %cst_65 : f32 to vector<16x1xf32>
    %263 = arith.addf %259, %262 : vector<16x1xf32>
    %264 = math.rsqrt %263 : vector<16x1xf32>
    %265 = vector.broadcast %264 : vector<16x1xf32> to vector<16x32xf32>
    %266 = arith.mulf %261, %265 : vector<16x32xf32>
    %267 = vector.broadcast %21 : vector<1x32xf32> to vector<16x32xf32>
    %268 = arith.mulf %266, %267 : vector<16x32xf32>
    %269 = vector.broadcast %22 : vector<1x32xf32> to vector<16x32xf32>
    %270 = arith.addf %268, %269 : vector<16x32xf32>
    %cst_66 = arith.constant dense<0.000000e+00> : vector<16x64xf32>
    %271 = tpu.matmul %270, %11, %cst_66 {dimension_numbers = #tpu.dot_dimension_numbers<[1], [0], [0], [1], [0, 0, 1, 1], [], []>} : vector<16x32xf32>, vector<32x64xf32>, vector<16x64xf32> -> vector<16x64xf32>
    %272 = vector.broadcast %23 : vector<1x64xf32> to vector<16x64xf32>
    %273 = arith.addf %271, %272 : vector<16x64xf32>
    %cst_67 = arith.constant 0.000000e+00 : f32
    %274 = vector.broadcast %cst_67 : f32 to vector<16x64xf32>
    %275 = arith.maximumf %273, %274 : vector<16x64xf32>
    %cst_68 = arith.constant dense<0.000000e+00> : vector<16x32xf32>
    %276 = tpu.matmul %275, %12, %cst_68 {dimension_numbers = #tpu.dot_dimension_numbers<[1], [0], [0], [1], [0, 0, 1, 1], [], []>} : vector<16x64xf32>, vector<64x32xf32>, vector<16x32xf32> -> vector<16x32xf32>
    %277 = vector.broadcast %24 : vector<1x32xf32> to vector<16x32xf32>
    %278 = arith.addf %276, %277 : vector<16x32xf32>
    %279 = arith.addf %278, %270 : vector<16x32xf32>
    %cst_69 = arith.constant dense<0.000000e+00> : vector<16xf32>
    %280 = vector.multi_reduction <add>, %279, %cst_69 [1] : vector<16x32xf32> to vector<16xf32>
    %281 = vector.shape_cast %280 : vector<16xf32> to vector<16x1xf32>
    %cst_70 = arith.constant 3.200000e+01 : f32
    %282 = vector.broadcast %cst_70 : f32 to vector<16x1xf32>
    %283 = arith.divf %281, %282 : vector<16x1xf32>
    %284 = arith.mulf %279, %279 : vector<16x32xf32>
    %cst_71 = arith.constant dense<0.000000e+00> : vector<16xf32>
    %285 = vector.multi_reduction <add>, %284, %cst_71 [1] : vector<16x32xf32> to vector<16xf32>
    %286 = vector.shape_cast %285 : vector<16xf32> to vector<16x1xf32>
    %cst_72 = arith.constant 3.200000e+01 : f32
    %287 = vector.broadcast %cst_72 : f32 to vector<16x1xf32>
    %288 = arith.divf %286, %287 : vector<16x1xf32>
    %289 = arith.mulf %283, %283 : vector<16x1xf32>
    %290 = arith.subf %288, %289 : vector<16x1xf32>
    %291 = vector.broadcast %283 : vector<16x1xf32> to vector<16x32xf32>
    %292 = arith.subf %279, %291 : vector<16x32xf32>
    %cst_73 = arith.constant 9.99999974E-6 : f32
    %293 = vector.broadcast %cst_73 : f32 to vector<16x1xf32>
    %294 = arith.addf %290, %293 : vector<16x1xf32>
    %295 = math.rsqrt %294 : vector<16x1xf32>
    %296 = vector.broadcast %295 : vector<16x1xf32> to vector<16x32xf32>
    %297 = arith.mulf %292, %296 : vector<16x32xf32>
    %298 = vector.broadcast %25 : vector<1x32xf32> to vector<16x32xf32>
    %299 = arith.mulf %297, %298 : vector<16x32xf32>
    %300 = vector.broadcast %26 : vector<1x32xf32> to vector<16x32xf32>
    %301 = arith.addf %299, %300 : vector<16x32xf32>
    %cst_74 = arith.constant 0.000000e+00 : f32
    %302 = vector.broadcast %cst_74 : f32 to vector<16x32xf32>
    %303 = tpu.concatenate %301, %125, %248, %302 in 1 : vector<16x32xf32>, vector<16x32xf32>, vector<16x32xf32>, vector<16x32xf32> -> vector<16x128xf32>
    %c0_75 = arith.constant 0 : index
    %c0_76 = arith.constant 0 : index
    %304 = vector.load %arg3[%c0_75, %c0_76] : memref<16x128xf32, #tpu.memory_space<vmem>>, vector<16x128xf32>
    tpu.vector_store %arg3[%c0_75, %c0_76], %303 {strides = array<i32>} : memref<16x128xf32, #tpu.memory_space<vmem>>, vector<16x128xf32>,
    return
  }
}

</mosaic_0001>

<llo_original>
// kernel: decoder_layer.1
$region0: #{decoder_layer.1}
  #allocation0 [shape = 'u32[]', space=smem, size = 0x4, offset = 0x4, fixed_abs, tag = 'smem constant byte address 0x4 - core index']
  #allocation1 [shape = 'u32[144,128]{1,0:T(1,128)}', space=vmem, size = 0x12000, scoped, tag = 'internal scratch']
  %s0 = inlined_call_operand.vmem [shape: f32[32,32], index: 0, kind: input, shape index: {}]
  %s1 = inlined_call_operand.vmem [shape: f32[16,16], index: 1, kind: input, shape index: {}]
  %s2 = inlined_call_operand.hbm [shape: f32[272,128], index: 2, kind: input, shape index: {}]
  %s3 = inlined_call_operand.vmem [shape: f32[16,128], index: 3, kind: output, shape index: {}]
  %s4 = sld [smem:[#allocation0]]
  $region26: #{decoder_layer.1} parent=0
    _
  %s6 = ssub.s32 1, %s4
  %s7 = scalar_select 0, %s6, %s4
  $region1: #{decoder_layer.1} parent=0
    #allocation2 [shape = 'u8[139264]{0}', space=vmem, size = 0x22000, scoped, tag = 'input window, operand 2, single buffered']
    #allocation3 [shape = 's32[1]{0}', space=sflag, size = 0x4, scoped, tag = 'scoped memory for decoder_layer.1']
    %8 = vsyncpa [#allocation3], 0
    // Predicated region
    $region2: #{decoder_layer.1} parent=1 // pred_check
      _
    $region3: #{decoder_layer.1} parent=1 // pred_check_branch
      %10 = sbr.rel (0) target = $region5
    $region4: #{decoder_layer.1} parent=1 // pred_region
      _
    $region5: #{decoder_layer.1} parent=1 // pred_fallthru
      _
    // Predicated region
    $region6: #{decoder_layer.1} parent=1 // pred_check
      _
    $region7: #{decoder_layer.1} parent=1 // pred_check_branch
      %12 = sbr.rel (0) target = $region9
    $region8: #{decoder_layer.1} parent=1 // pred_region
      _
    $region9: #{decoder_layer.1} parent=1 // pred_fallthru
      _
    // Predicated region
    $region10: #{decoder_layer.1} parent=1 // pred_check
      _
    $region11: #{decoder_layer.1} parent=1 // pred_check_branch
      %14 = sbr.rel (0) target = $region13
    $region12: #{decoder_layer.1} parent=1 // pred_region
      %s16 = ssub.s32 4352, 4352
      %17 = vsyncadd [#allocation3], %s16
      %s18 = sshll.u32 [#allocation2], 4
      %s19 = int_to_ptr.vmem [resolvable:$true] %s18
      %24 = dma.hbm_to_vmem [thread:$0]  %s2, 4352, %s19, [#allocation3], 128, 128, 8
    $region13: #{decoder_layer.1} parent=1 // pred_fallthru
      _
    // Predicated region
    $region14: #{decoder_layer.1} parent=1 // pred_check
      _
    $region15: #{decoder_layer.1} parent=1 // pred_check_branch
      %26 = sbr.rel (0) target = $region17
    $region16: #{decoder_layer.1} parent=1 // pred_region
      %27 = dma.done [#allocation3], 4352
    $region17: #{decoder_layer.1} parent=1 // pred_fallthru
      _
    %v28 = vld [vmem:[%s0] sm:$0xff]
    %v29 = vld [vmem:[%s0 + $0x8] sm:$0xff]
    %v30 = vld [vmem:[%s0 + $0x10] sm:$0xff]
    %v31 = vld [vmem:[%s0 + $0x18] sm:$0xff]
    %v32 = vld [vmem:[%s1] sm:$0xff]
    %v33 = vld [vmem:[%s1 + $0x8] sm:$0xff]
    %v34 = vld [vmem:[#allocation2] sm:$0xff]
    %v35 = vld [vmem:[#allocation2 + $0x8] sm:$0xff]
    %v36 = vld [vmem:[#allocation2 + $0x10] sm:$0xff]
    %v37 = vld [vmem:[#allocation2 + $0x18] sm:$0xff]
    %v38 = vld [vmem:[#allocation2 + $0x20] sm:$0xff]
    %v39 = vld [vmem:[#allocation2 + $0x28] sm:$0xff]
    %v40 = vld [vmem:[#allocation2 + $0x30] sm:$0xff]
    %v41 = vld [vmem:[#allocation2 + $0x38] sm:$0xff]
    %v42 = vld [vmem:[#allocation2 + $0x40] sm:$0xff]
    %v43 = vld [vmem:[#allocation2 + $0x48] sm:$0xff]
    %v44 = vld [vmem:[#allocation2 + $0x50] sm:$0xff]
    %v45 = vld [vmem:[#allocation2 + $0x58] sm:$0xff]
    %v46 = vld [vmem:[#allocation2 + $0x60] sm:$0xff]
    %v47 = vld [vmem:[#allocation2 + $0x68] sm:$0xff]
    %v48 = vld [vmem:[#allocation2 + $0x70] sm:$0xff]
    %v49 = vld [vmem:[#allocation2 + $0x78] sm:$0xff]
    %v50 = vld [vmem:[#allocation2 + $0x80] sm:$0xff]
    %v51 = vld [vmem:[#allocation2 + $0x88] sm:$0xff]
    %v52 = vld [vmem:[#allocation2 + $0x90] sm:$0xff]
    %v53 = vld [vmem:[#allocation2 + $0x98] sm:$0xff]
    %v54 = vld [vmem:[#allocation2 + $0xa0] sm:$0xff]
    %v55 = vld [vmem:[#allocation2 + $0xa8] sm:$0xff]
    %v56 = vld [vmem:[#allocation2 + $0xb0] sm:$0xff]
    %v57 = vld [vmem:[#allocation2 + $0xb8] sm:$0xff]
    %v58 = vld [vmem:[#allocation2 + $0xc0] sm:$0xff]
    %v59 = vld [vmem:[#allocation2 + $0xc8] sm:$0xff]
    %v60 = vld [vmem:[#allocation2 + $0xd0] sm:$0xff]
    %v61 = vld [vmem:[#allocation2 + $0xd8] sm:$0xff]
    %v62 = vld [vmem:[#allocation2 + $0xe0] sm:$0xff]
    %v63 = vld [vmem:[#allocation2 + $0xe8] sm:$0xff]
    %v64 = vld [vmem:[#allocation2 + $0xf0] sm:$0xff]
    %v65 = vld [vmem:[#allocation2 + $0xf8] sm:$0xff]
    %v66 = vld [vmem:[#allocation2 + $0x100] sm:$0xff]
    %v67 = vld [vmem:[#allocation2 + $0x108] sm:$0xff]
    %v68 = vlaneseq
    %v69 = vshrl.u32 %v68, 7
    %v70 = vsub.s32 0, %v69
    %v71 = vrot.slane %v66, %v70
    %vm72 = vcmask 261120
    %v74 = vsel %vm72, %v28, 0
    %v77 = vsel %vm72, %v29, 0
    %79 = vmatprep.subr.mxu0 0.0
    %80 = vmatpush1.msra.mxu0 0.0
    %81 = vmatprep.subr.mxu0 0.0
    %82 = vmatpush1.msra.mxu0 0.0
    %83 = vmatprep.subr.mxu0 0.0
    %84 = vmatpush1.msra.mxu0 0.0
    %85 = vmatprep.subr.mxu0 0.0
    %86 = vmatpush1.msra.mxu0 0.0
    %87 = vmatprep.subr.mxu0 0.0
    %88 = vmatpush1.msra.mxu0 0.0
    %89 = vmatprep.subr.mxu0 0.0
    %90 = vmatpush1.msra.mxu0 0.0
    %91 = vmatprep.subr.mxu0 0.0
    %92 = vmatpush1.msra.mxu0 0.0
    %93 = vmatprep.subr.mxu0 0.0
    %94 = vmatpush1.msra.mxu0 0.0
    %95 = vmatprep.subr.mxu0 0.0
    %96 = vmatpush1.msra.mxu0 0.0
    %97 = vmatprep.subr.mxu0 0.0
    %98 = vmatpush1.msra.mxu0 0.0
    %99 = vmatprep.subr.mxu0 0.0
    %100 = vmatpush1.msra.mxu0 0.0
    %101 = vmatprep.subr.mxu0 0.0
    %102 = vmatpush1.msra.mxu0 0.0
    %103 = vmatprep.subr.mxu0 0.0
    %104 = vmatpush1.msra.mxu0 %v37
    %105 = vmatprep.subr.mxu0 0.0
    %106 = vmatpush1.msra.mxu0 %v36
    %107 = vmatprep.subr.mxu0 0.0
    %108 = vmatpush1.msra.mxu0 %v35
    %109 = vmatprep.subr.mxu0 0.0
    %110 = vmatpush1.msra.mxu0 %v34
    %111 = vmatprep.subr.mxu0 0.0
    %112 = vmatpush2.msra.mxu0 0.0
    %113 = vmatprep.subr.mxu0 0.0
    %114 = vmatpush2.msra.mxu0 0.0
    %115 = vmatprep.subr.mxu0 0.0
    %116 = vmatpush2.msra.mxu0 0.0
    %117 = vmatprep.subr.mxu0 0.0
    %118 = vmatpush2.msra.mxu0 0.0
    %119 = vmatprep.subr.mxu0 0.0
    %120 = vmatpush2.msra.mxu0 0.0
    %121 = vmatprep.subr.mxu0 0.0
    %122 = vmatpush2.msra.mxu0 0.0
    %123 = vmatprep.subr.mxu0 0.0
    %124 = vmatpush2.msra.mxu0 0.0
    %125 = vmatprep.subr.mxu0 0.0
    %126 = vmatpush2.msra.mxu0 0.0
    %127 = vmatprep.subr.mxu0 0.0
    %128 = vmatpush2.msra.mxu0 0.0
    %129 = vmatprep.subr.mxu0 0.0
    %130 = vmatpush2.msra.mxu0 0.0
    %131 = vmatprep.subr.mxu0 0.0
    %132 = vmatpush2.msra.mxu0 0.0
    %133 = vmatprep.subr.mxu0 0.0
    %134 = vmatpush2.msra.mxu0 0.0
    %135 = vmatprep.subr.mxu0 0.0
    %136 = vmatpush2.msra.mxu0 0.0
    %137 = vmatprep.subr.mxu0 0.0
    %138 = vmatpush2.msra.mxu0 0.0
    %139 = vmatprep.subr.mxu0 0.0
    %140 = vmatpush2.msra.mxu0 0.0
    %141 = vmatprep.subr.mxu0 0.0
    %142 = vmatpush2.msra.mxu0 0.0
    %143 = vmatprep.mubr.f32.mxu0 0.0
    %144 = vmatmul.mubr.f32.gmra.mxu0 %v74
    %v145 = vpop.f32.mrf.mxu0
    %v146 = vadd.f32 %v71, %v145
    %v147 = vpop.f32.mrf.mxu0
    %148 = vmatprep.mubr.f32.mxu0 0.0
    %149 = vmatmul.mubr.f32.gmra.mxu0 %v77
    %v150 = vpop.f32.mrf.mxu0
    %v151 = vadd.f32 %v71, %v150
    %v152 = vpop.f32.mrf.mxu0
    %153 = vdwg.mxu0
    %v154 = vlaneseq
    %v155 = vshrl.u32 %v154, 7
    %v156 = vsub.s32 1, %v155
    %v157 = vrot.slane %v66, %v156
    %v158 = vadd.f32 %v28, %v157
    %v159 = vadd.f32 %v29, %v157
    %161 = vrot.lane.b32.xlu0 %v146, 96
    %v162 = vpop.permute.xlu0 %161
    %vm163 = vcmask 64512
    %v164 = vsel %vm163, %v146, 0
    %v166 = vsel %vm163, %v162, 0
    %168 = vmatprep.subr.mxu0 0.0
    %169 = vmatpush1.xpose.msra.mxu0 0.0
    %170 = vmatprep.subr.mxu0 0.0
    %171 = vmatpush1.xpose.msra.mxu0 0.0
    %172 = vmatprep.subr.mxu0 0.0
    %173 = vmatpush1.xpose.msra.mxu0 0.0
    %174 = vmatprep.subr.mxu0 0.0
    %175 = vmatpush1.xpose.msra.mxu0 0.0
    %176 = vmatprep.subr.mxu0 0.0
    %177 = vmatpush1.xpose.msra.mxu0 0.0
    %178 = vmatprep.subr.mxu0 0.0
    %179 = vmatpush1.xpose.msra.mxu0 0.0
    %180 = vmatprep.subr.mxu0 0.0
    %181 = vmatpush1.xpose.msra.mxu0 0.0
    %182 = vmatprep.subr.mxu0 0.0
    %183 = vmatpush1.xpose.msra.mxu0 0.0
    %184 = vmatprep.subr.mxu0 0.0
    %185 = vmatpush1.xpose.msra.mxu0 0.0
    %186 = vmatprep.subr.mxu0 0.0
    %187 = vmatpush1.xpose.msra.mxu0 0.0
    %188 = vmatprep.subr.mxu0 0.0
    %189 = vmatpush1.xpose.msra.mxu0 0.0
    %190 = vmatprep.subr.mxu0 0.0
    %191 = vmatpush1.xpose.msra.mxu0 0.0
    %192 = vmatprep.subr.mxu0 0.0
    %193 = vmatpush1.xpose.msra.mxu0 0.0
    %194 = vmatprep.subr.mxu0 0.0
    %195 = vmatpush1.xpose.msra.mxu0 0.0
    %196 = vmatprep.subr.mxu0 0.0
    %197 = vmatpush1.xpose.msra.mxu0 0.0
    %198 = vmatprep.subr.mxu0 0.0
    %199 = vmatpush1.xpose.msra.mxu0 %v166
    %200 = vmatprep.subr.mxu0 0.0
    %201 = vmatpush2.xpose.msra.mxu0 0.0
    %202 = vmatprep.subr.mxu0 0.0
    %203 = vmatpush2.xpose.msra.mxu0 0.0
    %204 = vmatprep.subr.mxu0 0.0
    %205 = vmatpush2.xpose.msra.mxu0 0.0
    %206 = vmatprep.subr.mxu0 0.0
    %207 = vmatpush2.xpose.msra.mxu0 0.0
    %208 = vmatprep.subr.mxu0 0.0
    %209 = vmatpush2.xpose.msra.mxu0 0.0
    %210 = vmatprep.subr.mxu0 0.0
    %211 = vmatpush2.xpose.msra.mxu0 0.0
    %212 = vmatprep.subr.mxu0 0.0
    %213 = vmatpush2.xpose.msra.mxu0 0.0
    %214 = vmatprep.subr.mxu0 0.0
    %215 = vmatpush2.xpose.msra.mxu0 0.0
    %216 = vmatprep.subr.mxu0 0.0
    %217 = vmatpush2.xpose.msra.mxu0 0.0
    %218 = vmatprep.subr.mxu0 0.0
    %219 = vmatpush2.xpose.msra.mxu0 0.0
    %220 = vmatprep.subr.mxu0 0.0
    %221 = vmatpush2.xpose.msra.mxu0 0.0
    %222 = vmatprep.subr.mxu0 0.0
    %223 = vmatpush2.xpose.msra.mxu0 0.0
    %224 = vmatprep.subr.mxu0 0.0
    %225 = vmatpush2.xpose.msra.mxu0 0.0
    %226 = vmatprep.subr.mxu0 0.0
    %227 = vmatpush2.xpose.msra.mxu0 0.0
    %228 = vmatprep.subr.mxu0 0.0
    %229 = vmatpush2.xpose.msra.mxu0 0.0
    %230 = vmatprep.subr.mxu0 0.0
    %231 = vmatpush2.xpose.msra.mxu0 0.0
    %232 = vmatprep.mubr.f32.mxu0 0.0
    %233 = vmatmul.mubr.f32.gmra.mxu0 %v164
    %v234 = vpop.f32.mrf.mxu0
    %v235 = vadd.f32 %v32, %v234
    %v236 = vpop.f32.mrf.mxu0
    %237 = vdwg.mxu0
    %239 = vrot.lane.b32.xlu0 %v151, 96
    %v240 = vpop.permute.xlu0 %239
    %v241 = vsel %vm163, %v151, 0
    %v243 = vsel %vm163, %v240, 0
    %245 = vmatprep.subr.mxu0 0.0
    %246 = vmatpush1.xpose.msra.mxu0 0.0
    %247 = vmatprep.subr.mxu0 0.0
    %248 = vmatpush1.xpose.msra.mxu0 0.0
    %249 = vmatprep.subr.mxu0 0.0
    %250 = vmatpush1.xpose.msra.mxu0 0.0
    %251 = vmatprep.subr.mxu0 0.0
    %252 = vmatpush1.xpose.msra.mxu0 0.0
    %253 = vmatprep.subr.mxu0 0.0
    %254 = vmatpush1.xpose.msra.mxu0 0.0
    %255 = vmatprep.subr.mxu0 0.0
    %256 = vmatpush1.xpose.msra.mxu0 0.0
    %257 = vmatprep.subr.mxu0 0.0
    %258 = vmatpush1.xpose.msra.mxu0 0.0
    %259 = vmatprep.subr.mxu0 0.0
    %260 = vmatpush1.xpose.msra.mxu0 0.0
    %261 = vmatprep.subr.mxu0 0.0
    %262 = vmatpush1.xpose.msra.mxu0 0.0
    %263 = vmatprep.subr.mxu0 0.0
    %264 = vmatpush1.xpose.msra.mxu0 0.0
    %265 = vmatprep.subr.mxu0 0.0
    %266 = vmatpush1.xpose.msra.mxu0 0.0
    %267 = vmatprep.subr.mxu0 0.0
    %268 = vmatpush1.xpose.msra.mxu0 0.0
    %269 = vmatprep.subr.mxu0 0.0
    %270 = vmatpush1.xpose.msra.mxu0 0.0
    %271 = vmatprep.subr.mxu0 0.0
    %272 = vmatpush1.xpose.msra.mxu0 0.0
    %273 = vmatprep.subr.mxu0 0.0
    %274 = vmatpush1.xpose.msra.mxu0 0.0
    %275 = vmatprep.subr.mxu0 0.0
    %276 = vmatpush1.xpose.msra.mxu0 %v243
    %277 = vmatprep.subr.mxu0 0.0
    %278 = vmatpush2.xpose.msra.mxu0 0.0
    %279 = vmatprep.subr.mxu0 0.0
    %280 = vmatpush2.xpose.msra.mxu0 0.0
    %281 = vmatprep.subr.mxu0 0.0
    %282 = vmatpush2.xpose.msra.mxu0 0.0
    %283 = vmatprep.subr.mxu0 0.0
    %284 = vmatpush2.xpose.msra.mxu0 0.0
    %285 = vmatprep.subr.mxu0 0.0
    %286 = vmatpush2.xpose.msra.mxu0 0.0
    %287 = vmatprep.subr.mxu0 0.0
    %288 = vmatpush2.xpose.msra.mxu0 0.0
    %289 = vmatprep.subr.mxu0 0.0
    %290 = vmatpush2.xpose.msra.mxu0 0.0
    %291 = vmatprep.subr.mxu0 0.0
    %292 = vmatpush2.xpose.msra.mxu0 0.0
    %293 = vmatprep.subr.mxu0 0.0
    %294 = vmatpush2.xpose.msra.mxu0 0.0
    %295 = vmatprep.subr.mxu0 0.0
    %296 = vmatpush2.xpose.msra.mxu0 0.0
    %297 = vmatprep.subr.mxu0 0.0
    %298 = vmatpush2.xpose.msra.mxu0 0.0
    %299 = vmatprep.subr.mxu0 0.0
    %300 = vmatpush2.xpose.msra.mxu0 0.0
    %301 = vmatprep.subr.mxu0 0.0
    %302 = vmatpush2.xpose.msra.mxu0 0.0
    %303 = vmatprep.subr.mxu0 0.0
    %304 = vmatpush2.xpose.msra.mxu0 0.0
    %305 = vmatprep.subr.mxu0 0.0
    %306 = vmatpush2.xpose.msra.mxu0 0.0
    %307 = vmatprep.subr.mxu0 0.0
    %308 = vmatpush2.xpose.msra.mxu0 0.0
    %309 = vmatprep.mubr.f32.mxu0 0.0
    %310 = vmatmul.mubr.f32.gmra.mxu0 %v241
    %v311 = vpop.f32.mrf.mxu0
    %v312 = vadd.f32 %v33, %v311
    %v313 = vpop.f32.mrf.mxu0
    %314 = vdwg.mxu0
    %v315 = vsel %vm163, %v235, -inf
    %316 = vmax.xlane.f32.xlu0 %v315
    %v317 = vpop.xlane.xlu0 %316
    %v318 = vsel %vm163, %v312, -inf
    %319 = vmax.xlane.f32.xlu0 %v318
    %v320 = vpop.xlane.xlu0 %319
    %v321 = vsub.f32 %v235, %v317
    %v322 = vsub.f32 %v312, %v320
    %v323 = vmul.f32 %v321, 1.442695
    %v324 = vpow.pop %v323
    %v325 = vmul.f32 %v322, 1.442695
    %v326 = vpow.pop %v325
    %v327 = vsel %vm163, %v324, 0.0
    %328 = vadd.xlane.f32.xlu0 %v327
    %v329 = vpop.xlane.xlu0 %328
    %v330 = vsel %vm163, %v326, 0.0
    %331 = vadd.xlane.f32.xlu0 %v330
    %v332 = vpop.xlane.xlu0 %331
    %v333 = vrcp.pop %v329
    %v334 = vrcp.pop %v332
    %v335 = vmul.f32 %v324, %v333
    %v336 = vmul.f32 %v326, %v334
    %337 = vrot.lane.b32.xlu0 %v146, 64
    %v338 = vpop.permute.xlu0 %337
    %339 = vrot.lane.b32.xlu0 %v151, 64
    %v340 = vpop.permute.xlu0 %339
    %v341 = vsel %vm163, %v338, 0
    %v343 = vsel %vm163, %v340, 0
    %345 = vmatprep.subr.mxu0 0.0
    %346 = vmatpush1.msra.mxu0 0.0
    %347 = vmatprep.subr.mxu0 0.0
    %348 = vmatpush1.msra.mxu0 0.0
    %349 = vmatprep.subr.mxu0 0.0
    %350 = vmatpush1.msra.mxu0 0.0
    %351 = vmatprep.subr.mxu0 0.0
    %352 = vmatpush1.msra.mxu0 0.0
    %353 = vmatprep.subr.mxu0 0.0
    %354 = vmatpush1.msra.mxu0 0.0
    %355 = vmatprep.subr.mxu0 0.0
    %356 = vmatpush1.msra.mxu0 0.0
    %357 = vmatprep.subr.mxu0 0.0
    %358 = vmatpush1.msra.mxu0 0.0
    %359 = vmatprep.subr.mxu0 0.0
    %360 = vmatpush1.msra.mxu0 0.0
    %361 = vmatprep.subr.mxu0 0.0
    %362 = vmatpush1.msra.mxu0 0.0
    %363 = vmatprep.subr.mxu0 0.0
    %364 = vmatpush1.msra.mxu0 0.0
    %365 = vmatprep.subr.mxu0 0.0
    %366 = vmatpush1.msra.mxu0 0.0
    %367 = vmatprep.subr.mxu0 0.0
    %368 = vmatpush1.msra.mxu0 0.0
    %369 = vmatprep.subr.mxu0 0.0
    %370 = vmatpush1.msra.mxu0 0.0
    %371 = vmatprep.subr.mxu0 0.0
    %372 = vmatpush1.msra.mxu0 0.0
    %373 = vmatprep.subr.mxu0 0.0
    %374 = vmatpush1.msra.mxu0 0.0
    %375 = vmatprep.subr.mxu0 0.0
    %376 = vmatpush1.msra.mxu0 %v38
    %377 = vmatprep.subr.mxu0 0.0
    %378 = vmatpush2.msra.mxu0 0.0
    %379 = vmatprep.subr.mxu0 0.0
    %380 = vmatpush2.msra.mxu0 0.0
    %381 = vmatprep.subr.mxu0 0.0
    %382 = vmatpush2.msra.mxu0 0.0
    %383 = vmatprep.subr.mxu0 0.0
    %384 = vmatpush2.msra.mxu0 0.0
    %385 = vmatprep.subr.mxu0 0.0
    %386 = vmatpush2.msra.mxu0 0.0
    %387 = vmatprep.subr.mxu0 0.0
    %388 = vmatpush2.msra.mxu0 0.0
    %389 = vmatprep.subr.mxu0 0.0
    %390 = vmatpush2.msra.mxu0 0.0
    %391 = vmatprep.subr.mxu0 0.0
    %392 = vmatpush2.msra.mxu0 0.0
    %393 = vmatprep.subr.mxu0 0.0
    %394 = vmatpush2.msra.mxu0 0.0
    %395 = vmatprep.subr.mxu0 0.0
    %396 = vmatpush2.msra.mxu0 0.0
    %397 = vmatprep.subr.mxu0 0.0
    %398 = vmatpush2.msra.mxu0 0.0
    %399 = vmatprep.subr.mxu0 0.0
    %400 = vmatpush2.msra.mxu0 0.0
    %401 = vmatprep.subr.mxu0 0.0
    %402 = vmatpush2.msra.mxu0 0.0
    %403 = vmatprep.subr.mxu0 0.0
    %404 = vmatpush2.msra.mxu0 0.0
    %405 = vmatprep.subr.mxu0 0.0
    %406 = vmatpush2.msra.mxu0 0.0
    %407 = vmatprep.subr.mxu0 0.0
    %408 = vmatpush2.msra.mxu0 0.0
    %409 = vmatprep.mubr.f32.mxu0 0.0
    %410 = vmatmul.mubr.f32.gmra.mxu0 %v341
    %v411 = vpop.f32.mrf.mxu0
    %v412 = vadd.f32 0.0, %v411
    %v413 = vpop.f32.mrf.mxu0
    %414 = vmatprep.mubr.f32.mxu0 0.0
    %415 = vmatmul.mubr.f32.gmra.mxu0 %v343
    %v416 = vpop.f32.mrf.mxu0
    %v417 = vadd.f32 0.0, %v416
    %v418 = vpop.f32.mrf.mxu0
    %419 = vdwg.mxu0
    %v421 = vsel %vm163, %v335, 0
    %423 = vmatprep.subr.mxu0 0.0
    %424 = vmatpush1.msra.mxu0 0.0
    %425 = vmatprep.subr.mxu0 0.0
    %426 = vmatpush1.msra.mxu0 0.0
    %427 = vmatprep.subr.mxu0 0.0
    %428 = vmatpush1.msra.mxu0 0.0
    %429 = vmatprep.subr.mxu0 0.0
    %430 = vmatpush1.msra.mxu0 0.0
    %431 = vmatprep.subr.mxu0 0.0
    %432 = vmatpush1.msra.mxu0 0.0
    %433 = vmatprep.subr.mxu0 0.0
    %434 = vmatpush1.msra.mxu0 0.0
    %435 = vmatprep.subr.mxu0 0.0
    %436 = vmatpush1.msra.mxu0 0.0
    %437 = vmatprep.subr.mxu0 0.0
    %438 = vmatpush1.msra.mxu0 0.0
    %439 = vmatprep.subr.mxu0 0.0
    %440 = vmatpush1.msra.mxu0 0.0
    %441 = vmatprep.subr.mxu0 0.0
    %442 = vmatpush1.msra.mxu0 0.0
    %443 = vmatprep.subr.mxu0 0.0
    %444 = vmatpush1.msra.mxu0 0.0
    %445 = vmatprep.subr.mxu0 0.0
    %446 = vmatpush1.msra.mxu0 0.0
    %447 = vmatprep.subr.mxu0 0.0
    %448 = vmatpush1.msra.mxu0 0.0
    %449 = vmatprep.subr.mxu0 0.0
    %450 = vmatpush1.msra.mxu0 0.0
    %451 = vmatprep.subr.mxu0 0.0
    %452 = vmatpush1.msra.mxu0 0.0
    %453 = vmatprep.subr.mxu0 0.0
    %454 = vmatpush1.msra.mxu0 %v412
    %455 = vmatprep.subr.mxu0 0.0
    %456 = vmatpush2.msra.mxu0 0.0
    %457 = vmatprep.subr.mxu0 0.0
    %458 = vmatpush2.msra.mxu0 0.0
    %459 = vmatprep.subr.mxu0 0.0
    %460 = vmatpush2.msra.mxu0 0.0
    %461 = vmatprep.subr.mxu0 0.0
    %462 = vmatpush2.msra.mxu0 0.0
    %463 = vmatprep.subr.mxu0 0.0
    %464 = vmatpush2.msra.mxu0 0.0
    %465 = vmatprep.subr.mxu0 0.0
    %466 = vmatpush2.msra.mxu0 0.0
    %467 = vmatprep.subr.mxu0 0.0
    %468 = vmatpush2.msra.mxu0 0.0
    %469 = vmatprep.subr.mxu0 0.0
    %470 = vmatpush2.msra.mxu0 0.0
    %471 = vmatprep.subr.mxu0 0.0
    %472 = vmatpush2.msra.mxu0 0.0
    %473 = vmatprep.subr.mxu0 0.0
    %474 = vmatpush2.msra.mxu0 0.0
    %475 = vmatprep.subr.mxu0 0.0
    %476 = vmatpush2.msra.mxu0 0.0
    %477 = vmatprep.subr.mxu0 0.0
    %478 = vmatpush2.msra.mxu0 0.0
    %479 = vmatprep.subr.mxu0 0.0
    %480 = vmatpush2.msra.mxu0 0.0
    %481 = vmatprep.subr.mxu0 0.0
    %482 = vmatpush2.msra.mxu0 0.0
    %483 = vmatprep.subr.mxu0 0.0
    %484 = vmatpush2.msra.mxu0 0.0
    %485 = vmatprep.subr.mxu0 0.0
    %486 = vmatpush2.msra.mxu0 0.0
    %487 = vmatprep.mubr.f32.mxu0 0.0
    %488 = vmatmul.mubr.f32.gmra.mxu0 %v421
    %v489 = vpop.f32.mrf.mxu0
    %v490 = vadd.f32 0.0, %v489
    %v491 = vpop.f32.mrf.mxu0
    %492 = vdwg.mxu0
    %v494 = vsel %vm163, %v336, 0
    %496 = vmatprep.subr.mxu0 0.0
    %497 = vmatpush1.msra.mxu0 0.0
    %498 = vmatprep.subr.mxu0 0.0
    %499 = vmatpush1.msra.mxu0 0.0
    %500 = vmatprep.subr.mxu0 0.0
    %501 = vmatpush1.msra.mxu0 0.0
    %502 = vmatprep.subr.mxu0 0.0
    %503 = vmatpush1.msra.mxu0 0.0
    %504 = vmatprep.subr.mxu0 0.0
    %505 = vmatpush1.msra.mxu0 0.0
    %506 = vmatprep.subr.mxu0 0.0
    %507 = vmatpush1.msra.mxu0 0.0
    %508 = vmatprep.subr.mxu0 0.0
    %509 = vmatpush1.msra.mxu0 0.0
    %510 = vmatprep.subr.mxu0 0.0
    %511 = vmatpush1.msra.mxu0 0.0
    %512 = vmatprep.subr.mxu0 0.0
    %513 = vmatpush1.msra.mxu0 0.0
    %514 = vmatprep.subr.mxu0 0.0
    %515 = vmatpush1.msra.mxu0 0.0
    %516 = vmatprep.subr.mxu0 0.0
    %517 = vmatpush1.msra.mxu0 0.0
    %518 = vmatprep.subr.mxu0 0.0
    %519 = vmatpush1.msra.mxu0 0.0
    %520 = vmatprep.subr.mxu0 0.0
    %521 = vmatpush1.msra.mxu0 0.0
    %522 = vmatprep.subr.mxu0 0.0
    %523 = vmatpush1.msra.mxu0 0.0
    %524 = vmatprep.subr.mxu0 0.0
    %525 = vmatpush1.msra.mxu0 0.0
    %526 = vmatprep.subr.mxu0 0.0
    %527 = vmatpush1.msra.mxu0 %v417
    %528 = vmatprep.subr.mxu0 0.0
    %529 = vmatpush2.msra.mxu0 0.0
    %530 = vmatprep.subr.mxu0 0.0
    %531 = vmatpush2.msra.mxu0 0.0
    %532 = vmatprep.subr.mxu0 0.0
    %533 = vmatpush2.msra.mxu0 0.0
    %534 = vmatprep.subr.mxu0 0.0
    %535 = vmatpush2.msra.mxu0 0.0
    %536 = vmatprep.subr.mxu0 0.0
    %537 = vmatpush2.msra.mxu0 0.0
    %538 = vmatprep.subr.mxu0 0.0
    %539 = vmatpush2.msra.mxu0 0.0
    %540 = vmatprep.subr.mxu0 0.0
    %541 = vmatpush2.msra.mxu0 0.0
    %542 = vmatprep.subr.mxu0 0.0
    %543 = vmatpush2.msra.mxu0 0.0
    %544 = vmatprep.subr.mxu0 0.0
    %545 = vmatpush2.msra.mxu0 0.0
    %546 = vmatprep.subr.mxu0 0.0
    %547 = vmatpush2.msra.mxu0 0.0
    %548 = vmatprep.subr.mxu0 0.0
    %549 = vmatpush2.msra.mxu0 0.0
    %550 = vmatprep.subr.mxu0 0.0
    %551 = vmatpush2.msra.mxu0 0.0
    %552 = vmatprep.subr.mxu0 0.0
    %553 = vmatpush2.msra.mxu0 0.0
    %554 = vmatprep.subr.mxu0 0.0
    %555 = vmatpush2.msra.mxu0 0.0
    %556 = vmatprep.subr.mxu0 0.0
    %557 = vmatpush2.msra.mxu0 0.0
    %558 = vmatprep.subr.mxu0 0.0
    %559 = vmatpush2.msra.mxu0 0.0
    %560 = vmatprep.mubr.f32.mxu0 0.0
    %561 = vmatmul.mubr.f32.gmra.mxu0 %v494
    %v562 = vpop.f32.mrf.mxu0
    %v563 = vadd.f32 0.0, %v562
    %v564 = vpop.f32.mrf.mxu0
    %565 = vdwg.mxu0
    %v566 = vadd.f32 %v158, %v490
    %v567 = vadd.f32 %v159, %v563
    %568 = vrot.lane.b32.xlu0 %v146, 120
    %v569 = vpop.permute.xlu0 %568
    %570 = vrot.lane.b32.xlu0 %v146, 88
    %v571 = vpop.permute.xlu0 %570
    %v572 = vsel %vm163, %v569, 0
    %v574 = vsel %vm163, %v571, 0
    %576 = vmatprep.subr.mxu0 0.0
    %577 = vmatpush1.xpose.msra.mxu0 0.0
    %578 = vmatprep.subr.mxu0 0.0
    %579 = vmatpush1.xpose.msra.mxu0 0.0
    %580 = vmatprep.subr.mxu0 0.0
    %581 = vmatpush1.xpose.msra.mxu0 0.0
    %582 = vmatprep.subr.mxu0 0.0
    %583 = vmatpush1.xpose.msra.mxu0 0.0
    %584 = vmatprep.subr.mxu0 0.0
    %585 = vmatpush1.xpose.msra.mxu0 0.0
    %586 = vmatprep.subr.mxu0 0.0
    %587 = vmatpush1.xpose.msra.mxu0 0.0
    %588 = vmatprep.subr.mxu0 0.0
    %589 = vmatpush1.xpose.msra.mxu0 0.0
    %590 = vmatprep.subr.mxu0 0.0
    %591 = vmatpush1.xpose.msra.mxu0 0.0
    %592 = vmatprep.subr.mxu0 0.0
    %593 = vmatpush1.xpose.msra.mxu0 0.0
    %594 = vmatprep.subr.mxu0 0.0
    %595 = vmatpush1.xpose.msra.mxu0 0.0
    %596 = vmatprep.subr.mxu0 0.0
    %597 = vmatpush1.xpose.msra.mxu0 0.0
    %598 = vmatprep.subr.mxu0 0.0
    %599 = vmatpush1.xpose.msra.mxu0 0.0
    %600 = vmatprep.subr.mxu0 0.0
    %601 = vmatpush1.xpose.msra.mxu0 0.0
    %602 = vmatprep.subr.mxu0 0.0
    %603 = vmatpush1.xpose.msra.mxu0 0.0
    %604 = vmatprep.subr.mxu0 0.0
    %605 = vmatpush1.xpose.msra.mxu0 0.0
    %606 = vmatprep.subr.mxu0 0.0
    %607 = vmatpush1.xpose.msra.mxu0 %v574
    %608 = vmatprep.subr.mxu0 0.0
    %609 = vmatpush2.xpose.msra.mxu0 0.0
    %610 = vmatprep.subr.mxu0 0.0
    %611 = vmatpush2.xpose.msra.mxu0 0.0
    %612 = vmatprep.subr.mxu0 0.0
    %613 = vmatpush2.xpose.msra.mxu0 0.0
    %614 = vmatprep.subr.mxu0 0.0
    %615 = vmatpush2.xpose.msra.mxu0 0.0
    %616 = vmatprep.subr.mxu0 0.0
    %617 = vmatpush2.xpose.msra.mxu0 0.0
    %618 = vmatprep.subr.mxu0 0.0
    %619 = vmatpush2.xpose.msra.mxu0 0.0
    %620 = vmatprep.subr.mxu0 0.0
    %621 = vmatpush2.xpose.msra.mxu0 0.0
    %622 = vmatprep.subr.mxu0 0.0
    %623 = vmatpush2.xpose.msra.mxu0 0.0
    %624 = vmatprep.subr.mxu0 0.0
    %625 = vmatpush2.xpose.msra.mxu0 0.0
    %626 = vmatprep.subr.mxu0 0.0
    %627 = vmatpush2.xpose.msra.mxu0 0.0
    %628 = vmatprep.subr.mxu0 0.0
    %629 = vmatpush2.xpose.msra.mxu0 0.0
    %630 = vmatprep.subr.mxu0 0.0
    %631 = vmatpush2.xpose.msra.mxu0 0.0
    %632 = vmatprep.subr.mxu0 0.0
    %633 = vmatpush2.xpose.msra.mxu0 0.0
    %634 = vmatprep.subr.mxu0 0.0
    %635 = vmatpush2.xpose.msra.mxu0 0.0
    %636 = vmatprep.subr.mxu0 0.0
    %637 = vmatpush2.xpose.msra.mxu0 0.0
    %638 = vmatprep.subr.mxu0 0.0
    %639 = vmatpush2.xpose.msra.mxu0 0.0
    %640 = vmatprep.mubr.f32.mxu0 0.0
    %641 = vmatmul.mubr.f32.gmra.mxu0 %v572
    %v642 = vpop.f32.mrf.mxu0
    %v643 = vadd.f32 %v32, %v642
    %v644 = vpop.f32.mrf.mxu0
    %645 = vdwg.mxu0
    %646 = vrot.lane.b32.xlu0 %v151, 120
    %v647 = vpop.permute.xlu0 %646
    %648 = vrot.lane.b32.xlu0 %v151, 88
    %v649 = vpop.permute.xlu0 %648
    %v650 = vsel %vm163, %v647, 0
    %v652 = vsel %vm163, %v649, 0
    %654 = vmatprep.subr.mxu0 0.0
    %655 = vmatpush1.xpose.msra.mxu0 0.0
    %656 = vmatprep.subr.mxu0 0.0
    %657 = vmatpush1.xpose.msra.mxu0 0.0
    %658 = vmatprep.subr.mxu0 0.0
    %659 = vmatpush1.xpose.msra.mxu0 0.0
    %660 = vmatprep.subr.mxu0 0.0
    %661 = vmatpush1.xpose.msra.mxu0 0.0
    %662 = vmatprep.subr.mxu0 0.0
    %663 = vmatpush1.xpose.msra.mxu0 0.0
    %664 = vmatprep.subr.mxu0 0.0
    %665 = vmatpush1.xpose.msra.mxu0 0.0
    %666 = vmatprep.subr.mxu0 0.0
    %667 = vmatpush1.xpose.msra.mxu0 0.0
    %668 = vmatprep.subr.mxu0 0.0
    %669 = vmatpush1.xpose.msra.mxu0 0.0
    %670 = vmatprep.subr.mxu0 0.0
    %671 = vmatpush1.xpose.msra.mxu0 0.0
    %672 = vmatprep.subr.mxu0 0.0
    %673 = vmatpush1.xpose.msra.mxu0 0.0
    %674 = vmatprep.subr.mxu0 0.0
    %675 = vmatpush1.xpose.msra.mxu0 0.0
    %676 = vmatprep.subr.mxu0 0.0
    %677 = vmatpush1.xpose.msra.mxu0 0.0
    %678 = vmatprep.subr.mxu0 0.0
    %679 = vmatpush1.xpose.msra.mxu0 0.0
    %680 = vmatprep.subr.mxu0 0.0
    %681 = vmatpush1.xpose.msra.mxu0 0.0
    %682 = vmatprep.subr.mxu0 0.0
    %683 = vmatpush1.xpose.msra.mxu0 0.0
    %684 = vmatprep.subr.mxu0 0.0
    %685 = vmatpush1.xpose.msra.mxu0 %v652
    %686 = vmatprep.subr.mxu0 0.0
    %687 = vmatpush2.xpose.msra.mxu0 0.0
    %688 = vmatprep.subr.mxu0 0.0
    %689 = vmatpush2.xpose.msra.mxu0 0.0
    %690 = vmatprep.subr.mxu0 0.0
    %691 = vmatpush2.xpose.msra.mxu0 0.0
    %692 = vmatprep.subr.mxu0 0.0
    %693 = vmatpush2.xpose.msra.mxu0 0.0
    %694 = vmatprep.subr.mxu0 0.0
    %695 = vmatpush2.xpose.msra.mxu0 0.0
    %696 = vmatprep.subr.mxu0 0.0
    %697 = vmatpush2.xpose.msra.mxu0 0.0
    %698 = vmatprep.subr.mxu0 0.0
    %699 = vmatpush2.xpose.msra.mxu0 0.0
    %700 = vmatprep.subr.mxu0 0.0
    %701 = vmatpush2.xpose.msra.mxu0 0.0
    %702 = vmatprep.subr.mxu0 0.0
    %703 = vmatpush2.xpose.msra.mxu0 0.0
    %704 = vmatprep.subr.mxu0 0.0
    %705 = vmatpush2.xpose.msra.mxu0 0.0
    %706 = vmatprep.subr.mxu0 0.0
    %707 = vmatpush2.xpose.msra.mxu0 0.0
    %708 = vmatprep.subr.mxu0 0.0
    %709 = vmatpush2.xpose.msra.mxu0 0.0
    %710 = vmatprep.subr.mxu0 0.0
    %711 = vmatpush2.xpose.msra.mxu0 0.0
    %712 = vmatprep.subr.mxu0 0.0
    %713 = vmatpush2.xpose.msra.mxu0 0.0
    %714 = vmatprep.subr.mxu0 0.0
    %715 = vmatpush2.xpose.msra.mxu0 0.0
    %716 = vmatprep.subr.mxu0 0.0
    %717 = vmatpush2.xpose.msra.mxu0 0.0
    %718 = vmatprep.mubr.f32.mxu0 0.0
    %719 = vmatmul.mubr.f32.gmra.mxu0 %v650
    %v720 = vpop.f32.mrf.mxu0
    %v721 = vadd.f32 %v33, %v720
    %v722 = vpop.f32.mrf.mxu0
    %723 = vdwg.mxu0
    %v724 = vsel %vm163, %v643, -inf
    %725 = vmax.xlane.f32.xlu0 %v724
    %v726 = vpop.xlane.xlu0 %725
    %v727 = vsel %vm163, %v721, -inf
    %728 = vmax.xlane.f32.xlu0 %v727
    %v729 = vpop.xlane.xlu0 %728
    %v730 = vsub.f32 %v643, %v726
    %v731 = vsub.f32 %v721, %v729
    %v732 = vmul.f32 %v730, 1.442695
    %v733 = vpow.pop %v732
    %v734 = vmul.f32 %v731, 1.442695
    %v735 = vpow.pop %v734
    %v736 = vsel %vm163, %v733, 0.0
    %737 = vadd.xlane.f32.xlu0 %v736
    %v738 = vpop.xlane.xlu0 %737
    %v739 = vsel %vm163, %v735, 0.0
    %740 = vadd.xlane.f32.xlu0 %v739
    %v741 = vpop.xlane.xlu0 %740
    %v742 = vrcp.pop %v738
    %v743 = vrcp.pop %v741
    %v744 = vmul.f32 %v733, %v742
    %v745 = vmul.f32 %v735, %v743
    %746 = vrot.lane.b32.xlu0 %v146, 56
    %v747 = vpop.permute.xlu0 %746
    %748 = vrot.lane.b32.xlu0 %v151, 56
    %v749 = vpop.permute.xlu0 %748
    %v750 = vsel %vm163, %v747, 0
    %v752 = vsel %vm163, %v749, 0
    %754 = vmatprep.subr.mxu0 0.0
    %755 = vmatpush1.msra.mxu0 0.0
    %756 = vmatprep.subr.mxu0 0.0
    %757 = vmatpush1.msra.mxu0 0.0
    %758 = vmatprep.subr.mxu0 0.0
    %759 = vmatpush1.msra.mxu0 0.0
    %760 = vmatprep.subr.mxu0 0.0
    %761 = vmatpush1.msra.mxu0 0.0
    %762 = vmatprep.subr.mxu0 0.0
    %763 = vmatpush1.msra.mxu0 0.0
    %764 = vmatprep.subr.mxu0 0.0
    %765 = vmatpush1.msra.mxu0 0.0
    %766 = vmatprep.subr.mxu0 0.0
    %767 = vmatpush1.msra.mxu0 0.0
    %768 = vmatprep.subr.mxu0 0.0
    %769 = vmatpush1.msra.mxu0 0.0
    %770 = vmatprep.subr.mxu0 0.0
    %771 = vmatpush1.msra.mxu0 0.0
    %772 = vmatprep.subr.mxu0 0.0
    %773 = vmatpush1.msra.mxu0 0.0
    %774 = vmatprep.subr.mxu0 0.0
    %775 = vmatpush1.msra.mxu0 0.0
    %776 = vmatprep.subr.mxu0 0.0
    %777 = vmatpush1.msra.mxu0 0.0
    %778 = vmatprep.subr.mxu0 0.0
    %779 = vmatpush1.msra.mxu0 0.0
    %780 = vmatprep.subr.mxu0 0.0
    %781 = vmatpush1.msra.mxu0 0.0
    %782 = vmatprep.subr.mxu0 0.0
    %783 = vmatpush1.msra.mxu0 0.0
    %784 = vmatprep.subr.mxu0 0.0
    %785 = vmatpush1.msra.mxu0 %v39
    %786 = vmatprep.subr.mxu0 0.0
    %787 = vmatpush2.msra.mxu0 0.0
    %788 = vmatprep.subr.mxu0 0.0
    %789 = vmatpush2.msra.mxu0 0.0
    %790 = vmatprep.subr.mxu0 0.0
    %791 = vmatpush2.msra.mxu0 0.0
    %792 = vmatprep.subr.mxu0 0.0
    %793 = vmatpush2.msra.mxu0 0.0
    %794 = vmatprep.subr.mxu0 0.0
    %795 = vmatpush2.msra.mxu0 0.0
    %796 = vmatprep.subr.mxu0 0.0
    %797 = vmatpush2.msra.mxu0 0.0
    %798 = vmatprep.subr.mxu0 0.0
    %799 = vmatpush2.msra.mxu0 0.0
    %800 = vmatprep.subr.mxu0 0.0
    %801 = vmatpush2.msra.mxu0 0.0
    %802 = vmatprep.subr.mxu0 0.0
    %803 = vmatpush2.msra.mxu0 0.0
    %804 = vmatprep.subr.mxu0 0.0
    %805 = vmatpush2.msra.mxu0 0.0
    %806 = vmatprep.subr.mxu0 0.0
    %807 = vmatpush2.msra.mxu0 0.0
    %808 = vmatprep.subr.mxu0 0.0
    %809 = vmatpush2.msra.mxu0 0.0
    %810 = vmatprep.subr.mxu0 0.0
    %811 = vmatpush2.msra.mxu0 0.0
    %812 = vmatprep.subr.mxu0 0.0
    %813 = vmatpush2.msra.mxu0 0.0
    %814 = vmatprep.subr.mxu0 0.0
    %815 = vmatpush2.msra.mxu0 0.0
    %816 = vmatprep.subr.mxu0 0.0
    %817 = vmatpush2.msra.mxu0 0.0
    %818 = vmatprep.mubr.f32.mxu0 0.0
    %819 = vmatmul.mubr.f32.gmra.mxu0 %v750
    %v820 = vpop.f32.mrf.mxu0
    %v821 = vadd.f32 0.0, %v820
    %v822 = vpop.f32.mrf.mxu0
    %823 = vmatprep.mubr.f32.mxu0 0.0
    %824 = vmatmul.mubr.f32.gmra.mxu0 %v752
    %v825 = vpop.f32.mrf.mxu0
    %v826 = vadd.f32 0.0, %v825
    %v827 = vpop.f32.mrf.mxu0
    %828 = vdwg.mxu0
    %v830 = vsel %vm163, %v744, 0
    %832 = vmatprep.subr.mxu0 0.0
    %833 = vmatpush1.msra.mxu0 0.0
    %834 = vmatprep.subr.mxu0 0.0
    %835 = vmatpush1.msra.mxu0 0.0
    %836 = vmatprep.subr.mxu0 0.0
    %837 = vmatpush1.msra.mxu0 0.0
    %838 = vmatprep.subr.mxu0 0.0
    %839 = vmatpush1.msra.mxu0 0.0
    %840 = vmatprep.subr.mxu0 0.0
    %841 = vmatpush1.msra.mxu0 0.0
    %842 = vmatprep.subr.mxu0 0.0
    %843 = vmatpush1.msra.mxu0 0.0
    %844 = vmatprep.subr.mxu0 0.0
    %845 = vmatpush1.msra.mxu0 0.0
    %846 = vmatprep.subr.mxu0 0.0
    %847 = vmatpush1.msra.mxu0 0.0
    %848 = vmatprep.subr.mxu0 0.0
    %849 = vmatpush1.msra.mxu0 0.0
    %850 = vmatprep.subr.mxu0 0.0
    %851 = vmatpush1.msra.mxu0 0.0
    %852 = vmatprep.subr.mxu0 0.0
    %853 = vmatpush1.msra.mxu0 0.0
    %854 = vmatprep.subr.mxu0 0.0
    %855 = vmatpush1.msra.mxu0 0.0
    %856 = vmatprep.subr.mxu0 0.0
    %857 = vmatpush1.msra.mxu0 0.0
    %858 = vmatprep.subr.mxu0 0.0
    %859 = vmatpush1.msra.mxu0 0.0
    %860 = vmatprep.subr.mxu0 0.0
    %861 = vmatpush1.msra.mxu0 0.0
    %862 = vmatprep.subr.mxu0 0.0
    %863 = vmatpush1.msra.mxu0 %v821
    %864 = vmatprep.subr.mxu0 0.0
    %865 = vmatpush2.msra.mxu0 0.0
    %866 = vmatprep.subr.mxu0 0.0
    %867 = vmatpush2.msra.mxu0 0.0
    %868 = vmatprep.subr.mxu0 0.0
    %869 = vmatpush2.msra.mxu0 0.0
    %870 = vmatprep.subr.mxu0 0.0
    %871 = vmatpush2.msra.mxu0 0.0
    %872 = vmatprep.subr.mxu0 0.0
    %873 = vmatpush2.msra.mxu0 0.0
    %874 = vmatprep.subr.mxu0 0.0
    %875 = vmatpush2.msra.mxu0 0.0
    %876 = vmatprep.subr.mxu0 0.0
    %877 = vmatpush2.msra.mxu0 0.0
    %878 = vmatprep.subr.mxu0 0.0
    %879 = vmatpush2.msra.mxu0 0.0
    %880 = vmatprep.subr.mxu0 0.0
    %881 = vmatpush2.msra.mxu0 0.0
    %882 = vmatprep.subr.mxu0 0.0
    %883 = vmatpush2.msra.mxu0 0.0
    %884 = vmatprep.subr.mxu0 0.0
    %885 = vmatpush2.msra.mxu0 0.0
    %886 = vmatprep.subr.mxu0 0.0
    %887 = vmatpush2.msra.mxu0 0.0
    %888 = vmatprep.subr.mxu0 0.0
    %889 = vmatpush2.msra.mxu0 0.0
    %890 = vmatprep.subr.mxu0 0.0
    %891 = vmatpush2.msra.mxu0 0.0
    %892 = vmatprep.subr.mxu0 0.0
    %893 = vmatpush2.msra.mxu0 0.0
    %894 = vmatprep.subr.mxu0 0.0
    %895 = vmatpush2.msra.mxu0 0.0
    %896 = vmatprep.mubr.f32.mxu0 0.0
    %897 = vmatmul.mubr.f32.gmra.mxu0 %v830
    %v898 = vpop.f32.mrf.mxu0
    %v899 = vadd.f32 0.0, %v898
    %v900 = vpop.f32.mrf.mxu0
    %901 = vdwg.mxu0
    %v903 = vsel %vm163, %v745, 0
    %905 = vmatprep.subr.mxu0 0.0
    %906 = vmatpush1.msra.mxu0 0.0
    %907 = vmatprep.subr.mxu0 0.0
    %908 = vmatpush1.msra.mxu0 0.0
    %909 = vmatprep.subr.mxu0 0.0
    %910 = vmatpush1.msra.mxu0 0.0
    %911 = vmatprep.subr.mxu0 0.0
    %912 = vmatpush1.msra.mxu0 0.0
    %913 = vmatprep.subr.mxu0 0.0
    %914 = vmatpush1.msra.mxu0 0.0
    %915 = vmatprep.subr.mxu0 0.0
    %916 = vmatpush1.msra.mxu0 0.0
    %917 = vmatprep.subr.mxu0 0.0
    %918 = vmatpush1.msra.mxu0 0.0
    %919 = vmatprep.subr.mxu0 0.0
    %920 = vmatpush1.msra.mxu0 0.0
    %921 = vmatprep.subr.mxu0 0.0
    %922 = vmatpush1.msra.mxu0 0.0
    %923 = vmatprep.subr.mxu0 0.0
    %924 = vmatpush1.msra.mxu0 0.0
    %925 = vmatprep.subr.mxu0 0.0
    %926 = vmatpush1.msra.mxu0 0.0
    %927 = vmatprep.subr.mxu0 0.0
    %928 = vmatpush1.msra.mxu0 0.0
    %929 = vmatprep.subr.mxu0 0.0
    %930 = vmatpush1.msra.mxu0 0.0
    %931 = vmatprep.subr.mxu0 0.0
    %932 = vmatpush1.msra.mxu0 0.0
    %933 = vmatprep.subr.mxu0 0.0
    %934 = vmatpush1.msra.mxu0 0.0
    %935 = vmatprep.subr.mxu0 0.0
    %936 = vmatpush1.msra.mxu0 %v826
    %937 = vmatprep.subr.mxu0 0.0
    %938 = vmatpush2.msra.mxu0 0.0
    %939 = vmatprep.subr.mxu0 0.0
    %940 = vmatpush2.msra.mxu0 0.0
    %941 = vmatprep.subr.mxu0 0.0
    %942 = vmatpush2.msra.mxu0 0.0
    %943 = vmatprep.subr.mxu0 0.0
    %944 = vmatpush2.msra.mxu0 0.0
    %945 = vmatprep.subr.mxu0 0.0
    %946 = vmatpush2.msra.mxu0 0.0
    %947 = vmatprep.subr.mxu0 0.0
    %948 = vmatpush2.msra.mxu0 0.0
    %949 = vmatprep.subr.mxu0 0.0
    %950 = vmatpush2.msra.mxu0 0.0
    %951 = vmatprep.subr.mxu0 0.0
    %952 = vmatpush2.msra.mxu0 0.0
    %953 = vmatprep.subr.mxu0 0.0
    %954 = vmatpush2.msra.mxu0 0.0
    %955 = vmatprep.subr.mxu0 0.0
    %956 = vmatpush2.msra.mxu0 0.0
    %957 = vmatprep.subr.mxu0 0.0
    %958 = vmatpush2.msra.mxu0 0.0
    %959 = vmatprep.subr.mxu0 0.0
    %960 = vmatpush2.msra.mxu0 0.0
    %961 = vmatprep.subr.mxu0 0.0
    %962 = vmatpush2.msra.mxu0 0.0
    %963 = vmatprep.subr.mxu0 0.0
    %964 = vmatpush2.msra.mxu0 0.0
    %965 = vmatprep.subr.mxu0 0.0
    %966 = vmatpush2.msra.mxu0 0.0
    %967 = vmatprep.subr.mxu0 0.0
    %968 = vmatpush2.msra.mxu0 0.0
    %969 = vmatprep.mubr.f32.mxu0 0.0
    %970 = vmatmul.mubr.f32.gmra.mxu0 %v903
    %v971 = vpop.f32.mrf.mxu0
    %v972 = vadd.f32 0.0, %v971
    %v973 = vpop.f32.mrf.mxu0
    %974 = vdwg.mxu0
    %v975 = vadd.f32 %v566, %v899
    %v976 = vadd.f32 %v567, %v972
    %977 = vrot.lane.b32.xlu0 %v146, 112
    %v978 = vpop.permute.xlu0 %977
    %979 = vrot.lane.b32.xlu0 %v146, 80
    %v980 = vpop.permute.xlu0 %979
    %v981 = vsel %vm163, %v978, 0
    %v983 = vsel %vm163, %v980, 0
    %985 = vmatprep.subr.mxu0 0.0
    %986 = vmatpush1.xpose.msra.mxu0 0.0
    %987 = vmatprep.subr.mxu0 0.0
    %988 = vmatpush1.xpose.msra.mxu0 0.0
    %989 = vmatprep.subr.mxu0 0.0
    %990 = vmatpush1.xpose.msra.mxu0 0.0
    %991 = vmatprep.subr.mxu0 0.0
    %992 = vmatpush1.xpose.msra.mxu0 0.0
    %993 = vmatprep.subr.mxu0 0.0
    %994 = vmatpush1.xpose.msra.mxu0 0.0
    %995 = vmatprep.subr.mxu0 0.0
    %996 = vmatpush1.xpose.msra.mxu0 0.0
    %997 = vmatprep.subr.mxu0 0.0
    %998 = vmatpush1.xpose.msra.mxu0 0.0
    %999 = vmatprep.subr.mxu0 0.0
    %1000 = vmatpush1.xpose.msra.mxu0 0.0
    %1001 = vmatprep.subr.mxu0 0.0
    %1002 = vmatpush1.xpose.msra.mxu0 0.0
    %1003 = vmatprep.subr.mxu0 0.0
    %1004 = vmatpush1.xpose.msra.mxu0 0.0
    %1005 = vmatprep.subr.mxu0 0.0
    %1006 = vmatpush1.xpose.msra.mxu0 0.0
    %1007 = vmatprep.subr.mxu0 0.0
    %1008 = vmatpush1.xpose.msra.mxu0 0.0
    %1009 = vmatprep.subr.mxu0 0.0
    %1010 = vmatpush1.xpose.msra.mxu0 0.0
    %1011 = vmatprep.subr.mxu0 0.0
    %1012 = vmatpush1.xpose.msra.mxu0 0.0
    %1013 = vmatprep.subr.mxu0 0.0
    %1014 = vmatpush1.xpose.msra.mxu0 0.0
    %1015 = vmatprep.subr.mxu0 0.0
    %1016 = vmatpush1.xpose.msra.mxu0 %v983
    %1017 = vmatprep.subr.mxu0 0.0
    %1018 = vmatpush2.xpose.msra.mxu0 0.0
    %1019 = vmatprep.subr.mxu0 0.0
    %1020 = vmatpush2.xpose.msra.mxu0 0.0
    %1021 = vmatprep.subr.mxu0 0.0
    %1022 = vmatpush2.xpose.msra.mxu0 0.0
    %1023 = vmatprep.subr.mxu0 0.0
    %1024 = vmatpush2.xpose.msra.mxu0 0.0
    %1025 = vmatprep.subr.mxu0 0.0
    %1026 = vmatpush2.xpose.msra.mxu0 0.0
    %1027 = vmatprep.subr.mxu0 0.0
    %1028 = vmatpush2.xpose.msra.mxu0 0.0
    %1029 = vmatprep.subr.mxu0 0.0
    %1030 = vmatpush2.xpose.msra.mxu0 0.0
    %1031 = vmatprep.subr.mxu0 0.0
    %1032 = vmatpush2.xpose.msra.mxu0 0.0
    %1033 = vmatprep.subr.mxu0 0.0
    %1034 = vmatpush2.xpose.msra.mxu0 0.0
    %1035 = vmatprep.subr.mxu0 0.0
    %1036 = vmatpush2.xpose.msra.mxu0 0.0
    %1037 = vmatprep.subr.mxu0 0.0
    %1038 = vmatpush2.xpose.msra.mxu0 0.0
    %1039 = vmatprep.subr.mxu0 0.0
    %1040 = vmatpush2.xpose.msra.mxu0 0.0
    %1041 = vmatprep.subr.mxu0 0.0
    %1042 = vmatpush2.xpose.msra.mxu0 0.0
    %1043 = vmatprep.subr.mxu0 0.0
    %1044 = vmatpush2.xpose.msra.mxu0 0.0
    %1045 = vmatprep.subr.mxu0 0.0
    %1046 = vmatpush2.xpose.msra.mxu0 0.0
    %1047 = vmatprep.subr.mxu0 0.0
    %1048 = vmatpush2.xpose.msra.mxu0 0.0
    %1049 = vmatprep.mubr.f32.mxu0 0.0
    %1050 = vmatmul.mubr.f32.gmra.mxu0 %v981
    %v1051 = vpop.f32.mrf.mxu0
    %v1052 = vadd.f32 %v32, %v1051
    %v1053 = vpop.f32.mrf.mxu0
    %1054 = vdwg.mxu0
    %1055 = vrot.lane.b32.xlu0 %v151, 112
    %v1056 = vpop.permute.xlu0 %1055
    %1057 = vrot.lane.b32.xlu0 %v151, 80
    %v1058 = vpop.permute.xlu0 %1057
    %v1059 = vsel %vm163, %v1056, 0
    %v1061 = vsel %vm163, %v1058, 0
    %1063 = vmatprep.subr.mxu0 0.0
    %1064 = vmatpush1.xpose.msra.mxu0 0.0
    %1065 = vmatprep.subr.mxu0 0.0
    %1066 = vmatpush1.xpose.msra.mxu0 0.0
    %1067 = vmatprep.subr.mxu0 0.0
    %1068 = vmatpush1.xpose.msra.mxu0 0.0
    %1069 = vmatprep.subr.mxu0 0.0
    %1070 = vmatpush1.xpose.msra.mxu0 0.0
    %1071 = vmatprep.subr.mxu0 0.0
    %1072 = vmatpush1.xpose.msra.mxu0 0.0
    %1073 = vmatprep.subr.mxu0 0.0
    %1074 = vmatpush1.xpose.msra.mxu0 0.0
    %1075 = vmatprep.subr.mxu0 0.0
    %1076 = vmatpush1.xpose.msra.mxu0 0.0
    %1077 = vmatprep.subr.mxu0 0.0
    %1078 = vmatpush1.xpose.msra.mxu0 0.0
    %1079 = vmatprep.subr.mxu0 0.0
    %1080 = vmatpush1.xpose.msra.mxu0 0.0
    %1081 = vmatprep.subr.mxu0 0.0
    %1082 = vmatpush1.xpose.msra.mxu0 0.0
    %1083 = vmatprep.subr.mxu0 0.0
    %1084 = vmatpush1.xpose.msra.mxu0 0.0
    %1085 = vmatprep.subr.mxu0 0.0
    %1086 = vmatpush1.xpose.msra.mxu0 0.0
    %1087 = vmatprep.subr.mxu0 0.0
    %1088 = vmatpush1.xpose.msra.mxu0 0.0
    %1089 = vmatprep.subr.mxu0 0.0
    %1090 = vmatpush1.xpose.msra.mxu0 0.0
    %1091 = vmatprep.subr.mxu0 0.0
    %1092 = vmatpush1.xpose.msra.mxu0 0.0
    %1093 = vmatprep.subr.mxu0 0.0
    %1094 = vmatpush1.xpose.msra.mxu0 %v1061
    %1095 = vmatprep.subr.mxu0 0.0
    %1096 = vmatpush2.xpose.msra.mxu0 0.0
    %1097 = vmatprep.subr.mxu0 0.0
    %1098 = vmatpush2.xpose.msra.mxu0 0.0
    %1099 = vmatprep.subr.mxu0 0.0
    %1100 = vmatpush2.xpose.msra.mxu0 0.0
    %1101 = vmatprep.subr.mxu0 0.0
    %1102 = vmatpush2.xpose.msra.mxu0 0.0
    %1103 = vmatprep.subr.mxu0 0.0
    %1104 = vmatpush2.xpose.msra.mxu0 0.0
    %1105 = vmatprep.subr.mxu0 0.0
    %1106 = vmatpush2.xpose.msra.mxu0 0.0
    %1107 = vmatprep.subr.mxu0 0.0
    %1108 = vmatpush2.xpose.msra.mxu0 0.0
    %1109 = vmatprep.subr.mxu0 0.0
    %1110 = vmatpush2.xpose.msra.mxu0 0.0
    %1111 = vmatprep.subr.mxu0 0.0
    %1112 = vmatpush2.xpose.msra.mxu0 0.0
    %1113 = vmatprep.subr.mxu0 0.0
    %1114 = vmatpush2.xpose.msra.mxu0 0.0
    %1115 = vmatprep.subr.mxu0 0.0
    %1116 = vmatpush2.xpose.msra.mxu0 0.0
    %1117 = vmatprep.subr.mxu0 0.0
    %1118 = vmatpush2.xpose.msra.mxu0 0.0
    %1119 = vmatprep.subr.mxu0 0.0
    %1120 = vmatpush2.xpose.msra.mxu0 0.0
    %1121 = vmatprep.subr.mxu0 0.0
    %1122 = vmatpush2.xpose.msra.mxu0 0.0
    %1123 = vmatprep.subr.mxu0 0.0
    %1124 = vmatpush2.xpose.msra.mxu0 0.0
    %1125 = vmatprep.subr.mxu0 0.0
    %1126 = vmatpush2.xpose.msra.mxu0 0.0
    %1127 = vmatprep.mubr.f32.mxu0 0.0
    %1128 = vmatmul.mubr.f32.gmra.mxu0 %v1059
    %v1129 = vpop.f32.mrf.mxu0
    %v1130 = vadd.f32 %v33, %v1129
    %v1131 = vpop.f32.mrf.mxu0
    %1132 = vdwg.mxu0
    %v1133 = vsel %vm163, %v1052, -inf
    %1134 = vmax.xlane.f32.xlu0 %v1133
    %v1135 = vpop.xlane.xlu0 %1134
    %v1136 = vsel %vm163, %v1130, -inf
    %1137 = vmax.xlane.f32.xlu0 %v1136
    %v1138 = vpop.xlane.xlu0 %1137
    %v1139 = vsub.f32 %v1052, %v1135
    %v1140 = vsub.f32 %v1130, %v1138
    %v1141 = vmul.f32 %v1139, 1.442695
    %v1142 = vpow.pop %v1141
    %v1143 = vmul.f32 %v1140, 1.442695
    %v1144 = vpow.pop %v1143
    %v1145 = vsel %vm163, %v1142, 0.0
    %1146 = vadd.xlane.f32.xlu0 %v1145
    %v1147 = vpop.xlane.xlu0 %1146
    %v1148 = vsel %vm163, %v1144, 0.0
    %1149 = vadd.xlane.f32.xlu0 %v1148
    %v1150 = vpop.xlane.xlu0 %1149
    %v1151 = vrcp.pop %v1147
    %v1152 = vrcp.pop %v1150
    %v1153 = vmul.f32 %v1142, %v1151
    %v1154 = vmul.f32 %v1144, %v1152
    %1155 = vrot.lane.b32.xlu0 %v146, 48
    %v1156 = vpop.permute.xlu0 %1155
    %1157 = vrot.lane.b32.xlu0 %v151, 48
    %v1158 = vpop.permute.xlu0 %1157
    %v1159 = vsel %vm163, %v1156, 0
    %v1161 = vsel %vm163, %v1158, 0
    %1163 = vmatprep.subr.mxu0 0.0
    %1164 = vmatpush1.msra.mxu0 0.0
    %1165 = vmatprep.subr.mxu0 0.0
    %1166 = vmatpush1.msra.mxu0 0.0
    %1167 = vmatprep.subr.mxu0 0.0
    %1168 = vmatpush1.msra.mxu0 0.0
    %1169 = vmatprep.subr.mxu0 0.0
    %1170 = vmatpush1.msra.mxu0 0.0
    %1171 = vmatprep.subr.mxu0 0.0
    %1172 = vmatpush1.msra.mxu0 0.0
    %1173 = vmatprep.subr.mxu0 0.0
    %1174 = vmatpush1.msra.mxu0 0.0
    %1175 = vmatprep.subr.mxu0 0.0
    %1176 = vmatpush1.msra.mxu0 0.0
    %1177 = vmatprep.subr.mxu0 0.0
    %1178 = vmatpush1.msra.mxu0 0.0
    %1179 = vmatprep.subr.mxu0 0.0
    %1180 = vmatpush1.msra.mxu0 0.0
    %1181 = vmatprep.subr.mxu0 0.0
    %1182 = vmatpush1.msra.mxu0 0.0
    %1183 = vmatprep.subr.mxu0 0.0
    %1184 = vmatpush1.msra.mxu0 0.0
    %1185 = vmatprep.subr.mxu0 0.0
    %1186 = vmatpush1.msra.mxu0 0.0
    %1187 = vmatprep.subr.mxu0 0.0
    %1188 = vmatpush1.msra.mxu0 0.0
    %1189 = vmatprep.subr.mxu0 0.0
    %1190 = vmatpush1.msra.mxu0 0.0
    %1191 = vmatprep.subr.mxu0 0.0
    %1192 = vmatpush1.msra.mxu0 0.0
    %1193 = vmatprep.subr.mxu0 0.0
    %1194 = vmatpush1.msra.mxu0 %v40
    %1195 = vmatprep.subr.mxu0 0.0
    %1196 = vmatpush2.msra.mxu0 0.0
    %1197 = vmatprep.subr.mxu0 0.0
    %1198 = vmatpush2.msra.mxu0 0.0
    %1199 = vmatprep.subr.mxu0 0.0
    %1200 = vmatpush2.msra.mxu0 0.0
    %1201 = vmatprep.subr.mxu0 0.0
    %1202 = vmatpush2.msra.mxu0 0.0
    %1203 = vmatprep.subr.mxu0 0.0
    %1204 = vmatpush2.msra.mxu0 0.0
    %1205 = vmatprep.subr.mxu0 0.0
    %1206 = vmatpush2.msra.mxu0 0.0
    %1207 = vmatprep.subr.mxu0 0.0
    %1208 = vmatpush2.msra.mxu0 0.0
    %1209 = vmatprep.subr.mxu0 0.0
    %1210 = vmatpush2.msra.mxu0 0.0
    %1211 = vmatprep.subr.mxu0 0.0
    %1212 = vmatpush2.msra.mxu0 0.0
    %1213 = vmatprep.subr.mxu0 0.0
    %1214 = vmatpush2.msra.mxu0 0.0
    %1215 = vmatprep.subr.mxu0 0.0
    %1216 = vmatpush2.msra.mxu0 0.0
    %1217 = vmatprep.subr.mxu0 0.0
    %1218 = vmatpush2.msra.mxu0 0.0
    %1219 = vmatprep.subr.mxu0 0.0
    %1220 = vmatpush2.msra.mxu0 0.0
    %1221 = vmatprep.subr.mxu0 0.0
    %1222 = vmatpush2.msra.mxu0 0.0
    %1223 = vmatprep.subr.mxu0 0.0
    %1224 = vmatpush2.msra.mxu0 0.0
    %1225 = vmatprep.subr.mxu0 0.0
    %1226 = vmatpush2.msra.mxu0 0.0
    %1227 = vmatprep.mubr.f32.mxu0 0.0
    %1228 = vmatmul.mubr.f32.gmra.mxu0 %v1159
    %v1229 = vpop.f32.mrf.mxu0
    %v1230 = vadd.f32 0.0, %v1229
    %v1231 = vpop.f32.mrf.mxu0
    %1232 = vmatprep.mubr.f32.mxu0 0.0
    %1233 = vmatmul.mubr.f32.gmra.mxu0 %v1161
    %v1234 = vpop.f32.mrf.mxu0
    %v1235 = vadd.f32 0.0, %v1234
    %v1236 = vpop.f32.mrf.mxu0
    %1237 = vdwg.mxu0
    %v1239 = vsel %vm163, %v1153, 0
    %1241 = vmatprep.subr.mxu0 0.0
    %1242 = vmatpush1.msra.mxu0 0.0
    %1243 = vmatprep.subr.mxu0 0.0
    %1244 = vmatpush1.msra.mxu0 0.0
    %1245 = vmatprep.subr.mxu0 0.0
    %1246 = vmatpush1.msra.mxu0 0.0
    %1247 = vmatprep.subr.mxu0 0.0
    %1248 = vmatpush1.msra.mxu0 0.0
    %1249 = vmatprep.subr.mxu0 0.0
    %1250 = vmatpush1.msra.mxu0 0.0
    %1251 = vmatprep.subr.mxu0 0.0
    %1252 = vmatpush1.msra.mxu0 0.0
    %1253 = vmatprep.subr.mxu0 0.0
    %1254 = vmatpush1.msra.mxu0 0.0
    %1255 = vmatprep.subr.mxu0 0.0
    %1256 = vmatpush1.msra.mxu0 0.0
    %1257 = vmatprep.subr.mxu0 0.0
    %1258 = vmatpush1.msra.mxu0 0.0
    %1259 = vmatprep.subr.mxu0 0.0
    %1260 = vmatpush1.msra.mxu0 0.0
    %1261 = vmatprep.subr.mxu0 0.0
    %1262 = vmatpush1.msra.mxu0 0.0
    %1263 = vmatprep.subr.mxu0 0.0
    %1264 = vmatpush1.msra.mxu0 0.0
    %1265 = vmatprep.subr.mxu0 0.0
    %1266 = vmatpush1.msra.mxu0 0.0
    %1267 = vmatprep.subr.mxu0 0.0
    %1268 = vmatpush1.msra.mxu0 0.0
    %1269 = vmatprep.subr.mxu0 0.0
    %1270 = vmatpush1.msra.mxu0 0.0
    %1271 = vmatprep.subr.mxu0 0.0
    %1272 = vmatpush1.msra.mxu0 %v1230
    %1273 = vmatprep.subr.mxu0 0.0
    %1274 = vmatpush2.msra.mxu0 0.0
    %1275 = vmatprep.subr.mxu0 0.0
    %1276 = vmatpush2.msra.mxu0 0.0
    %1277 = vmatprep.subr.mxu0 0.0
    %1278 = vmatpush2.msra.mxu0 0.0
    %1279 = vmatprep.subr.mxu0 0.0
    %1280 = vmatpush2.msra.mxu0 0.0
    %1281 = vmatprep.subr.mxu0 0.0
    %1282 = vmatpush2.msra.mxu0 0.0
    %1283 = vmatprep.subr.mxu0 0.0
    %1284 = vmatpush2.msra.mxu0 0.0
    %1285 = vmatprep.subr.mxu0 0.0
    %1286 = vmatpush2.msra.mxu0 0.0
    %1287 = vmatprep.subr.mxu0 0.0
    %1288 = vmatpush2.msra.mxu0 0.0
    %1289 = vmatprep.subr.mxu0 0.0
    %1290 = vmatpush2.msra.mxu0 0.0
    %1291 = vmatprep.subr.mxu0 0.0
    %1292 = vmatpush2.msra.mxu0 0.0
    %1293 = vmatprep.subr.mxu0 0.0
    %1294 = vmatpush2.msra.mxu0 0.0
    %1295 = vmatprep.subr.mxu0 0.0
    %1296 = vmatpush2.msra.mxu0 0.0
    %1297 = vmatprep.subr.mxu0 0.0
    %1298 = vmatpush2.msra.mxu0 0.0
    %1299 = vmatprep.subr.mxu0 0.0
    %1300 = vmatpush2.msra.mxu0 0.0
    %1301 = vmatprep.subr.mxu0 0.0
    %1302 = vmatpush2.msra.mxu0 0.0
    %1303 = vmatprep.subr.mxu0 0.0
    %1304 = vmatpush2.msra.mxu0 0.0
    %1305 = vmatprep.mubr.f32.mxu0 0.0
    %1306 = vmatmul.mubr.f32.gmra.mxu0 %v1239
    %v1307 = vpop.f32.mrf.mxu0
    %v1308 = vadd.f32 0.0, %v1307
    %v1309 = vpop.f32.mrf.mxu0
    %1310 = vdwg.mxu0
    %v1312 = vsel %vm163, %v1154, 0
    %1314 = vmatprep.subr.mxu0 0.0
    %1315 = vmatpush1.msra.mxu0 0.0
    %1316 = vmatprep.subr.mxu0 0.0
    %1317 = vmatpush1.msra.mxu0 0.0
    %1318 = vmatprep.subr.mxu0 0.0
    %1319 = vmatpush1.msra.mxu0 0.0
    %1320 = vmatprep.subr.mxu0 0.0
    %1321 = vmatpush1.msra.mxu0 0.0
    %1322 = vmatprep.subr.mxu0 0.0
    %1323 = vmatpush1.msra.mxu0 0.0
    %1324 = vmatprep.subr.mxu0 0.0
    %1325 = vmatpush1.msra.mxu0 0.0
    %1326 = vmatprep.subr.mxu0 0.0
    %1327 = vmatpush1.msra.mxu0 0.0
    %1328 = vmatprep.subr.mxu0 0.0
    %1329 = vmatpush1.msra.mxu0 0.0
    %1330 = vmatprep.subr.mxu0 0.0
    %1331 = vmatpush1.msra.mxu0 0.0
    %1332 = vmatprep.subr.mxu0 0.0
    %1333 = vmatpush1.msra.mxu0 0.0
    %1334 = vmatprep.subr.mxu0 0.0
    %1335 = vmatpush1.msra.mxu0 0.0
    %1336 = vmatprep.subr.mxu0 0.0
    %1337 = vmatpush1.msra.mxu0 0.0
    %1338 = vmatprep.subr.mxu0 0.0
    %1339 = vmatpush1.msra.mxu0 0.0
    %1340 = vmatprep.subr.mxu0 0.0
    %1341 = vmatpush1.msra.mxu0 0.0
    %1342 = vmatprep.subr.mxu0 0.0
    %1343 = vmatpush1.msra.mxu0 0.0
    %1344 = vmatprep.subr.mxu0 0.0
    %1345 = vmatpush1.msra.mxu0 %v1235
    %1346 = vmatprep.subr.mxu0 0.0
    %1347 = vmatpush2.msra.mxu0 0.0
    %1348 = vmatprep.subr.mxu0 0.0
    %1349 = vmatpush2.msra.mxu0 0.0
    %1350 = vmatprep.subr.mxu0 0.0
    %1351 = vmatpush2.msra.mxu0 0.0
    %1352 = vmatprep.subr.mxu0 0.0
    %1353 = vmatpush2.msra.mxu0 0.0
    %1354 = vmatprep.subr.mxu0 0.0
    %1355 = vmatpush2.msra.mxu0 0.0
    %1356 = vmatprep.subr.mxu0 0.0
    %1357 = vmatpush2.msra.mxu0 0.0
    %1358 = vmatprep.subr.mxu0 0.0
    %1359 = vmatpush2.msra.mxu0 0.0
    %1360 = vmatprep.subr.mxu0 0.0
    %1361 = vmatpush2.msra.mxu0 0.0
    %1362 = vmatprep.subr.mxu0 0.0
    %1363 = vmatpush2.msra.mxu0 0.0
    %1364 = vmatprep.subr.mxu0 0.0
    %1365 = vmatpush2.msra.mxu0 0.0
    %1366 = vmatprep.subr.mxu0 0.0
    %1367 = vmatpush2.msra.mxu0 0.0
    %1368 = vmatprep.subr.mxu0 0.0
    %1369 = vmatpush2.msra.mxu0 0.0
    %1370 = vmatprep.subr.mxu0 0.0
    %1371 = vmatpush2.msra.mxu0 0.0
    %1372 = vmatprep.subr.mxu0 0.0
    %1373 = vmatpush2.msra.mxu0 0.0
    %1374 = vmatprep.subr.mxu0 0.0
    %1375 = vmatpush2.msra.mxu0 0.0
    %1376 = vmatprep.subr.mxu0 0.0
    %1377 = vmatpush2.msra.mxu0 0.0
    %1378 = vmatprep.mubr.f32.mxu0 0.0
    %1379 = vmatmul.mubr.f32.gmra.mxu0 %v1312
    %v1380 = vpop.f32.mrf.mxu0
    %v1381 = vadd.f32 0.0, %v1380
    %v1382 = vpop.f32.mrf.mxu0
    %1383 = vdwg.mxu0
    %v1384 = vadd.f32 %v975, %v1308
    %v1385 = vadd.f32 %v976, %v1381
    %1386 = vrot.lane.b32.xlu0 %v146, 104
    %v1387 = vpop.permute.xlu0 %1386
    %1388 = vrot.lane.b32.xlu0 %v146, 72
    %v1389 = vpop.permute.xlu0 %1388
    %v1390 = vsel %vm163, %v1387, 0
    %v1392 = vsel %vm163, %v1389, 0
    %1394 = vmatprep.subr.mxu0 0.0
    %1395 = vmatpush1.xpose.msra.mxu0 0.0
    %1396 = vmatprep.subr.mxu0 0.0
    %1397 = vmatpush1.xpose.msra.mxu0 0.0
    %1398 = vmatprep.subr.mxu0 0.0
    %1399 = vmatpush1.xpose.msra.mxu0 0.0
    %1400 = vmatprep.subr.mxu0 0.0
    %1401 = vmatpush1.xpose.msra.mxu0 0.0
    %1402 = vmatprep.subr.mxu0 0.0
    %1403 = vmatpush1.xpose.msra.mxu0 0.0
    %1404 = vmatprep.subr.mxu0 0.0
    %1405 = vmatpush1.xpose.msra.mxu0 0.0
    %1406 = vmatprep.subr.mxu0 0.0
    %1407 = vmatpush1.xpose.msra.mxu0 0.0
    %1408 = vmatprep.subr.mxu0 0.0
    %1409 = vmatpush1.xpose.msra.mxu0 0.0
    %1410 = vmatprep.subr.mxu0 0.0
    %1411 = vmatpush1.xpose.msra.mxu0 0.0
    %1412 = vmatprep.subr.mxu0 0.0
    %1413 = vmatpush1.xpose.msra.mxu0 0.0
    %1414 = vmatprep.subr.mxu0 0.0
    %1415 = vmatpush1.xpose.msra.mxu0 0.0
    %1416 = vmatprep.subr.mxu0 0.0
    %1417 = vmatpush1.xpose.msra.mxu0 0.0
    %1418 = vmatprep.subr.mxu0 0.0
    %1419 = vmatpush1.xpose.msra.mxu0 0.0
    %1420 = vmatprep.subr.mxu0 0.0
    %1421 = vmatpush1.xpose.msra.mxu0 0.0
    %1422 = vmatprep.subr.mxu0 0.0
    %1423 = vmatpush1.xpose.msra.mxu0 0.0
    %1424 = vmatprep.subr.mxu0 0.0
    %1425 = vmatpush1.xpose.msra.mxu0 %v1392
    %1426 = vmatprep.subr.mxu0 0.0
    %1427 = vmatpush2.xpose.msra.mxu0 0.0
    %1428 = vmatprep.subr.mxu0 0.0
    %1429 = vmatpush2.xpose.msra.mxu0 0.0
    %1430 = vmatprep.subr.mxu0 0.0
    %1431 = vmatpush2.xpose.msra.mxu0 0.0
    %1432 = vmatprep.subr.mxu0 0.0
    %1433 = vmatpush2.xpose.msra.mxu0 0.0
    %1434 = vmatprep.subr.mxu0 0.0
    %1435 = vmatpush2.xpose.msra.mxu0 0.0
    %1436 = vmatprep.subr.mxu0 0.0
    %1437 = vmatpush2.xpose.msra.mxu0 0.0
    %1438 = vmatprep.subr.mxu0 0.0
    %1439 = vmatpush2.xpose.msra.mxu0 0.0
    %1440 = vmatprep.subr.mxu0 0.0
    %1441 = vmatpush2.xpose.msra.mxu0 0.0
    %1442 = vmatprep.subr.mxu0 0.0
    %1443 = vmatpush2.xpose.msra.mxu0 0.0
    %1444 = vmatprep.subr.mxu0 0.0
    %1445 = vmatpush2.xpose.msra.mxu0 0.0
    %1446 = vmatprep.subr.mxu0 0.0
    %1447 = vmatpush2.xpose.msra.mxu0 0.0
    %1448 = vmatprep.subr.mxu0 0.0
    %1449 = vmatpush2.xpose.msra.mxu0 0.0
    %1450 = vmatprep.subr.mxu0 0.0
    %1451 = vmatpush2.xpose.msra.mxu0 0.0
    %1452 = vmatprep.subr.mxu0 0.0
    %1453 = vmatpush2.xpose.msra.mxu0 0.0
    %1454 = vmatprep.subr.mxu0 0.0
    %1455 = vmatpush2.xpose.msra.mxu0 0.0
    %1456 = vmatprep.subr.mxu0 0.0
    %1457 = vmatpush2.xpose.msra.mxu0 0.0
    %1458 = vmatprep.mubr.f32.mxu0 0.0
    %1459 = vmatmul.mubr.f32.gmra.mxu0 %v1390
    %v1460 = vpop.f32.mrf.mxu0
    %v1461 = vadd.f32 %v32, %v1460
    %v1462 = vpop.f32.mrf.mxu0
    %1463 = vdwg.mxu0
    %1464 = vrot.lane.b32.xlu0 %v151, 104
    %v1465 = vpop.permute.xlu0 %1464
    %1466 = vrot.lane.b32.xlu0 %v151, 72
    %v1467 = vpop.permute.xlu0 %1466
    %v1468 = vsel %vm163, %v1465, 0
    %v1470 = vsel %vm163, %v1467, 0
    %1472 = vmatprep.subr.mxu0 0.0
    %1473 = vmatpush1.xpose.msra.mxu0 0.0
    %1474 = vmatprep.subr.mxu0 0.0
    %1475 = vmatpush1.xpose.msra.mxu0 0.0
    %1476 = vmatprep.subr.mxu0 0.0
    %1477 = vmatpush1.xpose.msra.mxu0 0.0
    %1478 = vmatprep.subr.mxu0 0.0
    %1479 = vmatpush1.xpose.msra.mxu0 0.0
    %1480 = vmatprep.subr.mxu0 0.0
    %1481 = vmatpush1.xpose.msra.mxu0 0.0
    %1482 = vmatprep.subr.mxu0 0.0
    %1483 = vmatpush1.xpose.msra.mxu0 0.0
    %1484 = vmatprep.subr.mxu0 0.0
    %1485 = vmatpush1.xpose.msra.mxu0 0.0
    %1486 = vmatprep.subr.mxu0 0.0
    %1487 = vmatpush1.xpose.msra.mxu0 0.0
    %1488 = vmatprep.subr.mxu0 0.0
    %1489 = vmatpush1.xpose.msra.mxu0 0.0
    %1490 = vmatprep.subr.mxu0 0.0
    %1491 = vmatpush1.xpose.msra.mxu0 0.0
    %1492 = vmatprep.subr.mxu0 0.0
    %1493 = vmatpush1.xpose.msra.mxu0 0.0
    %1494 = vmatprep.subr.mxu0 0.0
    %1495 = vmatpush1.xpose.msra.mxu0 0.0
    %1496 = vmatprep.subr.mxu0 0.0
    %1497 = vmatpush1.xpose.msra.mxu0 0.0
    %1498 = vmatprep.subr.mxu0 0.0
    %1499 = vmatpush1.xpose.msra.mxu0 0.0
    %1500 = vmatprep.subr.mxu0 0.0
    %1501 = vmatpush1.xpose.msra.mxu0 0.0
    %1502 = vmatprep.subr.mxu0 0.0
    %1503 = vmatpush1.xpose.msra.mxu0 %v1470
    %1504 = vmatprep.subr.mxu0 0.0
    %1505 = vmatpush2.xpose.msra.mxu0 0.0
    %1506 = vmatprep.subr.mxu0 0.0
    %1507 = vmatpush2.xpose.msra.mxu0 0.0
    %1508 = vmatprep.subr.mxu0 0.0
    %1509 = vmatpush2.xpose.msra.mxu0 0.0
    %1510 = vmatprep.subr.mxu0 0.0
    %1511 = vmatpush2.xpose.msra.mxu0 0.0
    %1512 = vmatprep.subr.mxu0 0.0
    %1513 = vmatpush2.xpose.msra.mxu0 0.0
    %1514 = vmatprep.subr.mxu0 0.0
    %1515 = vmatpush2.xpose.msra.mxu0 0.0
    %1516 = vmatprep.subr.mxu0 0.0
    %1517 = vmatpush2.xpose.msra.mxu0 0.0
    %1518 = vmatprep.subr.mxu0 0.0
    %1519 = vmatpush2.xpose.msra.mxu0 0.0
    %1520 = vmatprep.subr.mxu0 0.0
    %1521 = vmatpush2.xpose.msra.mxu0 0.0
    %1522 = vmatprep.subr.mxu0 0.0
    %1523 = vmatpush2.xpose.msra.mxu0 0.0
    %1524 = vmatprep.subr.mxu0 0.0
    %1525 = vmatpush2.xpose.msra.mxu0 0.0
    %1526 = vmatprep.subr.mxu0 0.0
    %1527 = vmatpush2.xpose.msra.mxu0 0.0
    %1528 = vmatprep.subr.mxu0 0.0
    %1529 = vmatpush2.xpose.msra.mxu0 0.0
    %1530 = vmatprep.subr.mxu0 0.0
    %1531 = vmatpush2.xpose.msra.mxu0 0.0
    %1532 = vmatprep.subr.mxu0 0.0
    %1533 = vmatpush2.xpose.msra.mxu0 0.0
    %1534 = vmatprep.subr.mxu0 0.0
    %1535 = vmatpush2.xpose.msra.mxu0 0.0
    %1536 = vmatprep.mubr.f32.mxu0 0.0
    %1537 = vmatmul.mubr.f32.gmra.mxu0 %v1468
    %v1538 = vpop.f32.mrf.mxu0
    %v1539 = vadd.f32 %v33, %v1538
    %v1540 = vpop.f32.mrf.mxu0
    %1541 = vdwg.mxu0
    %v1542 = vsel %vm163, %v1461, -inf
    %1543 = vmax.xlane.f32.xlu0 %v1542
    %v1544 = vpop.xlane.xlu0 %1543
    %v1545 = vsel %vm163, %v1539, -inf
    %1546 = vmax.xlane.f32.xlu0 %v1545
    %v1547 = vpop.xlane.xlu0 %1546
    %v1548 = vsub.f32 %v1461, %v1544
    %v1549 = vsub.f32 %v1539, %v1547
    %v1550 = vmul.f32 %v1548, 1.442695
    %v1551 = vpow.pop %v1550
    %v1552 = vmul.f32 %v1549, 1.442695
    %v1553 = vpow.pop %v1552
    %v1554 = vsel %vm163, %v1551, 0.0
    %1555 = vadd.xlane.f32.xlu0 %v1554
    %v1556 = vpop.xlane.xlu0 %1555
    %v1557 = vsel %vm163, %v1553, 0.0
    %1558 = vadd.xlane.f32.xlu0 %v1557
    %v1559 = vpop.xlane.xlu0 %1558
    %v1560 = vrcp.pop %v1556
    %v1561 = vrcp.pop %v1559
    %v1562 = vmul.f32 %v1551, %v1560
    %v1563 = vmul.f32 %v1553, %v1561
    %1564 = vrot.lane.b32.xlu0 %v146, 40
    %v1565 = vpop.permute.xlu0 %1564
    %1566 = vrot.lane.b32.xlu0 %v151, 40
    %v1567 = vpop.permute.xlu0 %1566
    %v1568 = vsel %vm163, %v1565, 0
    %v1570 = vsel %vm163, %v1567, 0
    %1572 = vmatprep.subr.mxu0 0.0
    %1573 = vmatpush1.msra.mxu0 0.0
    %1574 = vmatprep.subr.mxu0 0.0
    %1575 = vmatpush1.msra.mxu0 0.0
    %1576 = vmatprep.subr.mxu0 0.0
    %1577 = vmatpush1.msra.mxu0 0.0
    %1578 = vmatprep.subr.mxu0 0.0
    %1579 = vmatpush1.msra.mxu0 0.0
    %1580 = vmatprep.subr.mxu0 0.0
    %1581 = vmatpush1.msra.mxu0 0.0
    %1582 = vmatprep.subr.mxu0 0.0
    %1583 = vmatpush1.msra.mxu0 0.0
    %1584 = vmatprep.subr.mxu0 0.0
    %1585 = vmatpush1.msra.mxu0 0.0
    %1586 = vmatprep.subr.mxu0 0.0
    %1587 = vmatpush1.msra.mxu0 0.0
    %1588 = vmatprep.subr.mxu0 0.0
    %1589 = vmatpush1.msra.mxu0 0.0
    %1590 = vmatprep.subr.mxu0 0.0
    %1591 = vmatpush1.msra.mxu0 0.0
    %1592 = vmatprep.subr.mxu0 0.0
    %1593 = vmatpush1.msra.mxu0 0.0
    %1594 = vmatprep.subr.mxu0 0.0
    %1595 = vmatpush1.msra.mxu0 0.0
    %1596 = vmatprep.subr.mxu0 0.0
    %1597 = vmatpush1.msra.mxu0 0.0
    %1598 = vmatprep.subr.mxu0 0.0
    %1599 = vmatpush1.msra.mxu0 0.0
    %1600 = vmatprep.subr.mxu0 0.0
    %1601 = vmatpush1.msra.mxu0 0.0
    %1602 = vmatprep.subr.mxu0 0.0
    %1603 = vmatpush1.msra.mxu0 %v41
    %1604 = vmatprep.subr.mxu0 0.0
    %1605 = vmatpush2.msra.mxu0 0.0
    %1606 = vmatprep.subr.mxu0 0.0
    %1607 = vmatpush2.msra.mxu0 0.0
    %1608 = vmatprep.subr.mxu0 0.0
    %1609 = vmatpush2.msra.mxu0 0.0
    %1610 = vmatprep.subr.mxu0 0.0
    %1611 = vmatpush2.msra.mxu0 0.0
    %1612 = vmatprep.subr.mxu0 0.0
    %1613 = vmatpush2.msra.mxu0 0.0
    %1614 = vmatprep.subr.mxu0 0.0
    %1615 = vmatpush2.msra.mxu0 0.0
    %1616 = vmatprep.subr.mxu0 0.0
    %1617 = vmatpush2.msra.mxu0 0.0
    %1618 = vmatprep.subr.mxu0 0.0
    %1619 = vmatpush2.msra.mxu0 0.0
    %1620 = vmatprep.subr.mxu0 0.0
    %1621 = vmatpush2.msra.mxu0 0.0
    %1622 = vmatprep.subr.mxu0 0.0
    %1623 = vmatpush2.msra.mxu0 0.0
    %1624 = vmatprep.subr.mxu0 0.0
    %1625 = vmatpush2.msra.mxu0 0.0
    %1626 = vmatprep.subr.mxu0 0.0
    %1627 = vmatpush2.msra.mxu0 0.0
    %1628 = vmatprep.subr.mxu0 0.0
    %1629 = vmatpush2.msra.mxu0 0.0
    %1630 = vmatprep.subr.mxu0 0.0
    %1631 = vmatpush2.msra.mxu0 0.0
    %1632 = vmatprep.subr.mxu0 0.0
    %1633 = vmatpush2.msra.mxu0 0.0
    %1634 = vmatprep.subr.mxu0 0.0
    %1635 = vmatpush2.msra.mxu0 0.0
    %1636 = vmatprep.mubr.f32.mxu0 0.0
    %1637 = vmatmul.mubr.f32.gmra.mxu0 %v1568
    %v1638 = vpop.f32.mrf.mxu0
    %v1639 = vadd.f32 0.0, %v1638
    %v1640 = vpop.f32.mrf.mxu0
    %1641 = vmatprep.mubr.f32.mxu0 0.0
    %1642 = vmatmul.mubr.f32.gmra.mxu0 %v1570
    %v1643 = vpop.f32.mrf.mxu0
    %v1644 = vadd.f32 0.0, %v1643
    %v1645 = vpop.f32.mrf.mxu0
    %1646 = vdwg.mxu0
    %v1648 = vsel %vm163, %v1562, 0
    %1650 = vmatprep.subr.mxu0 0.0
    %1651 = vmatpush1.msra.mxu0 0.0
    %1652 = vmatprep.subr.mxu0 0.0
    %1653 = vmatpush1.msra.mxu0 0.0
    %1654 = vmatprep.subr.mxu0 0.0
    %1655 = vmatpush1.msra.mxu0 0.0
    %1656 = vmatprep.subr.mxu0 0.0
    %1657 = vmatpush1.msra.mxu0 0.0
    %1658 = vmatprep.subr.mxu0 0.0
    %1659 = vmatpush1.msra.mxu0 0.0
    %1660 = vmatprep.subr.mxu0 0.0
    %1661 = vmatpush1.msra.mxu0 0.0
    %1662 = vmatprep.subr.mxu0 0.0
    %1663 = vmatpush1.msra.mxu0 0.0
    %1664 = vmatprep.subr.mxu0 0.0
    %1665 = vmatpush1.msra.mxu0 0.0
    %1666 = vmatprep.subr.mxu0 0.0
    %1667 = vmatpush1.msra.mxu0 0.0
    %1668 = vmatprep.subr.mxu0 0.0
    %1669 = vmatpush1.msra.mxu0 0.0
    %1670 = vmatprep.subr.mxu0 0.0
    %1671 = vmatpush1.msra.mxu0 0.0
    %1672 = vmatprep.subr.mxu0 0.0
    %1673 = vmatpush1.msra.mxu0 0.0
    %1674 = vmatprep.subr.mxu0 0.0
    %1675 = vmatpush1.msra.mxu0 0.0
    %1676 = vmatprep.subr.mxu0 0.0
    %1677 = vmatpush1.msra.mxu0 0.0
    %1678 = vmatprep.subr.mxu0 0.0
    %1679 = vmatpush1.msra.mxu0 0.0
    %1680 = vmatprep.subr.mxu0 0.0
    %1681 = vmatpush1.msra.mxu0 %v1639
    %1682 = vmatprep.subr.mxu0 0.0
    %1683 = vmatpush2.msra.mxu0 0.0
    %1684 = vmatprep.subr.mxu0 0.0
    %1685 = vmatpush2.msra.mxu0 0.0
    %1686 = vmatprep.subr.mxu0 0.0
    %1687 = vmatpush2.msra.mxu0 0.0
    %1688 = vmatprep.subr.mxu0 0.0
    %1689 = vmatpush2.msra.mxu0 0.0
    %1690 = vmatprep.subr.mxu0 0.0
    %1691 = vmatpush2.msra.mxu0 0.0
    %1692 = vmatprep.subr.mxu0 0.0
    %1693 = vmatpush2.msra.mxu0 0.0
    %1694 = vmatprep.subr.mxu0 0.0
    %1695 = vmatpush2.msra.mxu0 0.0
    %1696 = vmatprep.subr.mxu0 0.0
    %1697 = vmatpush2.msra.mxu0 0.0
    %1698 = vmatprep.subr.mxu0 0.0
    %1699 = vmatpush2.msra.mxu0 0.0
    %1700 = vmatprep.subr.mxu0 0.0
    %1701 = vmatpush2.msra.mxu0 0.0
    %1702 = vmatprep.subr.mxu0 0.0
    %1703 = vmatpush2.msra.mxu0 0.0
    %1704 = vmatprep.subr.mxu0 0.0
    %1705 = vmatpush2.msra.mxu0 0.0
    %1706 = vmatprep.subr.mxu0 0.0
    %1707 = vmatpush2.msra.mxu0 0.0
    %1708 = vmatprep.subr.mxu0 0.0
    %1709 = vmatpush2.msra.mxu0 0.0
    %1710 = vmatprep.subr.mxu0 0.0
    %1711 = vmatpush2.msra.mxu0 0.0
    %1712 = vmatprep.subr.mxu0 0.0
    %1713 = vmatpush2.msra.mxu0 0.0
    %1714 = vmatprep.mubr.f32.mxu0 0.0
    %1715 = vmatmul.mubr.f32.gmra.mxu0 %v1648
    %v1716 = vpop.f32.mrf.mxu0
    %v1717 = vadd.f32 0.0, %v1716
    %v1718 = vpop.f32.mrf.mxu0
    %1719 = vdwg.mxu0
    %v1721 = vsel %vm163, %v1563, 0
    %1723 = vmatprep.subr.mxu0 0.0
    %1724 = vmatpush1.msra.mxu0 0.0
    %1725 = vmatprep.subr.mxu0 0.0
    %1726 = vmatpush1.msra.mxu0 0.0
    %1727 = vmatprep.subr.mxu0 0.0
    %1728 = vmatpush1.msra.mxu0 0.0
    %1729 = vmatprep.subr.mxu0 0.0
    %1730 = vmatpush1.msra.mxu0 0.0
    %1731 = vmatprep.subr.mxu0 0.0
    %1732 = vmatpush1.msra.mxu0 0.0
    %1733 = vmatprep.subr.mxu0 0.0
    %1734 = vmatpush1.msra.mxu0 0.0
    %1735 = vmatprep.subr.mxu0 0.0
    %1736 = vmatpush1.msra.mxu0 0.0
    %1737 = vmatprep.subr.mxu0 0.0
    %1738 = vmatpush1.msra.mxu0 0.0
    %1739 = vmatprep.subr.mxu0 0.0
    %1740 = vmatpush1.msra.mxu0 0.0
    %1741 = vmatprep.subr.mxu0 0.0
    %1742 = vmatpush1.msra.mxu0 0.0
    %1743 = vmatprep.subr.mxu0 0.0
    %1744 = vmatpush1.msra.mxu0 0.0
    %1745 = vmatprep.subr.mxu0 0.0
    %1746 = vmatpush1.msra.mxu0 0.0
    %1747 = vmatprep.subr.mxu0 0.0
    %1748 = vmatpush1.msra.mxu0 0.0
    %1749 = vmatprep.subr.mxu0 0.0
    %1750 = vmatpush1.msra.mxu0 0.0
    %1751 = vmatprep.subr.mxu0 0.0
    %1752 = vmatpush1.msra.mxu0 0.0
    %1753 = vmatprep.subr.mxu0 0.0
    %1754 = vmatpush1.msra.mxu0 %v1644
    %1755 = vmatprep.subr.mxu0 0.0
    %1756 = vmatpush2.msra.mxu0 0.0
    %1757 = vmatprep.subr.mxu0 0.0
    %1758 = vmatpush2.msra.mxu0 0.0
    %1759 = vmatprep.subr.mxu0 0.0
    %1760 = vmatpush2.msra.mxu0 0.0
    %1761 = vmatprep.subr.mxu0 0.0
    %1762 = vmatpush2.msra.mxu0 0.0
    %1763 = vmatprep.subr.mxu0 0.0
    %1764 = vmatpush2.msra.mxu0 0.0
    %1765 = vmatprep.subr.mxu0 0.0
    %1766 = vmatpush2.msra.mxu0 0.0
    %1767 = vmatprep.subr.mxu0 0.0
    %1768 = vmatpush2.msra.mxu0 0.0
    %1769 = vmatprep.subr.mxu0 0.0
    %1770 = vmatpush2.msra.mxu0 0.0
    %1771 = vmatprep.subr.mxu0 0.0
    %1772 = vmatpush2.msra.mxu0 0.0
    %1773 = vmatprep.subr.mxu0 0.0
    %1774 = vmatpush2.msra.mxu0 0.0
    %1775 = vmatprep.subr.mxu0 0.0
    %1776 = vmatpush2.msra.mxu0 0.0
    %1777 = vmatprep.subr.mxu0 0.0
    %1778 = vmatpush2.msra.mxu0 0.0
    %1779 = vmatprep.subr.mxu0 0.0
    %1780 = vmatpush2.msra.mxu0 0.0
    %1781 = vmatprep.subr.mxu0 0.0
    %1782 = vmatpush2.msra.mxu0 0.0
    %1783 = vmatprep.subr.mxu0 0.0
    %1784 = vmatpush2.msra.mxu0 0.0
    %1785 = vmatprep.subr.mxu0 0.0
    %1786 = vmatpush2.msra.mxu0 0.0
    %1787 = vmatprep.mubr.f32.mxu0 0.0
    %1788 = vmatmul.mubr.f32.gmra.mxu0 %v1721
    %v1789 = vpop.f32.mrf.mxu0
    %v1790 = vadd.f32 0.0, %v1789
    %v1791 = vpop.f32.mrf.mxu0
    %1792 = vdwg.mxu0
    %v1793 = vadd.f32 %v1384, %v1717
    %v1794 = vadd.f32 %v1385, %v1790
    %1795 = vrot.lane.b32.xlu0 %v744, 8
    %v1796 = vpop.permute.xlu0 %1795
    %1797 = vrot.lane.b32.xlu0 %v745, 8
    %v1798 = vpop.permute.xlu0 %1797
    %1801 = vrot.lane.b32.xlu0 %v1153, 16
    %v1802 = vpop.permute.xlu0 %1801
    %1803 = vrot.lane.b32.xlu0 %v1154, 16
    %v1804 = vpop.permute.xlu0 %1803
    %1807 = vrot.lane.b32.xlu0 %v1562, 24
    %v1808 = vpop.permute.xlu0 %1807
    %1809 = vrot.lane.b32.xlu0 %v1563, 24
    %v1810 = vpop.permute.xlu0 %1809
    %v1813 = vsel %vm163, %v335, %v1796
    %v1814 = vsel %vm163, %v336, %v1798
    %vm1815 = vcmask 130048
    %v1816 = vsel %vm1815, %v1813, %v1802
    %v1817 = vsel %vm1815, %v1814, %v1804
    %vm1818 = vcmask 195584
    %v1819 = vsel %vm1818, %v1816, %v1808
    %v1820 = vsel %vm1818, %v1817, %v1810
    %v1821 = vsel %vm72, %v1793, 0.0
    %1822 = vadd.xlane.f32.xlu0 %v1821
    %v1823 = vpop.xlane.xlu0 %1822
    %v1824 = vsel %vm72, %v1794, 0.0
    %1825 = vadd.xlane.f32.xlu0 %v1824
    %v1826 = vpop.xlane.xlu0 %1825
    %v1827 = vrcp.pop 32.0
    %v1828 = vmul.f32 %v1823, %v1827
    %v1829 = vmul.f32 %v1826, %v1827
    %v1830 = vmul.f32 %v1793, %v1793
    %v1831 = vmul.f32 %v1794, %v1794
    %v1832 = vsel %vm72, %v1830, 0.0
    %1833 = vadd.xlane.f32.xlu0 %v1832
    %v1834 = vpop.xlane.xlu0 %1833
    %v1835 = vsel %vm72, %v1831, 0.0
    %1836 = vadd.xlane.f32.xlu0 %v1835
    %v1837 = vpop.xlane.xlu0 %1836
    %v1838 = vmul.f32 %v1834, %v1827
    %v1839 = vmul.f32 %v1837, %v1827
    %v1840 = vmul.f32 %v1828, %v1828
    %v1841 = vmul.f32 %v1829, %v1829
    %v1842 = vsub.f32 %v1838, %v1840
    %v1843 = vsub.f32 %v1839, %v1841
    %v1844 = vsub.f32 %v1793, %v1828
    %v1845 = vsub.f32 %v1794, %v1829
    %v1846 = vadd.f32 %v1842, 1e-05
    %v1847 = vadd.f32 %v1843, 1e-05
    %v1848 = vrsqrt.pop %v1846
    %v1849 = vrsqrt.pop %v1847
    %v1850 = vmul.f32 %v1844, %v1848
    %v1851 = vmul.f32 %v1845, %v1849
    %v1852 = vlaneseq
    %v1853 = vshrl.u32 %v1852, 7
    %v1854 = vsub.s32 2, %v1853
    %v1855 = vrot.slane %v66, %v1854
    %v1856 = vmul.f32 %v1850, %v1855
    %v1857 = vmul.f32 %v1851, %v1855
    %v1858 = vlaneseq
    %v1859 = vshrl.u32 %v1858, 7
    %v1860 = vsub.s32 3, %v1859
    %v1861 = vrot.slane %v66, %v1860
    %v1862 = vadd.f32 %v1856, %v1861
    %v1863 = vadd.f32 %v1857, %v1861
    %v1864 = vlaneseq
    %v1865 = vshrl.u32 %v1864, 7
    %v1866 = vsub.s32 4, %v1865
    %v1867 = vrot.slane %v66, %v1866
    %v1869 = vsel %vm72, %v1862, 0
    %v1872 = vsel %vm72, %v1863, 0
    %1874 = vmatprep.subr.mxu0 0.0
    %1875 = vmatpush1.msra.mxu0 0.0
    %1876 = vmatprep.subr.mxu0 0.0
    %1877 = vmatpush1.msra.mxu0 0.0
    %1878 = vmatprep.subr.mxu0 0.0
    %1879 = vmatpush1.msra.mxu0 0.0
    %1880 = vmatprep.subr.mxu0 0.0
    %1881 = vmatpush1.msra.mxu0 0.0
    %1882 = vmatprep.subr.mxu0 0.0
    %1883 = vmatpush1.msra.mxu0 0.0
    %1884 = vmatprep.subr.mxu0 0.0
    %1885 = vmatpush1.msra.mxu0 0.0
    %1886 = vmatprep.subr.mxu0 0.0
    %1887 = vmatpush1.msra.mxu0 0.0
    %1888 = vmatprep.subr.mxu0 0.0
    %1889 = vmatpush1.msra.mxu0 0.0
    %1890 = vmatprep.subr.mxu0 0.0
    %1891 = vmatpush1.msra.mxu0 0.0
    %1892 = vmatprep.subr.mxu0 0.0
    %1893 = vmatpush1.msra.mxu0 0.0
    %1894 = vmatprep.subr.mxu0 0.0
    %1895 = vmatpush1.msra.mxu0 0.0
    %1896 = vmatprep.subr.mxu0 0.0
    %1897 = vmatpush1.msra.mxu0 0.0
    %1898 = vmatprep.subr.mxu0 0.0
    %1899 = vmatpush1.msra.mxu0 %v45
    %1900 = vmatprep.subr.mxu0 0.0
    %1901 = vmatpush1.msra.mxu0 %v44
    %1902 = vmatprep.subr.mxu0 0.0
    %1903 = vmatpush1.msra.mxu0 %v43
    %1904 = vmatprep.subr.mxu0 0.0
    %1905 = vmatpush1.msra.mxu0 %v42
    %1906 = vmatprep.subr.mxu0 0.0
    %1907 = vmatpush2.msra.mxu0 0.0
    %1908 = vmatprep.subr.mxu0 0.0
    %1909 = vmatpush2.msra.mxu0 0.0
    %1910 = vmatprep.subr.mxu0 0.0
    %1911 = vmatpush2.msra.mxu0 0.0
    %1912 = vmatprep.subr.mxu0 0.0
    %1913 = vmatpush2.msra.mxu0 0.0
    %1914 = vmatprep.subr.mxu0 0.0
    %1915 = vmatpush2.msra.mxu0 0.0
    %1916 = vmatprep.subr.mxu0 0.0
    %1917 = vmatpush2.msra.mxu0 0.0
    %1918 = vmatprep.subr.mxu0 0.0
    %1919 = vmatpush2.msra.mxu0 0.0
    %1920 = vmatprep.subr.mxu0 0.0
    %1921 = vmatpush2.msra.mxu0 0.0
    %1922 = vmatprep.subr.mxu0 0.0
    %1923 = vmatpush2.msra.mxu0 0.0
    %1924 = vmatprep.subr.mxu0 0.0
    %1925 = vmatpush2.msra.mxu0 0.0
    %1926 = vmatprep.subr.mxu0 0.0
    %1927 = vmatpush2.msra.mxu0 0.0
    %1928 = vmatprep.subr.mxu0 0.0
    %1929 = vmatpush2.msra.mxu0 0.0
    %1930 = vmatprep.subr.mxu0 0.0
    %1931 = vmatpush2.msra.mxu0 0.0
    %1932 = vmatprep.subr.mxu0 0.0
    %1933 = vmatpush2.msra.mxu0 0.0
    %1934 = vmatprep.subr.mxu0 0.0
    %1935 = vmatpush2.msra.mxu0 0.0
    %1936 = vmatprep.subr.mxu0 0.0
    %1937 = vmatpush2.msra.mxu0 0.0
    %1938 = vmatprep.mubr.f32.mxu0 0.0
    %1939 = vmatmul.mubr.f32.gmra.mxu0 %v1869
    %v1940 = vpop.f32.mrf.mxu0
    %v1941 = vadd.f32 %v1867, %v1940
    %v1942 = vpop.f32.mrf.mxu0
    %1943 = vmatprep.mubr.f32.mxu0 0.0
    %1944 = vmatmul.mubr.f32.gmra.mxu0 %v1872
    %v1945 = vpop.f32.mrf.mxu0
    %v1946 = vadd.f32 %v1867, %v1945
    %v1947 = vpop.f32.mrf.mxu0
    %1948 = vdwg.mxu0
    %v1949 = vlaneseq
    %v1950 = vshrl.u32 %v1949, 7
    %v1951 = vsub.s32 5, %v1950
    %v1952 = vrot.slane %v66, %v1951
    %v1954 = vsel %vm72, %v30, 0
    %v1957 = vsel %vm72, %v31, 0
    %1959 = vmatprep.subr.mxu0 0.0
    %1960 = vmatpush1.msra.mxu0 0.0
    %1961 = vmatprep.subr.mxu0 0.0
    %1962 = vmatpush1.msra.mxu0 0.0
    %1963 = vmatprep.subr.mxu0 0.0
    %1964 = vmatpush1.msra.mxu0 0.0
    %1965 = vmatprep.subr.mxu0 0.0
    %1966 = vmatpush1.msra.mxu0 0.0
    %1967 = vmatprep.subr.mxu0 0.0
    %1968 = vmatpush1.msra.mxu0 0.0
    %1969 = vmatprep.subr.mxu0 0.0
    %1970 = vmatpush1.msra.mxu0 0.0
    %1971 = vmatprep.subr.mxu0 0.0
    %1972 = vmatpush1.msra.mxu0 0.0
    %1973 = vmatprep.subr.mxu0 0.0
    %1974 = vmatpush1.msra.mxu0 0.0
    %1975 = vmatprep.subr.mxu0 0.0
    %1976 = vmatpush1.msra.mxu0 0.0
    %1977 = vmatprep.subr.mxu0 0.0
    %1978 = vmatpush1.msra.mxu0 0.0
    %1979 = vmatprep.subr.mxu0 0.0
    %1980 = vmatpush1.msra.mxu0 0.0
    %1981 = vmatprep.subr.mxu0 0.0
    %1982 = vmatpush1.msra.mxu0 0.0
    %1983 = vmatprep.subr.mxu0 0.0
    %1984 = vmatpush1.msra.mxu0 %v49
    %1985 = vmatprep.subr.mxu0 0.0
    %1986 = vmatpush1.msra.mxu0 %v48
    %1987 = vmatprep.subr.mxu0 0.0
    %1988 = vmatpush1.msra.mxu0 %v47
    %1989 = vmatprep.subr.mxu0 0.0
    %1990 = vmatpush1.msra.mxu0 %v46
    %1991 = vmatprep.subr.mxu0 0.0
    %1992 = vmatpush2.msra.mxu0 0.0
    %1993 = vmatprep.subr.mxu0 0.0
    %1994 = vmatpush2.msra.mxu0 0.0
    %1995 = vmatprep.subr.mxu0 0.0
    %1996 = vmatpush2.msra.mxu0 0.0
    %1997 = vmatprep.subr.mxu0 0.0
    %1998 = vmatpush2.msra.mxu0 0.0
    %1999 = vmatprep.subr.mxu0 0.0
    %2000 = vmatpush2.msra.mxu0 0.0
    %2001 = vmatprep.subr.mxu0 0.0
    %2002 = vmatpush2.msra.mxu0 0.0
    %2003 = vmatprep.subr.mxu0 0.0
    %2004 = vmatpush2.msra.mxu0 0.0
    %2005 = vmatprep.subr.mxu0 0.0
    %2006 = vmatpush2.msra.mxu0 0.0
    %2007 = vmatprep.subr.mxu0 0.0
    %2008 = vmatpush2.msra.mxu0 0.0
    %2009 = vmatprep.subr.mxu0 0.0
    %2010 = vmatpush2.msra.mxu0 0.0
    %2011 = vmatprep.subr.mxu0 0.0
    %2012 = vmatpush2.msra.mxu0 0.0
    %2013 = vmatprep.subr.mxu0 0.0
    %2014 = vmatpush2.msra.mxu0 0.0
    %2015 = vmatprep.subr.mxu0 0.0
    %2016 = vmatpush2.msra.mxu0 0.0
    %2017 = vmatprep.subr.mxu0 0.0
    %2018 = vmatpush2.msra.mxu0 0.0
    %2019 = vmatprep.subr.mxu0 0.0
    %2020 = vmatpush2.msra.mxu0 0.0
    %2021 = vmatprep.subr.mxu0 0.0
    %2022 = vmatpush2.msra.mxu0 0.0
    %2023 = vmatprep.mubr.f32.mxu0 0.0
    %2024 = vmatmul.mubr.f32.gmra.mxu0 %v1954
    %v2025 = vpop.f32.mrf.mxu0
    %v2026 = vadd.f32 %v1952, %v2025
    %v2027 = vpop.f32.mrf.mxu0
    %2028 = vmatprep.mubr.f32.mxu0 0.0
    %2029 = vmatmul.mubr.f32.gmra.mxu0 %v1957
    %v2030 = vpop.f32.mrf.mxu0
    %v2031 = vadd.f32 %v1952, %v2030
    %v2032 = vpop.f32.mrf.mxu0
    %2033 = vdwg.mxu0
    %v2034 = vlaneseq
    %v2035 = vshrl.u32 %v2034, 7
    %v2036 = vsub.s32 6, %v2035
    %v2037 = vrot.slane %v66, %v2036
    %v2038 = vadd.f32 %v1862, %v2037
    %v2039 = vadd.f32 %v1863, %v2037
    %2041 = vrot.lane.b32.xlu0 %v32, 120
    %v2042 = vpop.permute.xlu0 %2041
    %v2045 = vsel %vm163, %v1941, 0
    %v2048 = vsel %vm163, %v2026, 0
    %2050 = vmatprep.subr.mxu0 0.0
    %2051 = vmatpush1.xpose.msra.mxu0 0.0
    %2052 = vmatprep.subr.mxu0 0.0
    %2053 = vmatpush1.xpose.msra.mxu0 0.0
    %2054 = vmatprep.subr.mxu0 0.0
    %2055 = vmatpush1.xpose.msra.mxu0 0.0
    %2056 = vmatprep.subr.mxu0 0.0
    %2057 = vmatpush1.xpose.msra.mxu0 0.0
    %2058 = vmatprep.subr.mxu0 0.0
    %2059 = vmatpush1.xpose.msra.mxu0 0.0
    %2060 = vmatprep.subr.mxu0 0.0
    %2061 = vmatpush1.xpose.msra.mxu0 0.0
    %2062 = vmatprep.subr.mxu0 0.0
    %2063 = vmatpush1.xpose.msra.mxu0 0.0
    %2064 = vmatprep.subr.mxu0 0.0
    %2065 = vmatpush1.xpose.msra.mxu0 0.0
    %2066 = vmatprep.subr.mxu0 0.0
    %2067 = vmatpush1.xpose.msra.mxu0 0.0
    %2068 = vmatprep.subr.mxu0 0.0
    %2069 = vmatpush1.xpose.msra.mxu0 0.0
    %2070 = vmatprep.subr.mxu0 0.0
    %2071 = vmatpush1.xpose.msra.mxu0 0.0
    %2072 = vmatprep.subr.mxu0 0.0
    %2073 = vmatpush1.xpose.msra.mxu0 0.0
    %2074 = vmatprep.subr.mxu0 0.0
    %2075 = vmatpush1.xpose.msra.mxu0 0.0
    %2076 = vmatprep.subr.mxu0 0.0
    %2077 = vmatpush1.xpose.msra.mxu0 0.0
    %2078 = vmatprep.subr.mxu0 0.0
    %2079 = vmatpush1.xpose.msra.mxu0 0.0
    %2080 = vmatprep.subr.mxu0 0.0
    %2081 = vmatpush1.xpose.msra.mxu0 %v2048
    %2082 = vmatprep.subr.mxu0 0.0
    %2083 = vmatpush2.xpose.msra.mxu0 0.0
    %2084 = vmatprep.subr.mxu0 0.0
    %2085 = vmatpush2.xpose.msra.mxu0 0.0
    %2086 = vmatprep.subr.mxu0 0.0
    %2087 = vmatpush2.xpose.msra.mxu0 0.0
    %2088 = vmatprep.subr.mxu0 0.0
    %2089 = vmatpush2.xpose.msra.mxu0 0.0
    %2090 = vmatprep.subr.mxu0 0.0
    %2091 = vmatpush2.xpose.msra.mxu0 0.0
    %2092 = vmatprep.subr.mxu0 0.0
    %2093 = vmatpush2.xpose.msra.mxu0 0.0
    %2094 = vmatprep.subr.mxu0 0.0
    %2095 = vmatpush2.xpose.msra.mxu0 0.0
    %2096 = vmatprep.subr.mxu0 0.0
    %2097 = vmatpush2.xpose.msra.mxu0 0.0
    %2098 = vmatprep.subr.mxu0 0.0
    %2099 = vmatpush2.xpose.msra.mxu0 0.0
    %2100 = vmatprep.subr.mxu0 0.0
    %2101 = vmatpush2.xpose.msra.mxu0 0.0
    %2102 = vmatprep.subr.mxu0 0.0
    %2103 = vmatpush2.xpose.msra.mxu0 0.0
    %2104 = vmatprep.subr.mxu0 0.0
    %2105 = vmatpush2.xpose.msra.mxu0 0.0
    %2106 = vmatprep.subr.mxu0 0.0
    %2107 = vmatpush2.xpose.msra.mxu0 0.0
    %2108 = vmatprep.subr.mxu0 0.0
    %2109 = vmatpush2.xpose.msra.mxu0 0.0
    %2110 = vmatprep.subr.mxu0 0.0
    %2111 = vmatpush2.xpose.msra.mxu0 0.0
    %2112 = vmatprep.subr.mxu0 0.0
    %2113 = vmatpush2.xpose.msra.mxu0 0.0
    %2114 = vmatprep.mubr.f32.mxu0 0.0
    %2115 = vmatmul.mubr.f32.gmra.mxu0 %v2045
    %v2116 = vpop.f32.mrf.mxu0
    %v2117 = vadd.f32 %v2042, %v2116
    %v2118 = vpop.f32.mrf.mxu0
    %2119 = vdwg.mxu0
    %2121 = vrot.lane.b32.xlu0 %v33, 120
    %v2122 = vpop.permute.xlu0 %2121
    %v2125 = vsel %vm163, %v1946, 0
    %v2128 = vsel %vm163, %v2031, 0
    %2130 = vmatprep.subr.mxu0 0.0
    %2131 = vmatpush1.xpose.msra.mxu0 0.0
    %2132 = vmatprep.subr.mxu0 0.0
    %2133 = vmatpush1.xpose.msra.mxu0 0.0
    %2134 = vmatprep.subr.mxu0 0.0
    %2135 = vmatpush1.xpose.msra.mxu0 0.0
    %2136 = vmatprep.subr.mxu0 0.0
    %2137 = vmatpush1.xpose.msra.mxu0 0.0
    %2138 = vmatprep.subr.mxu0 0.0
    %2139 = vmatpush1.xpose.msra.mxu0 0.0
    %2140 = vmatprep.subr.mxu0 0.0
    %2141 = vmatpush1.xpose.msra.mxu0 0.0
    %2142 = vmatprep.subr.mxu0 0.0
    %2143 = vmatpush1.xpose.msra.mxu0 0.0
    %2144 = vmatprep.subr.mxu0 0.0
    %2145 = vmatpush1.xpose.msra.mxu0 0.0
    %2146 = vmatprep.subr.mxu0 0.0
    %2147 = vmatpush1.xpose.msra.mxu0 0.0
    %2148 = vmatprep.subr.mxu0 0.0
    %2149 = vmatpush1.xpose.msra.mxu0 0.0
    %2150 = vmatprep.subr.mxu0 0.0
    %2151 = vmatpush1.xpose.msra.mxu0 0.0
    %2152 = vmatprep.subr.mxu0 0.0
    %2153 = vmatpush1.xpose.msra.mxu0 0.0
    %2154 = vmatprep.subr.mxu0 0.0
    %2155 = vmatpush1.xpose.msra.mxu0 0.0
    %2156 = vmatprep.subr.mxu0 0.0
    %2157 = vmatpush1.xpose.msra.mxu0 0.0
    %2158 = vmatprep.subr.mxu0 0.0
    %2159 = vmatpush1.xpose.msra.mxu0 0.0
    %2160 = vmatprep.subr.mxu0 0.0
    %2161 = vmatpush1.xpose.msra.mxu0 %v2128
    %2162 = vmatprep.subr.mxu0 0.0
    %2163 = vmatpush2.xpose.msra.mxu0 0.0
    %2164 = vmatprep.subr.mxu0 0.0
    %2165 = vmatpush2.xpose.msra.mxu0 0.0
    %2166 = vmatprep.subr.mxu0 0.0
    %2167 = vmatpush2.xpose.msra.mxu0 0.0
    %2168 = vmatprep.subr.mxu0 0.0
    %2169 = vmatpush2.xpose.msra.mxu0 0.0
    %2170 = vmatprep.subr.mxu0 0.0
    %2171 = vmatpush2.xpose.msra.mxu0 0.0
    %2172 = vmatprep.subr.mxu0 0.0
    %2173 = vmatpush2.xpose.msra.mxu0 0.0
    %2174 = vmatprep.subr.mxu0 0.0
    %2175 = vmatpush2.xpose.msra.mxu0 0.0
    %2176 = vmatprep.subr.mxu0 0.0
    %2177 = vmatpush2.xpose.msra.mxu0 0.0
    %2178 = vmatprep.subr.mxu0 0.0
    %2179 = vmatpush2.xpose.msra.mxu0 0.0
    %2180 = vmatprep.subr.mxu0 0.0
    %2181 = vmatpush2.xpose.msra.mxu0 0.0
    %2182 = vmatprep.subr.mxu0 0.0
    %2183 = vmatpush2.xpose.msra.mxu0 0.0
    %2184 = vmatprep.subr.mxu0 0.0
    %2185 = vmatpush2.xpose.msra.mxu0 0.0
    %2186 = vmatprep.subr.mxu0 0.0
    %2187 = vmatpush2.xpose.msra.mxu0 0.0
    %2188 = vmatprep.subr.mxu0 0.0
    %2189 = vmatpush2.xpose.msra.mxu0 0.0
    %2190 = vmatprep.subr.mxu0 0.0
    %2191 = vmatpush2.xpose.msra.mxu0 0.0
    %2192 = vmatprep.subr.mxu0 0.0
    %2193 = vmatpush2.xpose.msra.mxu0 0.0
    %2194 = vmatprep.mubr.f32.mxu0 0.0
    %2195 = vmatmul.mubr.f32.gmra.mxu0 %v2125
    %v2196 = vpop.f32.mrf.mxu0
    %v2197 = vadd.f32 %v2122, %v2196
    %v2198 = vpop.f32.mrf.mxu0
    %2199 = vdwg.mxu0
    %v2200 = vsel %vm163, %v2117, -inf
    %2201 = vmax.xlane.f32.xlu0 %v2200
    %v2202 = vpop.xlane.xlu0 %2201
    %v2203 = vsel %vm163, %v2197, -inf
    %2204 = vmax.xlane.f32.xlu0 %v2203
    %v2205 = vpop.xlane.xlu0 %2204
    %v2206 = vsub.f32 %v2117, %v2202
    %v2207 = vsub.f32 %v2197, %v2205
    %v2208 = vmul.f32 %v2206, 1.442695
    %v2209 = vpow.pop %v2208
    %v2210 = vmul.f32 %v2207, 1.442695
    %v2211 = vpow.pop %v2210
    %v2212 = vsel %vm163, %v2209, 0.0
    %2213 = vadd.xlane.f32.xlu0 %v2212
    %v2214 = vpop.xlane.xlu0 %2213
    %v2215 = vsel %vm163, %v2211, 0.0
    %2216 = vadd.xlane.f32.xlu0 %v2215
    %v2217 = vpop.xlane.xlu0 %2216
    %v2218 = vrcp.pop %v2214
    %v2219 = vrcp.pop %v2217
    %v2220 = vmul.f32 %v2209, %v2218
    %v2221 = vmul.f32 %v2211, %v2219
    %2222 = vrot.lane.b32.xlu0 %v2026, 96
    %v2223 = vpop.permute.xlu0 %2222
    %2224 = vrot.lane.b32.xlu0 %v2031, 96
    %v2225 = vpop.permute.xlu0 %2224
    %v2226 = vsel %vm163, %v2223, 0
    %v2228 = vsel %vm163, %v2225, 0
    %2230 = vmatprep.subr.mxu0 0.0
    %2231 = vmatpush1.msra.mxu0 0.0
    %2232 = vmatprep.subr.mxu0 0.0
    %2233 = vmatpush1.msra.mxu0 0.0
    %2234 = vmatprep.subr.mxu0 0.0
    %2235 = vmatpush1.msra.mxu0 0.0
    %2236 = vmatprep.subr.mxu0 0.0
    %2237 = vmatpush1.msra.mxu0 0.0
    %2238 = vmatprep.subr.mxu0 0.0
    %2239 = vmatpush1.msra.mxu0 0.0
    %2240 = vmatprep.subr.mxu0 0.0
    %2241 = vmatpush1.msra.mxu0 0.0
    %2242 = vmatprep.subr.mxu0 0.0
    %2243 = vmatpush1.msra.mxu0 0.0
    %2244 = vmatprep.subr.mxu0 0.0
    %2245 = vmatpush1.msra.mxu0 0.0
    %2246 = vmatprep.subr.mxu0 0.0
    %2247 = vmatpush1.msra.mxu0 0.0
    %2248 = vmatprep.subr.mxu0 0.0
    %2249 = vmatpush1.msra.mxu0 0.0
    %2250 = vmatprep.subr.mxu0 0.0
    %2251 = vmatpush1.msra.mxu0 0.0
    %2252 = vmatprep.subr.mxu0 0.0
    %2253 = vmatpush1.msra.mxu0 0.0
    %2254 = vmatprep.subr.mxu0 0.0
    %2255 = vmatpush1.msra.mxu0 0.0
    %2256 = vmatprep.subr.mxu0 0.0
    %2257 = vmatpush1.msra.mxu0 0.0
    %2258 = vmatprep.subr.mxu0 0.0
    %2259 = vmatpush1.msra.mxu0 0.0
    %2260 = vmatprep.subr.mxu0 0.0
    %2261 = vmatpush1.msra.mxu0 %v50
    %2262 = vmatprep.subr.mxu0 0.0
    %2263 = vmatpush2.msra.mxu0 0.0
    %2264 = vmatprep.subr.mxu0 0.0
    %2265 = vmatpush2.msra.mxu0 0.0
    %2266 = vmatprep.subr.mxu0 0.0
    %2267 = vmatpush2.msra.mxu0 0.0
    %2268 = vmatprep.subr.mxu0 0.0
    %2269 = vmatpush2.msra.mxu0 0.0
    %2270 = vmatprep.subr.mxu0 0.0
    %2271 = vmatpush2.msra.mxu0 0.0
    %2272 = vmatprep.subr.mxu0 0.0
    %2273 = vmatpush2.msra.mxu0 0.0
    %2274 = vmatprep.subr.mxu0 0.0
    %2275 = vmatpush2.msra.mxu0 0.0
    %2276 = vmatprep.subr.mxu0 0.0
    %2277 = vmatpush2.msra.mxu0 0.0
    %2278 = vmatprep.subr.mxu0 0.0
    %2279 = vmatpush2.msra.mxu0 0.0
    %2280 = vmatprep.subr.mxu0 0.0
    %2281 = vmatpush2.msra.mxu0 0.0
    %2282 = vmatprep.subr.mxu0 0.0
    %2283 = vmatpush2.msra.mxu0 0.0
    %2284 = vmatprep.subr.mxu0 0.0
    %2285 = vmatpush2.msra.mxu0 0.0
    %2286 = vmatprep.subr.mxu0 0.0
    %2287 = vmatpush2.msra.mxu0 0.0
    %2288 = vmatprep.subr.mxu0 0.0
    %2289 = vmatpush2.msra.mxu0 0.0
    %2290 = vmatprep.subr.mxu0 0.0
    %2291 = vmatpush2.msra.mxu0 0.0
    %2292 = vmatprep.subr.mxu0 0.0
    %2293 = vmatpush2.msra.mxu0 0.0
    %2294 = vmatprep.mubr.f32.mxu0 0.0
    %2295 = vmatmul.mubr.f32.gmra.mxu0 %v2226
    %v2296 = vpop.f32.mrf.mxu0
    %v2297 = vadd.f32 0.0, %v2296
    %v2298 = vpop.f32.mrf.mxu0
    %2299 = vmatprep.mubr.f32.mxu0 0.0
    %2300 = vmatmul.mubr.f32.gmra.mxu0 %v2228
    %v2301 = vpop.f32.mrf.mxu0
    %v2302 = vadd.f32 0.0, %v2301
    %v2303 = vpop.f32.mrf.mxu0
    %2304 = vdwg.mxu0
    %v2306 = vsel %vm163, %v2220, 0
    %2308 = vmatprep.subr.mxu0 0.0
    %2309 = vmatpush1.msra.mxu0 0.0
    %2310 = vmatprep.subr.mxu0 0.0
    %2311 = vmatpush1.msra.mxu0 0.0
    %2312 = vmatprep.subr.mxu0 0.0
    %2313 = vmatpush1.msra.mxu0 0.0
    %2314 = vmatprep.subr.mxu0 0.0
    %2315 = vmatpush1.msra.mxu0 0.0
    %2316 = vmatprep.subr.mxu0 0.0
    %2317 = vmatpush1.msra.mxu0 0.0
    %2318 = vmatprep.subr.mxu0 0.0
    %2319 = vmatpush1.msra.mxu0 0.0
    %2320 = vmatprep.subr.mxu0 0.0
    %2321 = vmatpush1.msra.mxu0 0.0
    %2322 = vmatprep.subr.mxu0 0.0
    %2323 = vmatpush1.msra.mxu0 0.0
    %2324 = vmatprep.subr.mxu0 0.0
    %2325 = vmatpush1.msra.mxu0 0.0
    %2326 = vmatprep.subr.mxu0 0.0
    %2327 = vmatpush1.msra.mxu0 0.0
    %2328 = vmatprep.subr.mxu0 0.0
    %2329 = vmatpush1.msra.mxu0 0.0
    %2330 = vmatprep.subr.mxu0 0.0
    %2331 = vmatpush1.msra.mxu0 0.0
    %2332 = vmatprep.subr.mxu0 0.0
    %2333 = vmatpush1.msra.mxu0 0.0
    %2334 = vmatprep.subr.mxu0 0.0
    %2335 = vmatpush1.msra.mxu0 0.0
    %2336 = vmatprep.subr.mxu0 0.0
    %2337 = vmatpush1.msra.mxu0 0.0
    %2338 = vmatprep.subr.mxu0 0.0
    %2339 = vmatpush1.msra.mxu0 %v2297
    %2340 = vmatprep.subr.mxu0 0.0
    %2341 = vmatpush2.msra.mxu0 0.0
    %2342 = vmatprep.subr.mxu0 0.0
    %2343 = vmatpush2.msra.mxu0 0.0
    %2344 = vmatprep.subr.mxu0 0.0
    %2345 = vmatpush2.msra.mxu0 0.0
    %2346 = vmatprep.subr.mxu0 0.0
    %2347 = vmatpush2.msra.mxu0 0.0
    %2348 = vmatprep.subr.mxu0 0.0
    %2349 = vmatpush2.msra.mxu0 0.0
    %2350 = vmatprep.subr.mxu0 0.0
    %2351 = vmatpush2.msra.mxu0 0.0
    %2352 = vmatprep.subr.mxu0 0.0
    %2353 = vmatpush2.msra.mxu0 0.0
    %2354 = vmatprep.subr.mxu0 0.0
    %2355 = vmatpush2.msra.mxu0 0.0
    %2356 = vmatprep.subr.mxu0 0.0
    %2357 = vmatpush2.msra.mxu0 0.0
    %2358 = vmatprep.subr.mxu0 0.0
    %2359 = vmatpush2.msra.mxu0 0.0
    %2360 = vmatprep.subr.mxu0 0.0
    %2361 = vmatpush2.msra.mxu0 0.0
    %2362 = vmatprep.subr.mxu0 0.0
    %2363 = vmatpush2.msra.mxu0 0.0
    %2364 = vmatprep.subr.mxu0 0.0
    %2365 = vmatpush2.msra.mxu0 0.0
    %2366 = vmatprep.subr.mxu0 0.0
    %2367 = vmatpush2.msra.mxu0 0.0
    %2368 = vmatprep.subr.mxu0 0.0
    %2369 = vmatpush2.msra.mxu0 0.0
    %2370 = vmatprep.subr.mxu0 0.0
    %2371 = vmatpush2.msra.mxu0 0.0
    %2372 = vmatprep.mubr.f32.mxu0 0.0
    %2373 = vmatmul.mubr.f32.gmra.mxu0 %v2306
    %v2374 = vpop.f32.mrf.mxu0
    %v2375 = vadd.f32 0.0, %v2374
    %v2376 = vpop.f32.mrf.mxu0
    %2377 = vdwg.mxu0
    %v2379 = vsel %vm163, %v2221, 0
    %2381 = vmatprep.subr.mxu0 0.0
    %2382 = vmatpush1.msra.mxu0 0.0
    %2383 = vmatprep.subr.mxu0 0.0
    %2384 = vmatpush1.msra.mxu0 0.0
    %2385 = vmatprep.subr.mxu0 0.0
    %2386 = vmatpush1.msra.mxu0 0.0
    %2387 = vmatprep.subr.mxu0 0.0
    %2388 = vmatpush1.msra.mxu0 0.0
    %2389 = vmatprep.subr.mxu0 0.0
    %2390 = vmatpush1.msra.mxu0 0.0
    %2391 = vmatprep.subr.mxu0 0.0
    %2392 = vmatpush1.msra.mxu0 0.0
    %2393 = vmatprep.subr.mxu0 0.0
    %2394 = vmatpush1.msra.mxu0 0.0
    %2395 = vmatprep.subr.mxu0 0.0
    %2396 = vmatpush1.msra.mxu0 0.0
    %2397 = vmatprep.subr.mxu0 0.0
    %2398 = vmatpush1.msra.mxu0 0.0
    %2399 = vmatprep.subr.mxu0 0.0
    %2400 = vmatpush1.msra.mxu0 0.0
    %2401 = vmatprep.subr.mxu0 0.0
    %2402 = vmatpush1.msra.mxu0 0.0
    %2403 = vmatprep.subr.mxu0 0.0
    %2404 = vmatpush1.msra.mxu0 0.0
    %2405 = vmatprep.subr.mxu0 0.0
    %2406 = vmatpush1.msra.mxu0 0.0
    %2407 = vmatprep.subr.mxu0 0.0
    %2408 = vmatpush1.msra.mxu0 0.0
    %2409 = vmatprep.subr.mxu0 0.0
    %2410 = vmatpush1.msra.mxu0 0.0
    %2411 = vmatprep.subr.mxu0 0.0
    %2412 = vmatpush1.msra.mxu0 %v2302
    %2413 = vmatprep.subr.mxu0 0.0
    %2414 = vmatpush2.msra.mxu0 0.0
    %2415 = vmatprep.subr.mxu0 0.0
    %2416 = vmatpush2.msra.mxu0 0.0
    %2417 = vmatprep.subr.mxu0 0.0
    %2418 = vmatpush2.msra.mxu0 0.0
    %2419 = vmatprep.subr.mxu0 0.0
    %2420 = vmatpush2.msra.mxu0 0.0
    %2421 = vmatprep.subr.mxu0 0.0
    %2422 = vmatpush2.msra.mxu0 0.0
    %2423 = vmatprep.subr.mxu0 0.0
    %2424 = vmatpush2.msra.mxu0 0.0
    %2425 = vmatprep.subr.mxu0 0.0
    %2426 = vmatpush2.msra.mxu0 0.0
    %2427 = vmatprep.subr.mxu0 0.0
    %2428 = vmatpush2.msra.mxu0 0.0
    %2429 = vmatprep.subr.mxu0 0.0
    %2430 = vmatpush2.msra.mxu0 0.0
    %2431 = vmatprep.subr.mxu0 0.0
    %2432 = vmatpush2.msra.mxu0 0.0
    %2433 = vmatprep.subr.mxu0 0.0
    %2434 = vmatpush2.msra.mxu0 0.0
    %2435 = vmatprep.subr.mxu0 0.0
    %2436 = vmatpush2.msra.mxu0 0.0
    %2437 = vmatprep.subr.mxu0 0.0
    %2438 = vmatpush2.msra.mxu0 0.0
    %2439 = vmatprep.subr.mxu0 0.0
    %2440 = vmatpush2.msra.mxu0 0.0
    %2441 = vmatprep.subr.mxu0 0.0
    %2442 = vmatpush2.msra.mxu0 0.0
    %2443 = vmatprep.subr.mxu0 0.0
    %2444 = vmatpush2.msra.mxu0 0.0
    %2445 = vmatprep.mubr.f32.mxu0 0.0
    %2446 = vmatmul.mubr.f32.gmra.mxu0 %v2379
    %v2447 = vpop.f32.mrf.mxu0
    %v2448 = vadd.f32 0.0, %v2447
    %v2449 = vpop.f32.mrf.mxu0
    %2450 = vdwg.mxu0
    %v2451 = vadd.f32 %v2038, %v2375
    %v2452 = vadd.f32 %v2039, %v2448
    %2453 = vrot.lane.b32.xlu0 %v1941, 120
    %v2454 = vpop.permute.xlu0 %2453
    %2455 = vrot.lane.b32.xlu0 %v2026, 120
    %v2456 = vpop.permute.xlu0 %2455
    %v2457 = vsel %vm163, %v2454, 0
    %v2459 = vsel %vm163, %v2456, 0
    %2461 = vmatprep.subr.mxu0 0.0
    %2462 = vmatpush1.xpose.msra.mxu0 0.0
    %2463 = vmatprep.subr.mxu0 0.0
    %2464 = vmatpush1.xpose.msra.mxu0 0.0
    %2465 = vmatprep.subr.mxu0 0.0
    %2466 = vmatpush1.xpose.msra.mxu0 0.0
    %2467 = vmatprep.subr.mxu0 0.0
    %2468 = vmatpush1.xpose.msra.mxu0 0.0
    %2469 = vmatprep.subr.mxu0 0.0
    %2470 = vmatpush1.xpose.msra.mxu0 0.0
    %2471 = vmatprep.subr.mxu0 0.0
    %2472 = vmatpush1.xpose.msra.mxu0 0.0
    %2473 = vmatprep.subr.mxu0 0.0
    %2474 = vmatpush1.xpose.msra.mxu0 0.0
    %2475 = vmatprep.subr.mxu0 0.0
    %2476 = vmatpush1.xpose.msra.mxu0 0.0
    %2477 = vmatprep.subr.mxu0 0.0
    %2478 = vmatpush1.xpose.msra.mxu0 0.0
    %2479 = vmatprep.subr.mxu0 0.0
    %2480 = vmatpush1.xpose.msra.mxu0 0.0
    %2481 = vmatprep.subr.mxu0 0.0
    %2482 = vmatpush1.xpose.msra.mxu0 0.0
    %2483 = vmatprep.subr.mxu0 0.0
    %2484 = vmatpush1.xpose.msra.mxu0 0.0
    %2485 = vmatprep.subr.mxu0 0.0
    %2486 = vmatpush1.xpose.msra.mxu0 0.0
    %2487 = vmatprep.subr.mxu0 0.0
    %2488 = vmatpush1.xpose.msra.mxu0 0.0
    %2489 = vmatprep.subr.mxu0 0.0
    %2490 = vmatpush1.xpose.msra.mxu0 0.0
    %2491 = vmatprep.subr.mxu0 0.0
    %2492 = vmatpush1.xpose.msra.mxu0 %v2459
    %2493 = vmatprep.subr.mxu0 0.0
    %2494 = vmatpush2.xpose.msra.mxu0 0.0
    %2495 = vmatprep.subr.mxu0 0.0
    %2496 = vmatpush2.xpose.msra.mxu0 0.0
    %2497 = vmatprep.subr.mxu0 0.0
    %2498 = vmatpush2.xpose.msra.mxu0 0.0
    %2499 = vmatprep.subr.mxu0 0.0
    %2500 = vmatpush2.xpose.msra.mxu0 0.0
    %2501 = vmatprep.subr.mxu0 0.0
    %2502 = vmatpush2.xpose.msra.mxu0 0.0
    %2503 = vmatprep.subr.mxu0 0.0
    %2504 = vmatpush2.xpose.msra.mxu0 0.0
    %2505 = vmatprep.subr.mxu0 0.0
    %2506 = vmatpush2.xpose.msra.mxu0 0.0
    %2507 = vmatprep.subr.mxu0 0.0
    %2508 = vmatpush2.xpose.msra.mxu0 0.0
    %2509 = vmatprep.subr.mxu0 0.0
    %2510 = vmatpush2.xpose.msra.mxu0 0.0
    %2511 = vmatprep.subr.mxu0 0.0
    %2512 = vmatpush2.xpose.msra.mxu0 0.0
    %2513 = vmatprep.subr.mxu0 0.0
    %2514 = vmatpush2.xpose.msra.mxu0 0.0
    %2515 = vmatprep.subr.mxu0 0.0
    %2516 = vmatpush2.xpose.msra.mxu0 0.0
    %2517 = vmatprep.subr.mxu0 0.0
    %2518 = vmatpush2.xpose.msra.mxu0 0.0
    %2519 = vmatprep.subr.mxu0 0.0
    %2520 = vmatpush2.xpose.msra.mxu0 0.0
    %2521 = vmatprep.subr.mxu0 0.0
    %2522 = vmatpush2.xpose.msra.mxu0 0.0
    %2523 = vmatprep.subr.mxu0 0.0
    %2524 = vmatpush2.xpose.msra.mxu0 0.0
    %2525 = vmatprep.mubr.f32.mxu0 0.0
    %2526 = vmatmul.mubr.f32.gmra.mxu0 %v2457
    %v2527 = vpop.f32.mrf.mxu0
    %v2528 = vadd.f32 %v2042, %v2527
    %v2529 = vpop.f32.mrf.mxu0
    %2530 = vdwg.mxu0
    %2531 = vrot.lane.b32.xlu0 %v1946, 120
    %v2532 = vpop.permute.xlu0 %2531
    %2533 = vrot.lane.b32.xlu0 %v2031, 120
    %v2534 = vpop.permute.xlu0 %2533
    %v2535 = vsel %vm163, %v2532, 0
    %v2537 = vsel %vm163, %v2534, 0
    %2539 = vmatprep.subr.mxu0 0.0
    %2540 = vmatpush1.xpose.msra.mxu0 0.0
    %2541 = vmatprep.subr.mxu0 0.0
    %2542 = vmatpush1.xpose.msra.mxu0 0.0
    %2543 = vmatprep.subr.mxu0 0.0
    %2544 = vmatpush1.xpose.msra.mxu0 0.0
    %2545 = vmatprep.subr.mxu0 0.0
    %2546 = vmatpush1.xpose.msra.mxu0 0.0
    %2547 = vmatprep.subr.mxu0 0.0
    %2548 = vmatpush1.xpose.msra.mxu0 0.0
    %2549 = vmatprep.subr.mxu0 0.0
    %2550 = vmatpush1.xpose.msra.mxu0 0.0
    %2551 = vmatprep.subr.mxu0 0.0
    %2552 = vmatpush1.xpose.msra.mxu0 0.0
    %2553 = vmatprep.subr.mxu0 0.0
    %2554 = vmatpush1.xpose.msra.mxu0 0.0
    %2555 = vmatprep.subr.mxu0 0.0
    %2556 = vmatpush1.xpose.msra.mxu0 0.0
    %2557 = vmatprep.subr.mxu0 0.0
    %2558 = vmatpush1.xpose.msra.mxu0 0.0
    %2559 = vmatprep.subr.mxu0 0.0
    %2560 = vmatpush1.xpose.msra.mxu0 0.0
    %2561 = vmatprep.subr.mxu0 0.0
    %2562 = vmatpush1.xpose.msra.mxu0 0.0
    %2563 = vmatprep.subr.mxu0 0.0
    %2564 = vmatpush1.xpose.msra.mxu0 0.0
    %2565 = vmatprep.subr.mxu0 0.0
    %2566 = vmatpush1.xpose.msra.mxu0 0.0
    %2567 = vmatprep.subr.mxu0 0.0
    %2568 = vmatpush1.xpose.msra.mxu0 0.0
    %2569 = vmatprep.subr.mxu0 0.0
    %2570 = vmatpush1.xpose.msra.mxu0 %v2537
    %2571 = vmatprep.subr.mxu0 0.0
    %2572 = vmatpush2.xpose.msra.mxu0 0.0
    %2573 = vmatprep.subr.mxu0 0.0
    %2574 = vmatpush2.xpose.msra.mxu0 0.0
    %2575 = vmatprep.subr.mxu0 0.0
    %2576 = vmatpush2.xpose.msra.mxu0 0.0
    %2577 = vmatprep.subr.mxu0 0.0
    %2578 = vmatpush2.xpose.msra.mxu0 0.0
    %2579 = vmatprep.subr.mxu0 0.0
    %2580 = vmatpush2.xpose.msra.mxu0 0.0
    %2581 = vmatprep.subr.mxu0 0.0
    %2582 = vmatpush2.xpose.msra.mxu0 0.0
    %2583 = vmatprep.subr.mxu0 0.0
    %2584 = vmatpush2.xpose.msra.mxu0 0.0
    %2585 = vmatprep.subr.mxu0 0.0
    %2586 = vmatpush2.xpose.msra.mxu0 0.0
    %2587 = vmatprep.subr.mxu0 0.0
    %2588 = vmatpush2.xpose.msra.mxu0 0.0
    %2589 = vmatprep.subr.mxu0 0.0
    %2590 = vmatpush2.xpose.msra.mxu0 0.0
    %2591 = vmatprep.subr.mxu0 0.0
    %2592 = vmatpush2.xpose.msra.mxu0 0.0
    %2593 = vmatprep.subr.mxu0 0.0
    %2594 = vmatpush2.xpose.msra.mxu0 0.0
    %2595 = vmatprep.subr.mxu0 0.0
    %2596 = vmatpush2.xpose.msra.mxu0 0.0
    %2597 = vmatprep.subr.mxu0 0.0
    %2598 = vmatpush2.xpose.msra.mxu0 0.0
    %2599 = vmatprep.subr.mxu0 0.0
    %2600 = vmatpush2.xpose.msra.mxu0 0.0
    %2601 = vmatprep.subr.mxu0 0.0
    %2602 = vmatpush2.xpose.msra.mxu0 0.0
    %2603 = vmatprep.mubr.f32.mxu0 0.0
    %2604 = vmatmul.mubr.f32.gmra.mxu0 %v2535
    %v2605 = vpop.f32.mrf.mxu0
    %v2606 = vadd.f32 %v2122, %v2605
    %v2607 = vpop.f32.mrf.mxu0
    %2608 = vdwg.mxu0
    %v2609 = vsel %vm163, %v2528, -inf
    %2610 = vmax.xlane.f32.xlu0 %v2609
    %v2611 = vpop.xlane.xlu0 %2610
    %v2612 = vsel %vm163, %v2606, -inf
    %2613 = vmax.xlane.f32.xlu0 %v2612
    %v2614 = vpop.xlane.xlu0 %2613
    %v2615 = vsub.f32 %v2528, %v2611
    %v2616 = vsub.f32 %v2606, %v2614
    %v2617 = vmul.f32 %v2615, 1.442695
    %v2618 = vpow.pop %v2617
    %v2619 = vmul.f32 %v2616, 1.442695
    %v2620 = vpow.pop %v2619
    %v2621 = vsel %vm163, %v2618, 0.0
    %2622 = vadd.xlane.f32.xlu0 %v2621
    %v2623 = vpop.xlane.xlu0 %2622
    %v2624 = vsel %vm163, %v2620, 0.0
    %2625 = vadd.xlane.f32.xlu0 %v2624
    %v2626 = vpop.xlane.xlu0 %2625
    %v2627 = vrcp.pop %v2623
    %v2628 = vrcp.pop %v2626
    %v2629 = vmul.f32 %v2618, %v2627
    %v2630 = vmul.f32 %v2620, %v2628
    %2631 = vrot.lane.b32.xlu0 %v2026, 88
    %v2632 = vpop.permute.xlu0 %2631
    %2633 = vrot.lane.b32.xlu0 %v2031, 88
    %v2634 = vpop.permute.xlu0 %2633
    %v2635 = vsel %vm163, %v2632, 0
    %v2637 = vsel %vm163, %v2634, 0
    %2639 = vmatprep.subr.mxu0 0.0
    %2640 = vmatpush1.msra.mxu0 0.0
    %2641 = vmatprep.subr.mxu0 0.0
    %2642 = vmatpush1.msra.mxu0 0.0
    %2643 = vmatprep.subr.mxu0 0.0
    %2644 = vmatpush1.msra.mxu0 0.0
    %2645 = vmatprep.subr.mxu0 0.0
    %2646 = vmatpush1.msra.mxu0 0.0
    %2647 = vmatprep.subr.mxu0 0.0
    %2648 = vmatpush1.msra.mxu0 0.0
    %2649 = vmatprep.subr.mxu0 0.0
    %2650 = vmatpush1.msra.mxu0 0.0
    %2651 = vmatprep.subr.mxu0 0.0
    %2652 = vmatpush1.msra.mxu0 0.0
    %2653 = vmatprep.subr.mxu0 0.0
    %2654 = vmatpush1.msra.mxu0 0.0
    %2655 = vmatprep.subr.mxu0 0.0
    %2656 = vmatpush1.msra.mxu0 0.0
    %2657 = vmatprep.subr.mxu0 0.0
    %2658 = vmatpush1.msra.mxu0 0.0
    %2659 = vmatprep.subr.mxu0 0.0
    %2660 = vmatpush1.msra.mxu0 0.0
    %2661 = vmatprep.subr.mxu0 0.0
    %2662 = vmatpush1.msra.mxu0 0.0
    %2663 = vmatprep.subr.mxu0 0.0
    %2664 = vmatpush1.msra.mxu0 0.0
    %2665 = vmatprep.subr.mxu0 0.0
    %2666 = vmatpush1.msra.mxu0 0.0
    %2667 = vmatprep.subr.mxu0 0.0
    %2668 = vmatpush1.msra.mxu0 0.0
    %2669 = vmatprep.subr.mxu0 0.0
    %2670 = vmatpush1.msra.mxu0 %v51
    %2671 = vmatprep.subr.mxu0 0.0
    %2672 = vmatpush2.msra.mxu0 0.0
    %2673 = vmatprep.subr.mxu0 0.0
    %2674 = vmatpush2.msra.mxu0 0.0
    %2675 = vmatprep.subr.mxu0 0.0
    %2676 = vmatpush2.msra.mxu0 0.0
    %2677 = vmatprep.subr.mxu0 0.0
    %2678 = vmatpush2.msra.mxu0 0.0
    %2679 = vmatprep.subr.mxu0 0.0
    %2680 = vmatpush2.msra.mxu0 0.0
    %2681 = vmatprep.subr.mxu0 0.0
    %2682 = vmatpush2.msra.mxu0 0.0
    %2683 = vmatprep.subr.mxu0 0.0
    %2684 = vmatpush2.msra.mxu0 0.0
    %2685 = vmatprep.subr.mxu0 0.0
    %2686 = vmatpush2.msra.mxu0 0.0
    %2687 = vmatprep.subr.mxu0 0.0
    %2688 = vmatpush2.msra.mxu0 0.0
    %2689 = vmatprep.subr.mxu0 0.0
    %2690 = vmatpush2.msra.mxu0 0.0
    %2691 = vmatprep.subr.mxu0 0.0
    %2692 = vmatpush2.msra.mxu0 0.0
    %2693 = vmatprep.subr.mxu0 0.0
    %2694 = vmatpush2.msra.mxu0 0.0
    %2695 = vmatprep.subr.mxu0 0.0
    %2696 = vmatpush2.msra.mxu0 0.0
    %2697 = vmatprep.subr.mxu0 0.0
    %2698 = vmatpush2.msra.mxu0 0.0
    %2699 = vmatprep.subr.mxu0 0.0
    %2700 = vmatpush2.msra.mxu0 0.0
    %2701 = vmatprep.subr.mxu0 0.0
    %2702 = vmatpush2.msra.mxu0 0.0
    %2703 = vmatprep.mubr.f32.mxu0 0.0
    %2704 = vmatmul.mubr.f32.gmra.mxu0 %v2635
    %v2705 = vpop.f32.mrf.mxu0
    %v2706 = vadd.f32 0.0, %v2705
    %v2707 = vpop.f32.mrf.mxu0
    %2708 = vmatprep.mubr.f32.mxu0 0.0
    %2709 = vmatmul.mubr.f32.gmra.mxu0 %v2637
    %v2710 = vpop.f32.mrf.mxu0
    %v2711 = vadd.f32 0.0, %v2710
    %v2712 = vpop.f32.mrf.mxu0
    %2713 = vdwg.mxu0
    %v2715 = vsel %vm163, %v2629, 0
    %2717 = vmatprep.subr.mxu0 0.0
    %2718 = vmatpush1.msra.mxu0 0.0
    %2719 = vmatprep.subr.mxu0 0.0
    %2720 = vmatpush1.msra.mxu0 0.0
    %2721 = vmatprep.subr.mxu0 0.0
    %2722 = vmatpush1.msra.mxu0 0.0
    %2723 = vmatprep.subr.mxu0 0.0
    %2724 = vmatpush1.msra.mxu0 0.0
    %2725 = vmatprep.subr.mxu0 0.0
    %2726 = vmatpush1.msra.mxu0 0.0
    %2727 = vmatprep.subr.mxu0 0.0
    %2728 = vmatpush1.msra.mxu0 0.0
    %2729 = vmatprep.subr.mxu0 0.0
    %2730 = vmatpush1.msra.mxu0 0.0
    %2731 = vmatprep.subr.mxu0 0.0
    %2732 = vmatpush1.msra.mxu0 0.0
    %2733 = vmatprep.subr.mxu0 0.0
    %2734 = vmatpush1.msra.mxu0 0.0
    %2735 = vmatprep.subr.mxu0 0.0
    %2736 = vmatpush1.msra.mxu0 0.0
    %2737 = vmatprep.subr.mxu0 0.0
    %2738 = vmatpush1.msra.mxu0 0.0
    %2739 = vmatprep.subr.mxu0 0.0
    %2740 = vmatpush1.msra.mxu0 0.0
    %2741 = vmatprep.subr.mxu0 0.0
    %2742 = vmatpush1.msra.mxu0 0.0
    %2743 = vmatprep.subr.mxu0 0.0
    %2744 = vmatpush1.msra.mxu0 0.0
    %2745 = vmatprep.subr.mxu0 0.0
    %2746 = vmatpush1.msra.mxu0 0.0
    %2747 = vmatprep.subr.mxu0 0.0
    %2748 = vmatpush1.msra.mxu0 %v2706
    %2749 = vmatprep.subr.mxu0 0.0
    %2750 = vmatpush2.msra.mxu0 0.0
    %2751 = vmatprep.subr.mxu0 0.0
    %2752 = vmatpush2.msra.mxu0 0.0
    %2753 = vmatprep.subr.mxu0 0.0
    %2754 = vmatpush2.msra.mxu0 0.0
    %2755 = vmatprep.subr.mxu0 0.0
    %2756 = vmatpush2.msra.mxu0 0.0
    %2757 = vmatprep.subr.mxu0 0.0
    %2758 = vmatpush2.msra.mxu0 0.0
    %2759 = vmatprep.subr.mxu0 0.0
    %2760 = vmatpush2.msra.mxu0 0.0
    %2761 = vmatprep.subr.mxu0 0.0
    %2762 = vmatpush2.msra.mxu0 0.0
    %2763 = vmatprep.subr.mxu0 0.0
    %2764 = vmatpush2.msra.mxu0 0.0
    %2765 = vmatprep.subr.mxu0 0.0
    %2766 = vmatpush2.msra.mxu0 0.0
    %2767 = vmatprep.subr.mxu0 0.0
    %2768 = vmatpush2.msra.mxu0 0.0
    %2769 = vmatprep.subr.mxu0 0.0
    %2770 = vmatpush2.msra.mxu0 0.0
    %2771 = vmatprep.subr.mxu0 0.0
    %2772 = vmatpush2.msra.mxu0 0.0
    %2773 = vmatprep.subr.mxu0 0.0
    %2774 = vmatpush2.msra.mxu0 0.0
    %2775 = vmatprep.subr.mxu0 0.0
    %2776 = vmatpush2.msra.mxu0 0.0
    %2777 = vmatprep.subr.mxu0 0.0
    %2778 = vmatpush2.msra.mxu0 0.0
    %2779 = vmatprep.subr.mxu0 0.0
    %2780 = vmatpush2.msra.mxu0 0.0
    %2781 = vmatprep.mubr.f32.mxu0 0.0
    %2782 = vmatmul.mubr.f32.gmra.mxu0 %v2715
    %v2783 = vpop.f32.mrf.mxu0
    %v2784 = vadd.f32 0.0, %v2783
    %v2785 = vpop.f32.mrf.mxu0
    %2786 = vdwg.mxu0
    %v2788 = vsel %vm163, %v2630, 0
    %2790 = vmatprep.subr.mxu0 0.0
    %2791 = vmatpush1.msra.mxu0 0.0
    %2792 = vmatprep.subr.mxu0 0.0
    %2793 = vmatpush1.msra.mxu0 0.0
    %2794 = vmatprep.subr.mxu0 0.0
    %2795 = vmatpush1.msra.mxu0 0.0
    %2796 = vmatprep.subr.mxu0 0.0
    %2797 = vmatpush1.msra.mxu0 0.0
    %2798 = vmatprep.subr.mxu0 0.0
    %2799 = vmatpush1.msra.mxu0 0.0
    %2800 = vmatprep.subr.mxu0 0.0
    %2801 = vmatpush1.msra.mxu0 0.0
    %2802 = vmatprep.subr.mxu0 0.0
    %2803 = vmatpush1.msra.mxu0 0.0
    %2804 = vmatprep.subr.mxu0 0.0
    %2805 = vmatpush1.msra.mxu0 0.0
    %2806 = vmatprep.subr.mxu0 0.0
    %2807 = vmatpush1.msra.mxu0 0.0
    %2808 = vmatprep.subr.mxu0 0.0
    %2809 = vmatpush1.msra.mxu0 0.0
    %2810 = vmatprep.subr.mxu0 0.0
    %2811 = vmatpush1.msra.mxu0 0.0
    %2812 = vmatprep.subr.mxu0 0.0
    %2813 = vmatpush1.msra.mxu0 0.0
    %2814 = vmatprep.subr.mxu0 0.0
    %2815 = vmatpush1.msra.mxu0 0.0
    %2816 = vmatprep.subr.mxu0 0.0
    %2817 = vmatpush1.msra.mxu0 0.0
    %2818 = vmatprep.subr.mxu0 0.0
    %2819 = vmatpush1.msra.mxu0 0.0
    %2820 = vmatprep.subr.mxu0 0.0
    %2821 = vmatpush1.msra.mxu0 %v2711
    %2822 = vmatprep.subr.mxu0 0.0
    %2823 = vmatpush2.msra.mxu0 0.0
    %2824 = vmatprep.subr.mxu0 0.0
    %2825 = vmatpush2.msra.mxu0 0.0
    %2826 = vmatprep.subr.mxu0 0.0
    %2827 = vmatpush2.msra.mxu0 0.0
    %2828 = vmatprep.subr.mxu0 0.0
    %2829 = vmatpush2.msra.mxu0 0.0
    %2830 = vmatprep.subr.mxu0 0.0
    %2831 = vmatpush2.msra.mxu0 0.0
    %2832 = vmatprep.subr.mxu0 0.0
    %2833 = vmatpush2.msra.mxu0 0.0
    %2834 = vmatprep.subr.mxu0 0.0
    %2835 = vmatpush2.msra.mxu0 0.0
    %2836 = vmatprep.subr.mxu0 0.0
    %2837 = vmatpush2.msra.mxu0 0.0
    %2838 = vmatprep.subr.mxu0 0.0
    %2839 = vmatpush2.msra.mxu0 0.0
    %2840 = vmatprep.subr.mxu0 0.0
    %2841 = vmatpush2.msra.mxu0 0.0
    %2842 = vmatprep.subr.mxu0 0.0
    %2843 = vmatpush2.msra.mxu0 0.0
    %2844 = vmatprep.subr.mxu0 0.0
    %2845 = vmatpush2.msra.mxu0 0.0
    %2846 = vmatprep.subr.mxu0 0.0
    %2847 = vmatpush2.msra.mxu0 0.0
    %2848 = vmatprep.subr.mxu0 0.0
    %2849 = vmatpush2.msra.mxu0 0.0
    %2850 = vmatprep.subr.mxu0 0.0
    %2851 = vmatpush2.msra.mxu0 0.0
    %2852 = vmatprep.subr.mxu0 0.0
    %2853 = vmatpush2.msra.mxu0 0.0
    %2854 = vmatprep.mubr.f32.mxu0 0.0
    %2855 = vmatmul.mubr.f32.gmra.mxu0 %v2788
    %v2856 = vpop.f32.mrf.mxu0
    %v2857 = vadd.f32 0.0, %v2856
    %v2858 = vpop.f32.mrf.mxu0
    %2859 = vdwg.mxu0
    %v2860 = vadd.f32 %v2451, %v2784
    %v2861 = vadd.f32 %v2452, %v2857
    %2862 = vrot.lane.b32.xlu0 %v1941, 112
    %v2863 = vpop.permute.xlu0 %2862
    %2864 = vrot.lane.b32.xlu0 %v2026, 112
    %v2865 = vpop.permute.xlu0 %2864
    %v2866 = vsel %vm163, %v2863, 0
    %v2868 = vsel %vm163, %v2865, 0
    %2870 = vmatprep.subr.mxu0 0.0
    %2871 = vmatpush1.xpose.msra.mxu0 0.0
    %2872 = vmatprep.subr.mxu0 0.0
    %2873 = vmatpush1.xpose.msra.mxu0 0.0
    %2874 = vmatprep.subr.mxu0 0.0
    %2875 = vmatpush1.xpose.msra.mxu0 0.0
    %2876 = vmatprep.subr.mxu0 0.0
    %2877 = vmatpush1.xpose.msra.mxu0 0.0
    %2878 = vmatprep.subr.mxu0 0.0
    %2879 = vmatpush1.xpose.msra.mxu0 0.0
    %2880 = vmatprep.subr.mxu0 0.0
    %2881 = vmatpush1.xpose.msra.mxu0 0.0
    %2882 = vmatprep.subr.mxu0 0.0
    %2883 = vmatpush1.xpose.msra.mxu0 0.0
    %2884 = vmatprep.subr.mxu0 0.0
    %2885 = vmatpush1.xpose.msra.mxu0 0.0
    %2886 = vmatprep.subr.mxu0 0.0
    %2887 = vmatpush1.xpose.msra.mxu0 0.0
    %2888 = vmatprep.subr.mxu0 0.0
    %2889 = vmatpush1.xpose.msra.mxu0 0.0
    %2890 = vmatprep.subr.mxu0 0.0
    %2891 = vmatpush1.xpose.msra.mxu0 0.0
    %2892 = vmatprep.subr.mxu0 0.0
    %2893 = vmatpush1.xpose.msra.mxu0 0.0
    %2894 = vmatprep.subr.mxu0 0.0
    %2895 = vmatpush1.xpose.msra.mxu0 0.0
    %2896 = vmatprep.subr.mxu0 0.0
    %2897 = vmatpush1.xpose.msra.mxu0 0.0
    %2898 = vmatprep.subr.mxu0 0.0
    %2899 = vmatpush1.xpose.msra.mxu0 0.0
    %2900 = vmatprep.subr.mxu0 0.0
    %2901 = vmatpush1.xpose.msra.mxu0 %v2868
    %2902 = vmatprep.subr.mxu0 0.0
    %2903 = vmatpush2.xpose.msra.mxu0 0.0
    %2904 = vmatprep.subr.mxu0 0.0
    %2905 = vmatpush2.xpose.msra.mxu0 0.0
    %2906 = vmatprep.subr.mxu0 0.0
    %2907 = vmatpush2.xpose.msra.mxu0 0.0
    %2908 = vmatprep.subr.mxu0 0.0
    %2909 = vmatpush2.xpose.msra.mxu0 0.0
    %2910 = vmatprep.subr.mxu0 0.0
    %2911 = vmatpush2.xpose.msra.mxu0 0.0
    %2912 = vmatprep.subr.mxu0 0.0
    %2913 = vmatpush2.xpose.msra.mxu0 0.0
    %2914 = vmatprep.subr.mxu0 0.0
    %2915 = vmatpush2.xpose.msra.mxu0 0.0
    %2916 = vmatprep.subr.mxu0 0.0
    %2917 = vmatpush2.xpose.msra.mxu0 0.0
    %2918 = vmatprep.subr.mxu0 0.0
    %2919 = vmatpush2.xpose.msra.mxu0 0.0
    %2920 = vmatprep.subr.mxu0 0.0
    %2921 = vmatpush2.xpose.msra.mxu0 0.0
    %2922 = vmatprep.subr.mxu0 0.0
    %2923 = vmatpush2.xpose.msra.mxu0 0.0
    %2924 = vmatprep.subr.mxu0 0.0
    %2925 = vmatpush2.xpose.msra.mxu0 0.0
    %2926 = vmatprep.subr.mxu0 0.0
    %2927 = vmatpush2.xpose.msra.mxu0 0.0
    %2928 = vmatprep.subr.mxu0 0.0
    %2929 = vmatpush2.xpose.msra.mxu0 0.0
    %2930 = vmatprep.subr.mxu0 0.0
    %2931 = vmatpush2.xpose.msra.mxu0 0.0
    %2932 = vmatprep.subr.mxu0 0.0
    %2933 = vmatpush2.xpose.msra.mxu0 0.0
    %2934 = vmatprep.mubr.f32.mxu0 0.0
    %2935 = vmatmul.mubr.f32.gmra.mxu0 %v2866
    %v2936 = vpop.f32.mrf.mxu0
    %v2937 = vadd.f32 %v2042, %v2936
    %v2938 = vpop.f32.mrf.mxu0
    %2939 = vdwg.mxu0
    %2940 = vrot.lane.b32.xlu0 %v1946, 112
    %v2941 = vpop.permute.xlu0 %2940
    %2942 = vrot.lane.b32.xlu0 %v2031, 112
    %v2943 = vpop.permute.xlu0 %2942
    %v2944 = vsel %vm163, %v2941, 0
    %v2946 = vsel %vm163, %v2943, 0
    %2948 = vmatprep.subr.mxu0 0.0
    %2949 = vmatpush1.xpose.msra.mxu0 0.0
    %2950 = vmatprep.subr.mxu0 0.0
    %2951 = vmatpush1.xpose.msra.mxu0 0.0
    %2952 = vmatprep.subr.mxu0 0.0
    %2953 = vmatpush1.xpose.msra.mxu0 0.0
    %2954 = vmatprep.subr.mxu0 0.0
    %2955 = vmatpush1.xpose.msra.mxu0 0.0
    %2956 = vmatprep.subr.mxu0 0.0
    %2957 = vmatpush1.xpose.msra.mxu0 0.0
    %2958 = vmatprep.subr.mxu0 0.0
    %2959 = vmatpush1.xpose.msra.mxu0 0.0
    %2960 = vmatprep.subr.mxu0 0.0
    %2961 = vmatpush1.xpose.msra.mxu0 0.0
    %2962 = vmatprep.subr.mxu0 0.0
    %2963 = vmatpush1.xpose.msra.mxu0 0.0
    %2964 = vmatprep.subr.mxu0 0.0
    %2965 = vmatpush1.xpose.msra.mxu0 0.0
    %2966 = vmatprep.subr.mxu0 0.0
    %2967 = vmatpush1.xpose.msra.mxu0 0.0
    %2968 = vmatprep.subr.mxu0 0.0
    %2969 = vmatpush1.xpose.msra.mxu0 0.0
    %2970 = vmatprep.subr.mxu0 0.0
    %2971 = vmatpush1.xpose.msra.mxu0 0.0
    %2972 = vmatprep.subr.mxu0 0.0
    %2973 = vmatpush1.xpose.msra.mxu0 0.0
    %2974 = vmatprep.subr.mxu0 0.0
    %2975 = vmatpush1.xpose.msra.mxu0 0.0
    %2976 = vmatprep.subr.mxu0 0.0
    %2977 = vmatpush1.xpose.msra.mxu0 0.0
    %2978 = vmatprep.subr.mxu0 0.0
    %2979 = vmatpush1.xpose.msra.mxu0 %v2946
    %2980 = vmatprep.subr.mxu0 0.0
    %2981 = vmatpush2.xpose.msra.mxu0 0.0
    %2982 = vmatprep.subr.mxu0 0.0
    %2983 = vmatpush2.xpose.msra.mxu0 0.0
    %2984 = vmatprep.subr.mxu0 0.0
    %2985 = vmatpush2.xpose.msra.mxu0 0.0
    %2986 = vmatprep.subr.mxu0 0.0
    %2987 = vmatpush2.xpose.msra.mxu0 0.0
    %2988 = vmatprep.subr.mxu0 0.0
    %2989 = vmatpush2.xpose.msra.mxu0 0.0
    %2990 = vmatprep.subr.mxu0 0.0
    %2991 = vmatpush2.xpose.msra.mxu0 0.0
    %2992 = vmatprep.subr.mxu0 0.0
    %2993 = vmatpush2.xpose.msra.mxu0 0.0
    %2994 = vmatprep.subr.mxu0 0.0
    %2995 = vmatpush2.xpose.msra.mxu0 0.0
    %2996 = vmatprep.subr.mxu0 0.0
    %2997 = vmatpush2.xpose.msra.mxu0 0.0
    %2998 = vmatprep.subr.mxu0 0.0
    %2999 = vmatpush2.xpose.msra.mxu0 0.0
    %3000 = vmatprep.subr.mxu0 0.0
    %3001 = vmatpush2.xpose.msra.mxu0 0.0
    %3002 = vmatprep.subr.mxu0 0.0
    %3003 = vmatpush2.xpose.msra.mxu0 0.0
    %3004 = vmatprep.subr.mxu0 0.0
    %3005 = vmatpush2.xpose.msra.mxu0 0.0
    %3006 = vmatprep.subr.mxu0 0.0
    %3007 = vmatpush2.xpose.msra.mxu0 0.0
    %3008 = vmatprep.subr.mxu0 0.0
    %3009 = vmatpush2.xpose.msra.mxu0 0.0
    %3010 = vmatprep.subr.mxu0 0.0
    %3011 = vmatpush2.xpose.msra.mxu0 0.0
    %3012 = vmatprep.mubr.f32.mxu0 0.0
    %3013 = vmatmul.mubr.f32.gmra.mxu0 %v2944
    %v3014 = vpop.f32.mrf.mxu0
    %v3015 = vadd.f32 %v2122, %v3014
    %v3016 = vpop.f32.mrf.mxu0
    %3017 = vdwg.mxu0
    %v3018 = vsel %vm163, %v2937, -inf
    %3019 = vmax.xlane.f32.xlu0 %v3018
    %v3020 = vpop.xlane.xlu0 %3019
    %v3021 = vsel %vm163, %v3015, -inf
    %3022 = vmax.xlane.f32.xlu0 %v3021
    %v3023 = vpop.xlane.xlu0 %3022
    %v3024 = vsub.f32 %v2937, %v3020
    %v3025 = vsub.f32 %v3015, %v3023
    %v3026 = vmul.f32 %v3024, 1.442695
    %v3027 = vpow.pop %v3026
    %v3028 = vmul.f32 %v3025, 1.442695
    %v3029 = vpow.pop %v3028
    %v3030 = vsel %vm163, %v3027, 0.0
    %3031 = vadd.xlane.f32.xlu0 %v3030
    %v3032 = vpop.xlane.xlu0 %3031
    %v3033 = vsel %vm163, %v3029, 0.0
    %3034 = vadd.xlane.f32.xlu0 %v3033
    %v3035 = vpop.xlane.xlu0 %3034
    %v3036 = vrcp.pop %v3032
    %v3037 = vrcp.pop %v3035
    %v3038 = vmul.f32 %v3027, %v3036
    %v3039 = vmul.f32 %v3029, %v3037
    %3040 = vrot.lane.b32.xlu0 %v2026, 80
    %v3041 = vpop.permute.xlu0 %3040
    %3042 = vrot.lane.b32.xlu0 %v2031, 80
    %v3043 = vpop.permute.xlu0 %3042
    %v3044 = vsel %vm163, %v3041, 0
    %v3046 = vsel %vm163, %v3043, 0
    %3048 = vmatprep.subr.mxu0 0.0
    %3049 = vmatpush1.msra.mxu0 0.0
    %3050 = vmatprep.subr.mxu0 0.0
    %3051 = vmatpush1.msra.mxu0 0.0
    %3052 = vmatprep.subr.mxu0 0.0
    %3053 = vmatpush1.msra.mxu0 0.0
    %3054 = vmatprep.subr.mxu0 0.0
    %3055 = vmatpush1.msra.mxu0 0.0
    %3056 = vmatprep.subr.mxu0 0.0
    %3057 = vmatpush1.msra.mxu0 0.0
    %3058 = vmatprep.subr.mxu0 0.0
    %3059 = vmatpush1.msra.mxu0 0.0
    %3060 = vmatprep.subr.mxu0 0.0
    %3061 = vmatpush1.msra.mxu0 0.0
    %3062 = vmatprep.subr.mxu0 0.0
    %3063 = vmatpush1.msra.mxu0 0.0
    %3064 = vmatprep.subr.mxu0 0.0
    %3065 = vmatpush1.msra.mxu0 0.0
    %3066 = vmatprep.subr.mxu0 0.0
    %3067 = vmatpush1.msra.mxu0 0.0
    %3068 = vmatprep.subr.mxu0 0.0
    %3069 = vmatpush1.msra.mxu0 0.0
    %3070 = vmatprep.subr.mxu0 0.0
    %3071 = vmatpush1.msra.mxu0 0.0
    %3072 = vmatprep.subr.mxu0 0.0
    %3073 = vmatpush1.msra.mxu0 0.0
    %3074 = vmatprep.subr.mxu0 0.0
    %3075 = vmatpush1.msra.mxu0 0.0
    %3076 = vmatprep.subr.mxu0 0.0
    %3077 = vmatpush1.msra.mxu0 0.0
    %3078 = vmatprep.subr.mxu0 0.0
    %3079 = vmatpush1.msra.mxu0 %v52
    %3080 = vmatprep.subr.mxu0 0.0
    %3081 = vmatpush2.msra.mxu0 0.0
    %3082 = vmatprep.subr.mxu0 0.0
    %3083 = vmatpush2.msra.mxu0 0.0
    %3084 = vmatprep.subr.mxu0 0.0
    %3085 = vmatpush2.msra.mxu0 0.0
    %3086 = vmatprep.subr.mxu0 0.0
    %3087 = vmatpush2.msra.mxu0 0.0
    %3088 = vmatprep.subr.mxu0 0.0
    %3089 = vmatpush2.msra.mxu0 0.0
    %3090 = vmatprep.subr.mxu0 0.0
    %3091 = vmatpush2.msra.mxu0 0.0
    %3092 = vmatprep.subr.mxu0 0.0
    %3093 = vmatpush2.msra.mxu0 0.0
    %3094 = vmatprep.subr.mxu0 0.0
    %3095 = vmatpush2.msra.mxu0 0.0
    %3096 = vmatprep.subr.mxu0 0.0
    %3097 = vmatpush2.msra.mxu0 0.0
    %3098 = vmatprep.subr.mxu0 0.0
    %3099 = vmatpush2.msra.mxu0 0.0
    %3100 = vmatprep.subr.mxu0 0.0
    %3101 = vmatpush2.msra.mxu0 0.0
    %3102 = vmatprep.subr.mxu0 0.0
    %3103 = vmatpush2.msra.mxu0 0.0
    %3104 = vmatprep.subr.mxu0 0.0
    %3105 = vmatpush2.msra.mxu0 0.0
    %3106 = vmatprep.subr.mxu0 0.0
    %3107 = vmatpush2.msra.mxu0 0.0
    %3108 = vmatprep.subr.mxu0 0.0
    %3109 = vmatpush2.msra.mxu0 0.0
    %3110 = vmatprep.subr.mxu0 0.0
    %3111 = vmatpush2.msra.mxu0 0.0
    %3112 = vmatprep.mubr.f32.mxu0 0.0
    %3113 = vmatmul.mubr.f32.gmra.mxu0 %v3044
    %v3114 = vpop.f32.mrf.mxu0
    %v3115 = vadd.f32 0.0, %v3114
    %v3116 = vpop.f32.mrf.mxu0
    %3117 = vmatprep.mubr.f32.mxu0 0.0
    %3118 = vmatmul.mubr.f32.gmra.mxu0 %v3046
    %v3119 = vpop.f32.mrf.mxu0
    %v3120 = vadd.f32 0.0, %v3119
    %v3121 = vpop.f32.mrf.mxu0
    %3122 = vdwg.mxu0
    %v3124 = vsel %vm163, %v3038, 0
    %3126 = vmatprep.subr.mxu0 0.0
    %3127 = vmatpush1.msra.mxu0 0.0
    %3128 = vmatprep.subr.mxu0 0.0
    %3129 = vmatpush1.msra.mxu0 0.0
    %3130 = vmatprep.subr.mxu0 0.0
    %3131 = vmatpush1.msra.mxu0 0.0
    %3132 = vmatprep.subr.mxu0 0.0
    %3133 = vmatpush1.msra.mxu0 0.0
    %3134 = vmatprep.subr.mxu0 0.0
    %3135 = vmatpush1.msra.mxu0 0.0
    %3136 = vmatprep.subr.mxu0 0.0
    %3137 = vmatpush1.msra.mxu0 0.0
    %3138 = vmatprep.subr.mxu0 0.0
    %3139 = vmatpush1.msra.mxu0 0.0
    %3140 = vmatprep.subr.mxu0 0.0
    %3141 = vmatpush1.msra.mxu0 0.0
    %3142 = vmatprep.subr.mxu0 0.0
    %3143 = vmatpush1.msra.mxu0 0.0
    %3144 = vmatprep.subr.mxu0 0.0
    %3145 = vmatpush1.msra.mxu0 0.0
    %3146 = vmatprep.subr.mxu0 0.0
    %3147 = vmatpush1.msra.mxu0 0.0
    %3148 = vmatprep.subr.mxu0 0.0
    %3149 = vmatpush1.msra.mxu0 0.0
    %3150 = vmatprep.subr.mxu0 0.0
    %3151 = vmatpush1.msra.mxu0 0.0
    %3152 = vmatprep.subr.mxu0 0.0
    %3153 = vmatpush1.msra.mxu0 0.0
    %3154 = vmatprep.subr.mxu0 0.0
    %3155 = vmatpush1.msra.mxu0 0.0
    %3156 = vmatprep.subr.mxu0 0.0
    %3157 = vmatpush1.msra.mxu0 %v3115
    %3158 = vmatprep.subr.mxu0 0.0
    %3159 = vmatpush2.msra.mxu0 0.0
    %3160 = vmatprep.subr.mxu0 0.0
    %3161 = vmatpush2.msra.mxu0 0.0
    %3162 = vmatprep.subr.mxu0 0.0
    %3163 = vmatpush2.msra.mxu0 0.0
    %3164 = vmatprep.subr.mxu0 0.0
    %3165 = vmatpush2.msra.mxu0 0.0
    %3166 = vmatprep.subr.mxu0 0.0
    %3167 = vmatpush2.msra.mxu0 0.0
    %3168 = vmatprep.subr.mxu0 0.0
    %3169 = vmatpush2.msra.mxu0 0.0
    %3170 = vmatprep.subr.mxu0 0.0
    %3171 = vmatpush2.msra.mxu0 0.0
    %3172 = vmatprep.subr.mxu0 0.0
    %3173 = vmatpush2.msra.mxu0 0.0
    %3174 = vmatprep.subr.mxu0 0.0
    %3175 = vmatpush2.msra.mxu0 0.0
    %3176 = vmatprep.subr.mxu0 0.0
    %3177 = vmatpush2.msra.mxu0 0.0
    %3178 = vmatprep.subr.mxu0 0.0
    %3179 = vmatpush2.msra.mxu0 0.0
    %3180 = vmatprep.subr.mxu0 0.0
    %3181 = vmatpush2.msra.mxu0 0.0
    %3182 = vmatprep.subr.mxu0 0.0
    %3183 = vmatpush2.msra.mxu0 0.0
    %3184 = vmatprep.subr.mxu0 0.0
    %3185 = vmatpush2.msra.mxu0 0.0
    %3186 = vmatprep.subr.mxu0 0.0
    %3187 = vmatpush2.msra.mxu0 0.0
    %3188 = vmatprep.subr.mxu0 0.0
    %3189 = vmatpush2.msra.mxu0 0.0
    %3190 = vmatprep.mubr.f32.mxu0 0.0
    %3191 = vmatmul.mubr.f32.gmra.mxu0 %v3124
    %v3192 = vpop.f32.mrf.mxu0
    %v3193 = vadd.f32 0.0, %v3192
    %v3194 = vpop.f32.mrf.mxu0
    %3195 = vdwg.mxu0
    %v3197 = vsel %vm163, %v3039, 0
    %3199 = vmatprep.subr.mxu0 0.0
    %3200 = vmatpush1.msra.mxu0 0.0
    %3201 = vmatprep.subr.mxu0 0.0
    %3202 = vmatpush1.msra.mxu0 0.0
    %3203 = vmatprep.subr.mxu0 0.0
    %3204 = vmatpush1.msra.mxu0 0.0
    %3205 = vmatprep.subr.mxu0 0.0
    %3206 = vmatpush1.msra.mxu0 0.0
    %3207 = vmatprep.subr.mxu0 0.0
    %3208 = vmatpush1.msra.mxu0 0.0
    %3209 = vmatprep.subr.mxu0 0.0
    %3210 = vmatpush1.msra.mxu0 0.0
    %3211 = vmatprep.subr.mxu0 0.0
    %3212 = vmatpush1.msra.mxu0 0.0
    %3213 = vmatprep.subr.mxu0 0.0
    %3214 = vmatpush1.msra.mxu0 0.0
    %3215 = vmatprep.subr.mxu0 0.0
    %3216 = vmatpush1.msra.mxu0 0.0
    %3217 = vmatprep.subr.mxu0 0.0
    %3218 = vmatpush1.msra.mxu0 0.0
    %3219 = vmatprep.subr.mxu0 0.0
    %3220 = vmatpush1.msra.mxu0 0.0
    %3221 = vmatprep.subr.mxu0 0.0
    %3222 = vmatpush1.msra.mxu0 0.0
    %3223 = vmatprep.subr.mxu0 0.0
    %3224 = vmatpush1.msra.mxu0 0.0
    %3225 = vmatprep.subr.mxu0 0.0
    %3226 = vmatpush1.msra.mxu0 0.0
    %3227 = vmatprep.subr.mxu0 0.0
    %3228 = vmatpush1.msra.mxu0 0.0
    %3229 = vmatprep.subr.mxu0 0.0
    %3230 = vmatpush1.msra.mxu0 %v3120
    %3231 = vmatprep.subr.mxu0 0.0
    %3232 = vmatpush2.msra.mxu0 0.0
    %3233 = vmatprep.subr.mxu0 0.0
    %3234 = vmatpush2.msra.mxu0 0.0
    %3235 = vmatprep.subr.mxu0 0.0
    %3236 = vmatpush2.msra.mxu0 0.0
    %3237 = vmatprep.subr.mxu0 0.0
    %3238 = vmatpush2.msra.mxu0 0.0
    %3239 = vmatprep.subr.mxu0 0.0
    %3240 = vmatpush2.msra.mxu0 0.0
    %3241 = vmatprep.subr.mxu0 0.0
    %3242 = vmatpush2.msra.mxu0 0.0
    %3243 = vmatprep.subr.mxu0 0.0
    %3244 = vmatpush2.msra.mxu0 0.0
    %3245 = vmatprep.subr.mxu0 0.0
    %3246 = vmatpush2.msra.mxu0 0.0
    %3247 = vmatprep.subr.mxu0 0.0
    %3248 = vmatpush2.msra.mxu0 0.0
    %3249 = vmatprep.subr.mxu0 0.0
    %3250 = vmatpush2.msra.mxu0 0.0
    %3251 = vmatprep.subr.mxu0 0.0
    %3252 = vmatpush2.msra.mxu0 0.0
    %3253 = vmatprep.subr.mxu0 0.0
    %3254 = vmatpush2.msra.mxu0 0.0
    %3255 = vmatprep.subr.mxu0 0.0
    %3256 = vmatpush2.msra.mxu0 0.0
    %3257 = vmatprep.subr.mxu0 0.0
    %3258 = vmatpush2.msra.mxu0 0.0
    %3259 = vmatprep.subr.mxu0 0.0
    %3260 = vmatpush2.msra.mxu0 0.0
    %3261 = vmatprep.subr.mxu0 0.0
    %3262 = vmatpush2.msra.mxu0 0.0
    %3263 = vmatprep.mubr.f32.mxu0 0.0
    %3264 = vmatmul.mubr.f32.gmra.mxu0 %v3197
    %v3265 = vpop.f32.mrf.mxu0
    %v3266 = vadd.f32 0.0, %v3265
    %v3267 = vpop.f32.mrf.mxu0
    %3268 = vdwg.mxu0
    %v3269 = vadd.f32 %v2860, %v3193
    %v3270 = vadd.f32 %v2861, %v3266
    %3271 = vrot.lane.b32.xlu0 %v1941, 104
    %v3272 = vpop.permute.xlu0 %3271
    %3273 = vrot.lane.b32.xlu0 %v2026, 104
    %v3274 = vpop.permute.xlu0 %3273
    %v3275 = vsel %vm163, %v3272, 0
    %v3277 = vsel %vm163, %v3274, 0
    %3279 = vmatprep.subr.mxu0 0.0
    %3280 = vmatpush1.xpose.msra.mxu0 0.0
    %3281 = vmatprep.subr.mxu0 0.0
    %3282 = vmatpush1.xpose.msra.mxu0 0.0
    %3283 = vmatprep.subr.mxu0 0.0
    %3284 = vmatpush1.xpose.msra.mxu0 0.0
    %3285 = vmatprep.subr.mxu0 0.0
    %3286 = vmatpush1.xpose.msra.mxu0 0.0
    %3287 = vmatprep.subr.mxu0 0.0
    %3288 = vmatpush1.xpose.msra.mxu0 0.0
    %3289 = vmatprep.subr.mxu0 0.0
    %3290 = vmatpush1.xpose.msra.mxu0 0.0
    %3291 = vmatprep.subr.mxu0 0.0
    %3292 = vmatpush1.xpose.msra.mxu0 0.0
    %3293 = vmatprep.subr.mxu0 0.0
    %3294 = vmatpush1.xpose.msra.mxu0 0.0
    %3295 = vmatprep.subr.mxu0 0.0
    %3296 = vmatpush1.xpose.msra.mxu0 0.0
    %3297 = vmatprep.subr.mxu0 0.0
    %3298 = vmatpush1.xpose.msra.mxu0 0.0
    %3299 = vmatprep.subr.mxu0 0.0
    %3300 = vmatpush1.xpose.msra.mxu0 0.0
    %3301 = vmatprep.subr.mxu0 0.0
    %3302 = vmatpush1.xpose.msra.mxu0 0.0
    %3303 = vmatprep.subr.mxu0 0.0
    %3304 = vmatpush1.xpose.msra.mxu0 0.0
    %3305 = vmatprep.subr.mxu0 0.0
    %3306 = vmatpush1.xpose.msra.mxu0 0.0
    %3307 = vmatprep.subr.mxu0 0.0
    %3308 = vmatpush1.xpose.msra.mxu0 0.0
    %3309 = vmatprep.subr.mxu0 0.0
    %3310 = vmatpush1.xpose.msra.mxu0 %v3277
    %3311 = vmatprep.subr.mxu0 0.0
    %3312 = vmatpush2.xpose.msra.mxu0 0.0
    %3313 = vmatprep.subr.mxu0 0.0
    %3314 = vmatpush2.xpose.msra.mxu0 0.0
    %3315 = vmatprep.subr.mxu0 0.0
    %3316 = vmatpush2.xpose.msra.mxu0 0.0
    %3317 = vmatprep.subr.mxu0 0.0
    %3318 = vmatpush2.xpose.msra.mxu0 0.0
    %3319 = vmatprep.subr.mxu0 0.0
    %3320 = vmatpush2.xpose.msra.mxu0 0.0
    %3321 = vmatprep.subr.mxu0 0.0
    %3322 = vmatpush2.xpose.msra.mxu0 0.0
    %3323 = vmatprep.subr.mxu0 0.0
    %3324 = vmatpush2.xpose.msra.mxu0 0.0
    %3325 = vmatprep.subr.mxu0 0.0
    %3326 = vmatpush2.xpose.msra.mxu0 0.0
    %3327 = vmatprep.subr.mxu0 0.0
    %3328 = vmatpush2.xpose.msra.mxu0 0.0
    %3329 = vmatprep.subr.mxu0 0.0
    %3330 = vmatpush2.xpose.msra.mxu0 0.0
    %3331 = vmatprep.subr.mxu0 0.0
    %3332 = vmatpush2.xpose.msra.mxu0 0.0
    %3333 = vmatprep.subr.mxu0 0.0
    %3334 = vmatpush2.xpose.msra.mxu0 0.0
    %3335 = vmatprep.subr.mxu0 0.0
    %3336 = vmatpush2.xpose.msra.mxu0 0.0
    %3337 = vmatprep.subr.mxu0 0.0
    %3338 = vmatpush2.xpose.msra.mxu0 0.0
    %3339 = vmatprep.subr.mxu0 0.0
    %3340 = vmatpush2.xpose.msra.mxu0 0.0
    %3341 = vmatprep.subr.mxu0 0.0
    %3342 = vmatpush2.xpose.msra.mxu0 0.0
    %3343 = vmatprep.mubr.f32.mxu0 0.0
    %3344 = vmatmul.mubr.f32.gmra.mxu0 %v3275
    %v3345 = vpop.f32.mrf.mxu0
    %v3346 = vadd.f32 %v2042, %v3345
    %v3347 = vpop.f32.mrf.mxu0
    %3348 = vdwg.mxu0
    %3349 = vrot.lane.b32.xlu0 %v1946, 104
    %v3350 = vpop.permute.xlu0 %3349
    %3351 = vrot.lane.b32.xlu0 %v2031, 104
    %v3352 = vpop.permute.xlu0 %3351
    %v3353 = vsel %vm163, %v3350, 0
    %v3355 = vsel %vm163, %v3352, 0
    %3357 = vmatprep.subr.mxu0 0.0
    %3358 = vmatpush1.xpose.msra.mxu0 0.0
    %3359 = vmatprep.subr.mxu0 0.0
    %3360 = vmatpush1.xpose.msra.mxu0 0.0
    %3361 = vmatprep.subr.mxu0 0.0
    %3362 = vmatpush1.xpose.msra.mxu0 0.0
    %3363 = vmatprep.subr.mxu0 0.0
    %3364 = vmatpush1.xpose.msra.mxu0 0.0
    %3365 = vmatprep.subr.mxu0 0.0
    %3366 = vmatpush1.xpose.msra.mxu0 0.0
    %3367 = vmatprep.subr.mxu0 0.0
    %3368 = vmatpush1.xpose.msra.mxu0 0.0
    %3369 = vmatprep.subr.mxu0 0.0
    %3370 = vmatpush1.xpose.msra.mxu0 0.0
    %3371 = vmatprep.subr.mxu0 0.0
    %3372 = vmatpush1.xpose.msra.mxu0 0.0
    %3373 = vmatprep.subr.mxu0 0.0
    %3374 = vmatpush1.xpose.msra.mxu0 0.0
    %3375 = vmatprep.subr.mxu0 0.0
    %3376 = vmatpush1.xpose.msra.mxu0 0.0
    %3377 = vmatprep.subr.mxu0 0.0
    %3378 = vmatpush1.xpose.msra.mxu0 0.0
    %3379 = vmatprep.subr.mxu0 0.0
    %3380 = vmatpush1.xpose.msra.mxu0 0.0
    %3381 = vmatprep.subr.mxu0 0.0
    %3382 = vmatpush1.xpose.msra.mxu0 0.0
    %3383 = vmatprep.subr.mxu0 0.0
    %3384 = vmatpush1.xpose.msra.mxu0 0.0
    %3385 = vmatprep.subr.mxu0 0.0
    %3386 = vmatpush1.xpose.msra.mxu0 0.0
    %3387 = vmatprep.subr.mxu0 0.0
    %3388 = vmatpush1.xpose.msra.mxu0 %v3355
    %3389 = vmatprep.subr.mxu0 0.0
    %3390 = vmatpush2.xpose.msra.mxu0 0.0
    %3391 = vmatprep.subr.mxu0 0.0
    %3392 = vmatpush2.xpose.msra.mxu0 0.0
    %3393 = vmatprep.subr.mxu0 0.0
    %3394 = vmatpush2.xpose.msra.mxu0 0.0
    %3395 = vmatprep.subr.mxu0 0.0
    %3396 = vmatpush2.xpose.msra.mxu0 0.0
    %3397 = vmatprep.subr.mxu0 0.0
    %3398 = vmatpush2.xpose.msra.mxu0 0.0
    %3399 = vmatprep.subr.mxu0 0.0
    %3400 = vmatpush2.xpose.msra.mxu0 0.0
    %3401 = vmatprep.subr.mxu0 0.0
    %3402 = vmatpush2.xpose.msra.mxu0 0.0
    %3403 = vmatprep.subr.mxu0 0.0
    %3404 = vmatpush2.xpose.msra.mxu0 0.0
    %3405 = vmatprep.subr.mxu0 0.0
    %3406 = vmatpush2.xpose.msra.mxu0 0.0
    %3407 = vmatprep.subr.mxu0 0.0
    %3408 = vmatpush2.xpose.msra.mxu0 0.0
    %3409 = vmatprep.subr.mxu0 0.0
    %3410 = vmatpush2.xpose.msra.mxu0 0.0
    %3411 = vmatprep.subr.mxu0 0.0
    %3412 = vmatpush2.xpose.msra.mxu0 0.0
    %3413 = vmatprep.subr.mxu0 0.0
    %3414 = vmatpush2.xpose.msra.mxu0 0.0
    %3415 = vmatprep.subr.mxu0 0.0
    %3416 = vmatpush2.xpose.msra.mxu0 0.0
    %3417 = vmatprep.subr.mxu0 0.0
    %3418 = vmatpush2.xpose.msra.mxu0 0.0
    %3419 = vmatprep.subr.mxu0 0.0
    %3420 = vmatpush2.xpose.msra.mxu0 0.0
    %3421 = vmatprep.mubr.f32.mxu0 0.0
    %3422 = vmatmul.mubr.f32.gmra.mxu0 %v3353
    %v3423 = vpop.f32.mrf.mxu0
    %v3424 = vadd.f32 %v2122, %v3423
    %v3425 = vpop.f32.mrf.mxu0
    %3426 = vdwg.mxu0
    %v3427 = vsel %vm163, %v3346, -inf
    %3428 = vmax.xlane.f32.xlu0 %v3427
    %v3429 = vpop.xlane.xlu0 %3428
    %v3430 = vsel %vm163, %v3424, -inf
    %3431 = vmax.xlane.f32.xlu0 %v3430
    %v3432 = vpop.xlane.xlu0 %3431
    %v3433 = vsub.f32 %v3346, %v3429
    %v3434 = vsub.f32 %v3424, %v3432
    %v3435 = vmul.f32 %v3433, 1.442695
    %v3436 = vpow.pop %v3435
    %v3437 = vmul.f32 %v3434, 1.442695
    %v3438 = vpow.pop %v3437
    %v3439 = vsel %vm163, %v3436, 0.0
    %3440 = vadd.xlane.f32.xlu0 %v3439
    %v3441 = vpop.xlane.xlu0 %3440
    %v3442 = vsel %vm163, %v3438, 0.0
    %3443 = vadd.xlane.f32.xlu0 %v3442
    %v3444 = vpop.xlane.xlu0 %3443
    %v3445 = vrcp.pop %v3441
    %v3446 = vrcp.pop %v3444
    %v3447 = vmul.f32 %v3436, %v3445
    %v3448 = vmul.f32 %v3438, %v3446
    %3449 = vrot.lane.b32.xlu0 %v2026, 72
    %v3450 = vpop.permute.xlu0 %3449
    %3451 = vrot.lane.b32.xlu0 %v2031, 72
    %v3452 = vpop.permute.xlu0 %3451
    %v3453 = vsel %vm163, %v3450, 0
    %v3455 = vsel %vm163, %v3452, 0
    %3457 = vmatprep.subr.mxu0 0.0
    %3458 = vmatpush1.msra.mxu0 0.0
    %3459 = vmatprep.subr.mxu0 0.0
    %3460 = vmatpush1.msra.mxu0 0.0
    %3461 = vmatprep.subr.mxu0 0.0
    %3462 = vmatpush1.msra.mxu0 0.0
    %3463 = vmatprep.subr.mxu0 0.0
    %3464 = vmatpush1.msra.mxu0 0.0
    %3465 = vmatprep.subr.mxu0 0.0
    %3466 = vmatpush1.msra.mxu0 0.0
    %3467 = vmatprep.subr.mxu0 0.0
    %3468 = vmatpush1.msra.mxu0 0.0
    %3469 = vmatprep.subr.mxu0 0.0
    %3470 = vmatpush1.msra.mxu0 0.0
    %3471 = vmatprep.subr.mxu0 0.0
    %3472 = vmatpush1.msra.mxu0 0.0
    %3473 = vmatprep.subr.mxu0 0.0
    %3474 = vmatpush1.msra.mxu0 0.0
    %3475 = vmatprep.subr.mxu0 0.0
    %3476 = vmatpush1.msra.mxu0 0.0
    %3477 = vmatprep.subr.mxu0 0.0
    %3478 = vmatpush1.msra.mxu0 0.0
    %3479 = vmatprep.subr.mxu0 0.0
    %3480 = vmatpush1.msra.mxu0 0.0
    %3481 = vmatprep.subr.mxu0 0.0
    %3482 = vmatpush1.msra.mxu0 0.0
    %3483 = vmatprep.subr.mxu0 0.0
    %3484 = vmatpush1.msra.mxu0 0.0
    %3485 = vmatprep.subr.mxu0 0.0
    %3486 = vmatpush1.msra.mxu0 0.0
    %3487 = vmatprep.subr.mxu0 0.0
    %3488 = vmatpush1.msra.mxu0 %v53
    %3489 = vmatprep.subr.mxu0 0.0
    %3490 = vmatpush2.msra.mxu0 0.0
    %3491 = vmatprep.subr.mxu0 0.0
    %3492 = vmatpush2.msra.mxu0 0.0
    %3493 = vmatprep.subr.mxu0 0.0
    %3494 = vmatpush2.msra.mxu0 0.0
    %3495 = vmatprep.subr.mxu0 0.0
    %3496 = vmatpush2.msra.mxu0 0.0
    %3497 = vmatprep.subr.mxu0 0.0
    %3498 = vmatpush2.msra.mxu0 0.0
    %3499 = vmatprep.subr.mxu0 0.0
    %3500 = vmatpush2.msra.mxu0 0.0
    %3501 = vmatprep.subr.mxu0 0.0
    %3502 = vmatpush2.msra.mxu0 0.0
    %3503 = vmatprep.subr.mxu0 0.0
    %3504 = vmatpush2.msra.mxu0 0.0
    %3505 = vmatprep.subr.mxu0 0.0
    %3506 = vmatpush2.msra.mxu0 0.0
    %3507 = vmatprep.subr.mxu0 0.0
    %3508 = vmatpush2.msra.mxu0 0.0
    %3509 = vmatprep.subr.mxu0 0.0
    %3510 = vmatpush2.msra.mxu0 0.0
    %3511 = vmatprep.subr.mxu0 0.0
    %3512 = vmatpush2.msra.mxu0 0.0
    %3513 = vmatprep.subr.mxu0 0.0
    %3514 = vmatpush2.msra.mxu0 0.0
    %3515 = vmatprep.subr.mxu0 0.0
    %3516 = vmatpush2.msra.mxu0 0.0
    %3517 = vmatprep.subr.mxu0 0.0
    %3518 = vmatpush2.msra.mxu0 0.0
    %3519 = vmatprep.subr.mxu0 0.0
    %3520 = vmatpush2.msra.mxu0 0.0
    %3521 = vmatprep.mubr.f32.mxu0 0.0
    %3522 = vmatmul.mubr.f32.gmra.mxu0 %v3453
    %v3523 = vpop.f32.mrf.mxu0
    %v3524 = vadd.f32 0.0, %v3523
    %v3525 = vpop.f32.mrf.mxu0
    %3526 = vmatprep.mubr.f32.mxu0 0.0
    %3527 = vmatmul.mubr.f32.gmra.mxu0 %v3455
    %v3528 = vpop.f32.mrf.mxu0
    %v3529 = vadd.f32 0.0, %v3528
    %v3530 = vpop.f32.mrf.mxu0
    %3531 = vdwg.mxu0
    %v3533 = vsel %vm163, %v3447, 0
    %3535 = vmatprep.subr.mxu0 0.0
    %3536 = vmatpush1.msra.mxu0 0.0
    %3537 = vmatprep.subr.mxu0 0.0
    %3538 = vmatpush1.msra.mxu0 0.0
    %3539 = vmatprep.subr.mxu0 0.0
    %3540 = vmatpush1.msra.mxu0 0.0
    %3541 = vmatprep.subr.mxu0 0.0
    %3542 = vmatpush1.msra.mxu0 0.0
    %3543 = vmatprep.subr.mxu0 0.0
    %3544 = vmatpush1.msra.mxu0 0.0
    %3545 = vmatprep.subr.mxu0 0.0
    %3546 = vmatpush1.msra.mxu0 0.0
    %3547 = vmatprep.subr.mxu0 0.0
    %3548 = vmatpush1.msra.mxu0 0.0
    %3549 = vmatprep.subr.mxu0 0.0
    %3550 = vmatpush1.msra.mxu0 0.0
    %3551 = vmatprep.subr.mxu0 0.0
    %3552 = vmatpush1.msra.mxu0 0.0
    %3553 = vmatprep.subr.mxu0 0.0
    %3554 = vmatpush1.msra.mxu0 0.0
    %3555 = vmatprep.subr.mxu0 0.0
    %3556 = vmatpush1.msra.mxu0 0.0
    %3557 = vmatprep.subr.mxu0 0.0
    %3558 = vmatpush1.msra.mxu0 0.0
    %3559 = vmatprep.subr.mxu0 0.0
    %3560 = vmatpush1.msra.mxu0 0.0
    %3561 = vmatprep.subr.mxu0 0.0
    %3562 = vmatpush1.msra.mxu0 0.0
    %3563 = vmatprep.subr.mxu0 0.0
    %3564 = vmatpush1.msra.mxu0 0.0
    %3565 = vmatprep.subr.mxu0 0.0
    %3566 = vmatpush1.msra.mxu0 %v3524
    %3567 = vmatprep.subr.mxu0 0.0
    %3568 = vmatpush2.msra.mxu0 0.0
    %3569 = vmatprep.subr.mxu0 0.0
    %3570 = vmatpush2.msra.mxu0 0.0
    %3571 = vmatprep.subr.mxu0 0.0
    %3572 = vmatpush2.msra.mxu0 0.0
    %3573 = vmatprep.subr.mxu0 0.0
    %3574 = vmatpush2.msra.mxu0 0.0
    %3575 = vmatprep.subr.mxu0 0.0
    %3576 = vmatpush2.msra.mxu0 0.0
    %3577 = vmatprep.subr.mxu0 0.0
    %3578 = vmatpush2.msra.mxu0 0.0
    %3579 = vmatprep.subr.mxu0 0.0
    %3580 = vmatpush2.msra.mxu0 0.0
    %3581 = vmatprep.subr.mxu0 0.0
    %3582 = vmatpush2.msra.mxu0 0.0
    %3583 = vmatprep.subr.mxu0 0.0
    %3584 = vmatpush2.msra.mxu0 0.0
    %3585 = vmatprep.subr.mxu0 0.0
    %3586 = vmatpush2.msra.mxu0 0.0
    %3587 = vmatprep.subr.mxu0 0.0
    %3588 = vmatpush2.msra.mxu0 0.0
    %3589 = vmatprep.subr.mxu0 0.0
    %3590 = vmatpush2.msra.mxu0 0.0
    %3591 = vmatprep.subr.mxu0 0.0
    %3592 = vmatpush2.msra.mxu0 0.0
    %3593 = vmatprep.subr.mxu0 0.0
    %3594 = vmatpush2.msra.mxu0 0.0
    %3595 = vmatprep.subr.mxu0 0.0
    %3596 = vmatpush2.msra.mxu0 0.0
    %3597 = vmatprep.subr.mxu0 0.0
    %3598 = vmatpush2.msra.mxu0 0.0
    %3599 = vmatprep.mubr.f32.mxu0 0.0
    %3600 = vmatmul.mubr.f32.gmra.mxu0 %v3533
    %v3601 = vpop.f32.mrf.mxu0
    %v3602 = vadd.f32 0.0, %v3601
    %v3603 = vpop.f32.mrf.mxu0
    %3604 = vdwg.mxu0
    %v3606 = vsel %vm163, %v3448, 0
    %3608 = vmatprep.subr.mxu0 0.0
    %3609 = vmatpush1.msra.mxu0 0.0
    %3610 = vmatprep.subr.mxu0 0.0
    %3611 = vmatpush1.msra.mxu0 0.0
    %3612 = vmatprep.subr.mxu0 0.0
    %3613 = vmatpush1.msra.mxu0 0.0
    %3614 = vmatprep.subr.mxu0 0.0
    %3615 = vmatpush1.msra.mxu0 0.0
    %3616 = vmatprep.subr.mxu0 0.0
    %3617 = vmatpush1.msra.mxu0 0.0
    %3618 = vmatprep.subr.mxu0 0.0
    %3619 = vmatpush1.msra.mxu0 0.0
    %3620 = vmatprep.subr.mxu0 0.0
    %3621 = vmatpush1.msra.mxu0 0.0
    %3622 = vmatprep.subr.mxu0 0.0
    %3623 = vmatpush1.msra.mxu0 0.0
    %3624 = vmatprep.subr.mxu0 0.0
    %3625 = vmatpush1.msra.mxu0 0.0
    %3626 = vmatprep.subr.mxu0 0.0
    %3627 = vmatpush1.msra.mxu0 0.0
    %3628 = vmatprep.subr.mxu0 0.0
    %3629 = vmatpush1.msra.mxu0 0.0
    %3630 = vmatprep.subr.mxu0 0.0
    %3631 = vmatpush1.msra.mxu0 0.0
    %3632 = vmatprep.subr.mxu0 0.0
    %3633 = vmatpush1.msra.mxu0 0.0
    %3634 = vmatprep.subr.mxu0 0.0
    %3635 = vmatpush1.msra.mxu0 0.0
    %3636 = vmatprep.subr.mxu0 0.0
    %3637 = vmatpush1.msra.mxu0 0.0
    %3638 = vmatprep.subr.mxu0 0.0
    %3639 = vmatpush1.msra.mxu0 %v3529
    %3640 = vmatprep.subr.mxu0 0.0
    %3641 = vmatpush2.msra.mxu0 0.0
    %3642 = vmatprep.subr.mxu0 0.0
    %3643 = vmatpush2.msra.mxu0 0.0
    %3644 = vmatprep.subr.mxu0 0.0
    %3645 = vmatpush2.msra.mxu0 0.0
    %3646 = vmatprep.subr.mxu0 0.0
    %3647 = vmatpush2.msra.mxu0 0.0
    %3648 = vmatprep.subr.mxu0 0.0
    %3649 = vmatpush2.msra.mxu0 0.0
    %3650 = vmatprep.subr.mxu0 0.0
    %3651 = vmatpush2.msra.mxu0 0.0
    %3652 = vmatprep.subr.mxu0 0.0
    %3653 = vmatpush2.msra.mxu0 0.0
    %3654 = vmatprep.subr.mxu0 0.0
    %3655 = vmatpush2.msra.mxu0 0.0
    %3656 = vmatprep.subr.mxu0 0.0
    %3657 = vmatpush2.msra.mxu0 0.0
    %3658 = vmatprep.subr.mxu0 0.0
    %3659 = vmatpush2.msra.mxu0 0.0
    %3660 = vmatprep.subr.mxu0 0.0
    %3661 = vmatpush2.msra.mxu0 0.0
    %3662 = vmatprep.subr.mxu0 0.0
    %3663 = vmatpush2.msra.mxu0 0.0
    %3664 = vmatprep.subr.mxu0 0.0
    %3665 = vmatpush2.msra.mxu0 0.0
    %3666 = vmatprep.subr.mxu0 0.0
    %3667 = vmatpush2.msra.mxu0 0.0
    %3668 = vmatprep.subr.mxu0 0.0
    %3669 = vmatpush2.msra.mxu0 0.0
    %3670 = vmatprep.subr.mxu0 0.0
    %3671 = vmatpush2.msra.mxu0 0.0
    %3672 = vmatprep.mubr.f32.mxu0 0.0
    %3673 = vmatmul.mubr.f32.gmra.mxu0 %v3606
    %v3674 = vpop.f32.mrf.mxu0
    %v3675 = vadd.f32 0.0, %v3674
    %v3676 = vpop.f32.mrf.mxu0
    %3677 = vdwg.mxu0
    %v3678 = vadd.f32 %v3269, %v3602
    %v3679 = vadd.f32 %v3270, %v3675
    %3680 = vrot.lane.b32.xlu0 %v2629, 8
    %v3681 = vpop.permute.xlu0 %3680
    %3682 = vrot.lane.b32.xlu0 %v2630, 8
    %v3683 = vpop.permute.xlu0 %3682
    %3686 = vrot.lane.b32.xlu0 %v3038, 16
    %v3687 = vpop.permute.xlu0 %3686
    %3688 = vrot.lane.b32.xlu0 %v3039, 16
    %v3689 = vpop.permute.xlu0 %3688
    %3692 = vrot.lane.b32.xlu0 %v3447, 24
    %v3693 = vpop.permute.xlu0 %3692
    %3694 = vrot.lane.b32.xlu0 %v3448, 24
    %v3695 = vpop.permute.xlu0 %3694
    %v3698 = vsel %vm163, %v2220, %v3681
    %v3699 = vsel %vm163, %v2221, %v3683
    %v3700 = vsel %vm1815, %v3698, %v3687
    %v3701 = vsel %vm1815, %v3699, %v3689
    %v3702 = vsel %vm1818, %v3700, %v3693
    %v3703 = vsel %vm1818, %v3701, %v3695
    %v3704 = vsel %vm72, %v3678, 0.0
    %3705 = vadd.xlane.f32.xlu0 %v3704
    %v3706 = vpop.xlane.xlu0 %3705
    %v3707 = vsel %vm72, %v3679, 0.0
    %3708 = vadd.xlane.f32.xlu0 %v3707
    %v3709 = vpop.xlane.xlu0 %3708
    %v3710 = vmul.f32 %v3706, %v1827
    %v3711 = vmul.f32 %v3709, %v1827
    %v3712 = vmul.f32 %v3678, %v3678
    %v3713 = vmul.f32 %v3679, %v3679
    %v3714 = vsel %vm72, %v3712, 0.0
    %3715 = vadd.xlane.f32.xlu0 %v3714
    %v3716 = vpop.xlane.xlu0 %3715
    %v3717 = vsel %vm72, %v3713, 0.0
    %3718 = vadd.xlane.f32.xlu0 %v3717
    %v3719 = vpop.xlane.xlu0 %3718
    %v3720 = vmul.f32 %v3716, %v1827
    %v3721 = vmul.f32 %v3719, %v1827
    %v3722 = vmul.f32 %v3710, %v3710
    %v3723 = vmul.f32 %v3711, %v3711
    %v3724 = vsub.f32 %v3720, %v3722
    %v3725 = vsub.f32 %v3721, %v3723
    %v3726 = vsub.f32 %v3678, %v3710
    %v3727 = vsub.f32 %v3679, %v3711
    %v3728 = vadd.f32 %v3724, 1e-05
    %v3729 = vadd.f32 %v3725, 1e-05
    %v3730 = vrsqrt.pop %v3728
    %v3731 = vrsqrt.pop %v3729
    %v3732 = vmul.f32 %v3726, %v3730
    %v3733 = vmul.f32 %v3727, %v3731
    %v3734 = vlaneseq
    %v3735 = vshrl.u32 %v3734, 7
    %v3736 = vsub.s32 7, %v3735
    %v3737 = vrot.slane %v66, %v3736
    %v3738 = vmul.f32 %v3732, %v3737
    %v3739 = vmul.f32 %v3733, %v3737
    %v3740 = vlaneseq
    %v3741 = vshrl.u32 %v3740, 7
    %v3742 = vsub.s32 0, %v3741
    %v3743 = vrot.slane %v67, %v3742
    %v3744 = vadd.f32 %v3738, %v3743
    %v3745 = vadd.f32 %v3739, %v3743
    %v3746 = vlaneseq
    %v3747 = vshrl.u32 %v3746, 7
    %v3748 = vsub.s32 1, %v3747
    %v3749 = vrot.slane %v67, %v3748
    %v3751 = vsel %vm72, %v3744, 0
    %v3754 = vsel %vm72, %v3745, 0
    %3756 = vmatprep.subr.mxu0 0.0
    %3757 = vmatpush1.msra.mxu0 0.0
    %3758 = vmatprep.subr.mxu0 0.0
    %3759 = vmatpush1.msra.mxu0 0.0
    %3760 = vmatprep.subr.mxu0 0.0
    %3761 = vmatpush1.msra.mxu0 0.0
    %3762 = vmatprep.subr.mxu0 0.0
    %3763 = vmatpush1.msra.mxu0 0.0
    %3764 = vmatprep.subr.mxu0 0.0
    %3765 = vmatpush1.msra.mxu0 0.0
    %3766 = vmatprep.subr.mxu0 0.0
    %3767 = vmatpush1.msra.mxu0 0.0
    %3768 = vmatprep.subr.mxu0 0.0
    %3769 = vmatpush1.msra.mxu0 0.0
    %3770 = vmatprep.subr.mxu0 0.0
    %3771 = vmatpush1.msra.mxu0 0.0
    %3772 = vmatprep.subr.mxu0 0.0
    %3773 = vmatpush1.msra.mxu0 0.0
    %3774 = vmatprep.subr.mxu0 0.0
    %3775 = vmatpush1.msra.mxu0 0.0
    %3776 = vmatprep.subr.mxu0 0.0
    %3777 = vmatpush1.msra.mxu0 0.0
    %3778 = vmatprep.subr.mxu0 0.0
    %3779 = vmatpush1.msra.mxu0 0.0
    %3780 = vmatprep.subr.mxu0 0.0
    %3781 = vmatpush1.msra.mxu0 %v57
    %3782 = vmatprep.subr.mxu0 0.0
    %3783 = vmatpush1.msra.mxu0 %v56
    %3784 = vmatprep.subr.mxu0 0.0
    %3785 = vmatpush1.msra.mxu0 %v55
    %3786 = vmatprep.subr.mxu0 0.0
    %3787 = vmatpush1.msra.mxu0 %v54
    %3788 = vmatprep.subr.mxu0 0.0
    %3789 = vmatpush2.msra.mxu0 0.0
    %3790 = vmatprep.subr.mxu0 0.0
    %3791 = vmatpush2.msra.mxu0 0.0
    %3792 = vmatprep.subr.mxu0 0.0
    %3793 = vmatpush2.msra.mxu0 0.0
    %3794 = vmatprep.subr.mxu0 0.0
    %3795 = vmatpush2.msra.mxu0 0.0
    %3796 = vmatprep.subr.mxu0 0.0
    %3797 = vmatpush2.msra.mxu0 0.0
    %3798 = vmatprep.subr.mxu0 0.0
    %3799 = vmatpush2.msra.mxu0 0.0
    %3800 = vmatprep.subr.mxu0 0.0
    %3801 = vmatpush2.msra.mxu0 0.0
    %3802 = vmatprep.subr.mxu0 0.0
    %3803 = vmatpush2.msra.mxu0 0.0
    %3804 = vmatprep.subr.mxu0 0.0
    %3805 = vmatpush2.msra.mxu0 0.0
    %3806 = vmatprep.subr.mxu0 0.0
    %3807 = vmatpush2.msra.mxu0 0.0
    %3808 = vmatprep.subr.mxu0 0.0
    %3809 = vmatpush2.msra.mxu0 0.0
    %3810 = vmatprep.subr.mxu0 0.0
    %3811 = vmatpush2.msra.mxu0 0.0
    %3812 = vmatprep.subr.mxu0 0.0
    %3813 = vmatpush2.msra.mxu0 0.0
    %3814 = vmatprep.subr.mxu0 0.0
    %3815 = vmatpush2.msra.mxu0 0.0
    %3816 = vmatprep.subr.mxu0 0.0
    %3817 = vmatpush2.msra.mxu0 0.0
    %3818 = vmatprep.subr.mxu0 0.0
    %3819 = vmatpush2.msra.mxu0 0.0
    %3820 = vmatprep.mubr.f32.mxu0 0.0
    %3821 = vmatmul.mubr.f32.gmra.mxu0 %v3751
    %v3822 = vpop.f32.mrf.mxu0
    %v3823 = vadd.f32 %v3749, %v3822
    %v3824 = vpop.f32.mrf.mxu0
    %3825 = vmatprep.mubr.f32.mxu0 0.0
    %3826 = vmatmul.mubr.f32.gmra.mxu0 %v3754
    %v3827 = vpop.f32.mrf.mxu0
    %v3828 = vadd.f32 %v3749, %v3827
    %v3829 = vpop.f32.mrf.mxu0
    %3830 = vdwg.mxu0
    %v3831 = vmax.f32 %v3823, 0.0
    %v3832 = vmax.f32 %v3828, 0.0
    %v3833 = vlaneseq
    %v3834 = vshrl.u32 %v3833, 7
    %v3835 = vsub.s32 2, %v3834
    %v3836 = vrot.slane %v67, %v3835
    %vm3837 = vcmask 523264
    %v3839 = vsel %vm3837, %v3831, 0
    %v3842 = vsel %vm3837, %v3832, 0
    %3844 = vmatprep.subr.mxu0 0.0
    %3845 = vmatpush1.msra.mxu0 0.0
    %3846 = vmatprep.subr.mxu0 0.0
    %3847 = vmatpush1.msra.mxu0 0.0
    %3848 = vmatprep.subr.mxu0 0.0
    %3849 = vmatpush1.msra.mxu0 0.0
    %3850 = vmatprep.subr.mxu0 0.0
    %3851 = vmatpush1.msra.mxu0 0.0
    %3852 = vmatprep.subr.mxu0 0.0
    %3853 = vmatpush1.msra.mxu0 0.0
    %3854 = vmatprep.subr.mxu0 0.0
    %3855 = vmatpush1.msra.mxu0 0.0
    %3856 = vmatprep.subr.mxu0 0.0
    %3857 = vmatpush1.msra.mxu0 0.0
    %3858 = vmatprep.subr.mxu0 0.0
    %3859 = vmatpush1.msra.mxu0 0.0
    %3860 = vmatprep.subr.mxu0 0.0
    %3861 = vmatpush1.msra.mxu0 %v65
    %3862 = vmatprep.subr.mxu0 0.0
    %3863 = vmatpush1.msra.mxu0 %v64
    %3864 = vmatprep.subr.mxu0 0.0
    %3865 = vmatpush1.msra.mxu0 %v63
    %3866 = vmatprep.subr.mxu0 0.0
    %3867 = vmatpush1.msra.mxu0 %v62
    %3868 = vmatprep.subr.mxu0 0.0
    %3869 = vmatpush1.msra.mxu0 %v61
    %3870 = vmatprep.subr.mxu0 0.0
    %3871 = vmatpush1.msra.mxu0 %v60
    %3872 = vmatprep.subr.mxu0 0.0
    %3873 = vmatpush1.msra.mxu0 %v59
    %3874 = vmatprep.subr.mxu0 0.0
    %3875 = vmatpush1.msra.mxu0 %v58
    %3876 = vmatprep.subr.mxu0 0.0
    %3877 = vmatpush2.msra.mxu0 0.0
    %3878 = vmatprep.subr.mxu0 0.0
    %3879 = vmatpush2.msra.mxu0 0.0
    %3880 = vmatprep.subr.mxu0 0.0
    %3881 = vmatpush2.msra.mxu0 0.0
    %3882 = vmatprep.subr.mxu0 0.0
    %3883 = vmatpush2.msra.mxu0 0.0
    %3884 = vmatprep.subr.mxu0 0.0
    %3885 = vmatpush2.msra.mxu0 0.0
    %3886 = vmatprep.subr.mxu0 0.0
    %3887 = vmatpush2.msra.mxu0 0.0
    %3888 = vmatprep.subr.mxu0 0.0
    %3889 = vmatpush2.msra.mxu0 0.0
    %3890 = vmatprep.subr.mxu0 0.0
    %3891 = vmatpush2.msra.mxu0 0.0
    %3892 = vmatprep.subr.mxu0 0.0
    %3893 = vmatpush2.msra.mxu0 0.0
    %3894 = vmatprep.subr.mxu0 0.0
    %3895 = vmatpush2.msra.mxu0 0.0
    %3896 = vmatprep.subr.mxu0 0.0
    %3897 = vmatpush2.msra.mxu0 0.0
    %3898 = vmatprep.subr.mxu0 0.0
    %3899 = vmatpush2.msra.mxu0 0.0
    %3900 = vmatprep.subr.mxu0 0.0
    %3901 = vmatpush2.msra.mxu0 0.0
    %3902 = vmatprep.subr.mxu0 0.0
    %3903 = vmatpush2.msra.mxu0 0.0
    %3904 = vmatprep.subr.mxu0 0.0
    %3905 = vmatpush2.msra.mxu0 0.0
    %3906 = vmatprep.subr.mxu0 0.0
    %3907 = vmatpush2.msra.mxu0 0.0
    %3908 = vmatprep.mubr.f32.mxu0 0.0
    %3909 = vmatmul.mubr.f32.gmra.mxu0 %v3839
    %v3910 = vpop.f32.mrf.mxu0
    %v3911 = vadd.f32 %v3836, %v3910
    %v3912 = vpop.f32.mrf.mxu0
    %3913 = vmatprep.mubr.f32.mxu0 0.0
    %3914 = vmatmul.mubr.f32.gmra.mxu0 %v3842
    %v3915 = vpop.f32.mrf.mxu0
    %v3916 = vadd.f32 %v3836, %v3915
    %v3917 = vpop.f32.mrf.mxu0
    %3918 = vdwg.mxu0
    %v3919 = vadd.f32 %v3911, %v3744
    %v3920 = vadd.f32 %v3916, %v3745
    %v3921 = vsel %vm72, %v3919, 0.0
    %3922 = vadd.xlane.f32.xlu0 %v3921
    %v3923 = vpop.xlane.xlu0 %3922
    %v3924 = vsel %vm72, %v3920, 0.0
    %3925 = vadd.xlane.f32.xlu0 %v3924
    %v3926 = vpop.xlane.xlu0 %3925
    %v3927 = vmul.f32 %v3923, %v1827
    %v3928 = vmul.f32 %v3926, %v1827
    %v3929 = vmul.f32 %v3919, %v3919
    %v3930 = vmul.f32 %v3920, %v3920
    %v3931 = vsel %vm72, %v3929, 0.0
    %3932 = vadd.xlane.f32.xlu0 %v3931
    %v3933 = vpop.xlane.xlu0 %3932
    %v3934 = vsel %vm72, %v3930, 0.0
    %3935 = vadd.xlane.f32.xlu0 %v3934
    %v3936 = vpop.xlane.xlu0 %3935
    %v3937 = vmul.f32 %v3933, %v1827
    %v3938 = vmul.f32 %v3936, %v1827
    %v3939 = vmul.f32 %v3927, %v3927
    %v3940 = vmul.f32 %v3928, %v3928
    %v3941 = vsub.f32 %v3937, %v3939
    %v3942 = vsub.f32 %v3938, %v3940
    %v3943 = vsub.f32 %v3919, %v3927
    %v3944 = vsub.f32 %v3920, %v3928
    %v3945 = vadd.f32 %v3941, 1e-05
    %v3946 = vadd.f32 %v3942, 1e-05
    %v3947 = vrsqrt.pop %v3945
    %v3948 = vrsqrt.pop %v3946
    %v3949 = vmul.f32 %v3943, %v3947
    %v3950 = vmul.f32 %v3944, %v3948
    %v3951 = vlaneseq
    %v3952 = vshrl.u32 %v3951, 7
    %v3953 = vsub.s32 3, %v3952
    %v3954 = vrot.slane %v67, %v3953
    %v3955 = vmul.f32 %v3949, %v3954
    %v3956 = vmul.f32 %v3950, %v3954
    %v3957 = vlaneseq
    %v3958 = vshrl.u32 %v3957, 7
    %v3959 = vsub.s32 4, %v3958
    %v3960 = vrot.slane %v67, %v3959
    %v3961 = vadd.f32 %v3955, %v3960
    %v3962 = vadd.f32 %v3956, %v3960
    %3965 = vrot.lane.b32.xlu0 %v1819, 32
    %v3966 = vpop.permute.xlu0 %3965
    %3967 = vrot.lane.b32.xlu0 %v1820, 32
    %v3968 = vpop.permute.xlu0 %3967
    %3973 = vrot.lane.b32.xlu0 %v3702, 64
    %v3974 = vpop.permute.xlu0 %3973
    %3975 = vrot.lane.b32.xlu0 %v3703, 64
    %v3976 = vpop.permute.xlu0 %3975
    %v3979 = vsel %vm72, %v3961, %v3966
    %v3980 = vsel %vm72, %v3962, %v3968
    %v3981 = vsel %vm3837, %v3979, %v3974
    %v3982 = vsel %vm3837, %v3980, %v3976
    %vm3983 = vcmask 785408
    %v3984 = vsel %vm3983, %v3981, 0.0
    %v3985 = vsel %vm3983, %v3982, 0.0
    %3986 = vst [vmem:[%s3] sm:$0xff] %v3984
    %3987 = vst [vmem:[%s3 + $0x8] sm:$0xff] %v3985
    // Predicated region
    $region18: #{decoder_layer.1} parent=1 // pred_check
      _
    $region19: #{decoder_layer.1} parent=1 // pred_check_branch
      %3989 = sbr.rel (0) target = $region21
    $region20: #{decoder_layer.1} parent=1 // pred_region
      _
    $region21: #{decoder_layer.1} parent=1 // pred_fallthru
      _
    // Predicated region
    $region22: #{decoder_layer.1} parent=1 // pred_check
      _
    $region23: #{decoder_layer.1} parent=1 // pred_check_branch
      %3991 = sbr.rel (0) target = $region25
    $region24: #{decoder_layer.1} parent=1 // pred_region
      _
    $region25: #{decoder_layer.1} parent=1 // pred_fallthru
      _
    %3992 = vsyncpa [#allocation3], 1

</llo_original>
